<compile_context>
chip_gen: v6e
topology: v6e:2x2x1
jax: 0.10.0
libtpu: 0.0.40
codegen_flags: <defaults>
</compile_context>

<pallas_src>
import jax
import jax.numpy as jnp
from jax.experimental import pallas as pl
from jax.experimental.pallas import tpu as pltpu


def _round_up(x, m):
    return ((x + m - 1) // m) * m


# ---------------------------------------------------------------------------
# Fused Pallas kernel: Fourier embedding + full MLP, channel-first layout.
# ---------------------------------------------------------------------------
def _make_mlp_kernel(num_layers, num_freqs):
    """Builds the fused kernel.

    Ref layout (all channel-first; TILE_N on the 128-lane axis):
      x_ref   : (C, TILE_N)                    raw coordinates
      w1_ref  : (1 + 2*num_freqs, OUT1, C)     first-layer weight, split into
                                               one (OUT1, C) block per
                                               embedding feature
      b1_ref  : (OUT1, 1)
      w_i/b_i : (OUT_i, IN_i) / (OUT_i, 1)     remaining layers
      o_ref   : (OUT_last, TILE_N)
    """

    def kernel(x_ref, *refs):
        o_ref = refs[-1]
        p = refs[:-1]

        x = x_ref[...]                                        # (C, TILE_N) f32

        # ---- fused Fourier embedding + first Linear (per-feature matmuls) ----
        w1_ref, b1_ref = p[0], p[1]
        h = jnp.dot(w1_ref[0], x, preferred_element_type=jnp.float32)
        for k in range(num_freqs):
            scale = (2.0 ** k) * jnp.pi
            s = jnp.sin(scale * x)                            # EUP, lane-dense
            c = jnp.cos(scale * x)
            h = h + jnp.dot(w1_ref[1 + 2 * k], s,
                            preferred_element_type=jnp.float32)
            h = h + jnp.dot(w1_ref[2 + 2 * k], c,
                            preferred_element_type=jnp.float32)
        h = jnp.maximum(h + b1_ref[...], 0.0)                 # bias + ReLU

        # ---- remaining Linear + ReLU layers (activations never leave VMEM) ----
        for li in range(1, num_layers):
            w_ref, b_ref = p[2 * li], p[2 * li + 1]
            h = jnp.dot(w_ref[...], h, preferred_element_type=jnp.float32)
            h = jnp.maximum(h + b_ref[...], 0.0)

        o_ref[...] = h.astype(o_ref.dtype)

    return kernel


# ---------------------------------------------------------------------------
# Wrapper: layout plumbing + single pallas_call over row tiles of points.
# ---------------------------------------------------------------------------
def mlp_forward(x, params, *, num_freqs=4, tile_n=2048):
    """x: (N, C) coordinates -> (N, neurons[-1]); whole MLP in ONE pallas_call."""
    n, c = x.shape
    num_layers = len(params)
    num_feats = 1 + 2 * num_freqs

    # --- parameter plumbing (once per call; channel-first orientation) ---
    w1, b1 = params[0]                       # w1: (F*C, OUT1), b1: (1, OUT1)
    out1 = w1.shape[1]
    assert w1.shape[0] == num_feats * c
    # block j of the first layer is w1[C*j : C*(j+1), :].T  -> (F, OUT1, C)
    w1_split = jnp.transpose(w1.reshape(num_feats, c, out1), (0, 2, 1))
    flat = [w1_split, b1.T]                  # bias -> (OUT1, 1)
    for (w, b) in params[1:]:
        flat.append(w.T)                     # (in, out) -> (out, in)
        flat.append(b.T)                     # (1, out)  -> (out, 1)
    out_dim = params[-1][0].shape[1]

    # --- lane-dense row tile; pad N up instead of asserting divisibility ---
    tile_n = min(tile_n, _round_up(n, 128))
    n_pad = _round_up(n, tile_n)
    xt = jnp.pad(x.T, ((0, 0), (0, n_pad - n)))               # (C, N_pad)

    kernel = _make_mlp_kernel(num_layers, num_freqs)

    def _resident(shape):
        nd = len(shape)
        return pl.BlockSpec(shape, lambda i, nd=nd: (0,) * nd)

    out_t = pl.pallas_call(
        kernel,
        out_shape=jax.ShapeDtypeStruct((out_dim, n_pad), x.dtype),
        grid_spec=pltpu.PrefetchScalarGridSpec(
            num_scalar_prefetch=0,
            grid=(n_pad // tile_n,),
            in_specs=[pl.BlockSpec((c, tile_n), lambda i: (0, i))]
                     + [_resident(a.shape) for a in flat],
            out_specs=pl.BlockSpec((out_dim, tile_n), lambda i: (0, i)),
        ),
        compiler_params=pltpu.CompilerParams(
            dimension_semantics=("parallel",),
        ),
    )(xt, *flat)

    return out_t[:, :n].T                                     # (N, OUT_last)


# ---------------------------------------------------------------------------
# Glue: embedding_fn + deterministic parameter init (matches torch semantics).
# ---------------------------------------------------------------------------
def fourier_embedding(x, num_freqs=4):
    """embedding_fn: concat([x, sin(2^k pi x), cos(2^k pi x)]) for k=0..L-1."""
    feats = [x]
    for k in range(num_freqs):
        scale = (2.0 ** k) * jnp.pi
        feats.append(jnp.sin(scale * x))
        feats.append(jnp.cos(scale * x))
    return jnp.concatenate(feats, axis=-1)


def init_mlp_params(key, neurons):
    """Deterministic Linear params, stored (in, out) / (1, out) for x @ W + b."""
    params = []
    for d_in, d_out in zip(neurons[:-1], neurons[1:]):
        key, kw, kb = jax.random.split(key, 3)
        bound = 1.0 / jnp.sqrt(d_in)          # torch.nn.Linear init range
        w = jax.random.uniform(kw, (d_in, d_out), jnp.float32, -bound, bound)
        b = jax.random.uniform(kb, (1, d_out), jnp.float32, -bound, bound)
        params.append((w, b))
    return params


# ---------------------------------------------------------------------------
# Pure-JAX reference for correctness.
# ---------------------------------------------------------------------------
def mlp_forward_ref(x, params, *, num_freqs=4):
    h = fourier_embedding(x, num_freqs=num_freqs)
    for (w, b) in params:
        h = jnp.maximum(h @ w + b, 0.0)       # activation after every layer
    return h


if __name__ == "__main__":
    key = jax.random.PRNGKey(0)
    k_x, k_p = jax.random.split(key)

    # Small input: N spatio-temporal coordinates (t, y, x) in [0, 1).
    # N deliberately NOT a multiple of 128 to exercise the padding path.
    N, COORD = 300, 3
    x = jax.random.uniform(k_x, (N, COORD), jnp.float32)

    NUM_FREQS = 4
    EMB_DIM = COORD * (1 + 2 * NUM_FREQS)     # 27
    neurons = [EMB_DIM, 32, 32, 3]            # self.neurons

    params = init_mlp_params(k_p, neurons)

    out = mlp_forward(x, params, num_freqs=NUM_FREQS)
    out = jax.block_until_ready(out)

    ref = mlp_forward_ref(x, params, num_freqs=NUM_FREQS)
    assert out.shape == (N, neurons[-1])
    assert jnp.allclose(out, ref, atol=1e-5, rtol=1e-5), "mismatch vs reference"

    print("KERNEL_OK")
</pallas_src>

<mosaic_0001>
module attributes {stable_mosaic.version = 11 : i64} {
  func.func @kernel(%arg0: i32, %arg1: memref<3x384xf32, #tpu.memory_space<vmem>>, %arg2: memref<9x32x3xf32, #tpu.memory_space<vmem>>, %arg3: memref<32x1xf32, #tpu.memory_space<vmem>>, %arg4: memref<32x32xf32, #tpu.memory_space<vmem>>, %arg5: memref<32x1xf32, #tpu.memory_space<vmem>>, %arg6: memref<3x32xf32, #tpu.memory_space<vmem>>, %arg7: memref<3x1xf32, #tpu.memory_space<vmem>>, %arg8: memref<3x384xf32, #tpu.memory_space<vmem>>) attributes {dimension_semantics = [#tpu.dimension_semantics<parallel>], iteration_bounds = array<i64: 1>, scalar_prefetch = 0 : i64, scratch_operands = 0 : i64, tpu.core_type = #tpu.core_type<tc>, window_params = [{transform_indices = @transform_0, window_bounds = array<i64: 3, 384>}, {pipeline_mode = #tpu.pipeline_mode<synchronous>, transform_indices = @transform_1, window_bounds = array<i64: 9, 32, 3>}, {pipeline_mode = #tpu.pipeline_mode<synchronous>, transform_indices = @transform_2, window_bounds = array<i64: 32, 1>}, {pipeline_mode = #tpu.pipeline_mode<synchronous>, transform_indices = @transform_3, window_bounds = array<i64: 32, 32>}, {pipeline_mode = #tpu.pipeline_mode<synchronous>, transform_indices = @transform_4, window_bounds = array<i64: 32, 1>}, {pipeline_mode = #tpu.pipeline_mode<synchronous>, transform_indices = @transform_5, window_bounds = array<i64: 3, 32>}, {pipeline_mode = #tpu.pipeline_mode<synchronous>, transform_indices = @transform_6, window_bounds = array<i64: 3, 1>}, {transform_indices = @transform_7, window_bounds = array<i64: 3, 384>}]} {
    %c0 = arith.constant 0 : index
    %c0_0 = arith.constant 0 : index
    %0 = vector.load %arg1[%c0, %c0_0] : memref<3x384xf32, #tpu.memory_space<vmem>>, vector<3x384xf32>
    %c0_1 = arith.constant 0 : index
    %c0_2 = arith.constant 0 : index
    %c0_3 = arith.constant 0 : index
    %1 = vector.load %arg2[%c0_1, %c0_2, %c0_3] : memref<9x32x3xf32, #tpu.memory_space<vmem>>, vector<1x32x3xf32>
    %2 = vector.shape_cast %1 : vector<1x32x3xf32> to vector<32x3xf32>
    %cst = arith.constant dense<0.000000e+00> : vector<32x384xf32>
    %3 = tpu.matmul %2, %0, %cst {dimension_numbers = #tpu.dot_dimension_numbers<[1], [0], [0], [1], [0, 0, 1, 1], [], []>} : vector<32x3xf32>, vector<3x384xf32>, vector<32x384xf32> -> vector<32x384xf32>
    %cst_4 = arith.constant 3.14159274 : f32
    %4 = vector.broadcast %cst_4 : f32 to vector<3x384xf32>
    %5 = arith.mulf %4, %0 : vector<3x384xf32>
    %6 = math.sin %5 : vector<3x384xf32>
    %cst_5 = arith.constant 3.14159274 : f32
    %7 = vector.broadcast %cst_5 : f32 to vector<3x384xf32>
    %8 = arith.mulf %7, %0 : vector<3x384xf32>
    %9 = math.cos %8 : vector<3x384xf32>
    %c1 = arith.constant 1 : index
    %c0_6 = arith.constant 0 : index
    %c0_7 = arith.constant 0 : index
    %10 = vector.load %arg2[%c1, %c0_6, %c0_7] : memref<9x32x3xf32, #tpu.memory_space<vmem>>, vector<1x32x3xf32>
    %11 = vector.shape_cast %10 : vector<1x32x3xf32> to vector<32x3xf32>
    %cst_8 = arith.constant dense<0.000000e+00> : vector<32x384xf32>
    %12 = tpu.matmul %11, %6, %cst_8 {dimension_numbers = #tpu.dot_dimension_numbers<[1], [0], [0], [1], [0, 0, 1, 1], [], []>} : vector<32x3xf32>, vector<3x384xf32>, vector<32x384xf32> -> vector<32x384xf32>
    %13 = arith.addf %3, %12 : vector<32x384xf32>
    %c2 = arith.constant 2 : index
    %c0_9 = arith.constant 0 : index
    %c0_10 = arith.constant 0 : index
    %14 = vector.load %arg2[%c2, %c0_9, %c0_10] : memref<9x32x3xf32, #tpu.memory_space<vmem>>, vector<1x32x3xf32>
    %15 = vector.shape_cast %14 : vector<1x32x3xf32> to vector<32x3xf32>
    %cst_11 = arith.constant dense<0.000000e+00> : vector<32x384xf32>
    %16 = tpu.matmul %15, %9, %cst_11 {dimension_numbers = #tpu.dot_dimension_numbers<[1], [0], [0], [1], [0, 0, 1, 1], [], []>} : vector<32x3xf32>, vector<3x384xf32>, vector<32x384xf32> -> vector<32x384xf32>
    %17 = arith.addf %13, %16 : vector<32x384xf32>
    %cst_12 = arith.constant 6.28318548 : f32
    %18 = vector.broadcast %cst_12 : f32 to vector<3x384xf32>
    %19 = arith.mulf %18, %0 : vector<3x384xf32>
    %20 = math.sin %19 : vector<3x384xf32>
    %cst_13 = arith.constant 6.28318548 : f32
    %21 = vector.broadcast %cst_13 : f32 to vector<3x384xf32>
    %22 = arith.mulf %21, %0 : vector<3x384xf32>
    %23 = math.cos %22 : vector<3x384xf32>
    %c3 = arith.constant 3 : index
    %c0_14 = arith.constant 0 : index
    %c0_15 = arith.constant 0 : index
    %24 = vector.load %arg2[%c3, %c0_14, %c0_15] : memref<9x32x3xf32, #tpu.memory_space<vmem>>, vector<1x32x3xf32>
    %25 = vector.shape_cast %24 : vector<1x32x3xf32> to vector<32x3xf32>
    %cst_16 = arith.constant dense<0.000000e+00> : vector<32x384xf32>
    %26 = tpu.matmul %25, %20, %cst_16 {dimension_numbers = #tpu.dot_dimension_numbers<[1], [0], [0], [1], [0, 0, 1, 1], [], []>} : vector<32x3xf32>, vector<3x384xf32>, vector<32x384xf32> -> vector<32x384xf32>
    %27 = arith.addf %17, %26 : vector<32x384xf32>
    %c4 = arith.constant 4 : index
    %c0_17 = arith.constant 0 : index
    %c0_18 = arith.constant 0 : index
    %28 = vector.load %arg2[%c4, %c0_17, %c0_18] : memref<9x32x3xf32, #tpu.memory_space<vmem>>, vector<1x32x3xf32>
    %29 = vector.shape_cast %28 : vector<1x32x3xf32> to vector<32x3xf32>
    %cst_19 = arith.constant dense<0.000000e+00> : vector<32x384xf32>
    %30 = tpu.matmul %29, %23, %cst_19 {dimension_numbers = #tpu.dot_dimension_numbers<[1], [0], [0], [1], [0, 0, 1, 1], [], []>} : vector<32x3xf32>, vector<3x384xf32>, vector<32x384xf32> -> vector<32x384xf32>
    %31 = arith.addf %27, %30 : vector<32x384xf32>
    %cst_20 = arith.constant 12.566371 : f32
    %32 = vector.broadcast %cst_20 : f32 to vector<3x384xf32>
    %33 = arith.mulf %32, %0 : vector<3x384xf32>
    %34 = math.sin %33 : vector<3x384xf32>
    %cst_21 = arith.constant 12.566371 : f32
    %35 = vector.broadcast %cst_21 : f32 to vector<3x384xf32>
    %36 = arith.mulf %35, %0 : vector<3x384xf32>
    %37 = math.cos %36 : vector<3x384xf32>
    %c5 = arith.constant 5 : index
    %c0_22 = arith.constant 0 : index
    %c0_23 = arith.constant 0 : index
    %38 = vector.load %arg2[%c5, %c0_22, %c0_23] : memref<9x32x3xf32, #tpu.memory_space<vmem>>, vector<1x32x3xf32>
    %39 = vector.shape_cast %38 : vector<1x32x3xf32> to vector<32x3xf32>
    %cst_24 = arith.constant dense<0.000000e+00> : vector<32x384xf32>
    %40 = tpu.matmul %39, %34, %cst_24 {dimension_numbers = #tpu.dot_dimension_numbers<[1], [0], [0], [1], [0, 0, 1, 1], [], []>} : vector<32x3xf32>, vector<3x384xf32>, vector<32x384xf32> -> vector<32x384xf32>
    %41 = arith.addf %31, %40 : vector<32x384xf32>
    %c6 = arith.constant 6 : index
    %c0_25 = arith.constant 0 : index
    %c0_26 = arith.constant 0 : index
    %42 = vector.load %arg2[%c6, %c0_25, %c0_26] : memref<9x32x3xf32, #tpu.memory_space<vmem>>, vector<1x32x3xf32>
    %43 = vector.shape_cast %42 : vector<1x32x3xf32> to vector<32x3xf32>
    %cst_27 = arith.constant dense<0.000000e+00> : vector<32x384xf32>
    %44 = tpu.matmul %43, %37, %cst_27 {dimension_numbers = #tpu.dot_dimension_numbers<[1], [0], [0], [1], [0, 0, 1, 1], [], []>} : vector<32x3xf32>, vector<3x384xf32>, vector<32x384xf32> -> vector<32x384xf32>
    %45 = arith.addf %41, %44 : vector<32x384xf32>
    %cst_28 = arith.constant 25.1327419 : f32
    %46 = vector.broadcast %cst_28 : f32 to vector<3x384xf32>
    %47 = arith.mulf %46, %0 : vector<3x384xf32>
    %48 = math.sin %47 : vector<3x384xf32>
    %cst_29 = arith.constant 25.1327419 : f32
    %49 = vector.broadcast %cst_29 : f32 to vector<3x384xf32>
    %50 = arith.mulf %49, %0 : vector<3x384xf32>
    %51 = math.cos %50 : vector<3x384xf32>
    %c7 = arith.constant 7 : index
    %c0_30 = arith.constant 0 : index
    %c0_31 = arith.constant 0 : index
    %52 = vector.load %arg2[%c7, %c0_30, %c0_31] : memref<9x32x3xf32, #tpu.memory_space<vmem>>, vector<1x32x3xf32>
    %53 = vector.shape_cast %52 : vector<1x32x3xf32> to vector<32x3xf32>
    %cst_32 = arith.constant dense<0.000000e+00> : vector<32x384xf32>
    %54 = tpu.matmul %53, %48, %cst_32 {dimension_numbers = #tpu.dot_dimension_numbers<[1], [0], [0], [1], [0, 0, 1, 1], [], []>} : vector<32x3xf32>, vector<3x384xf32>, vector<32x384xf32> -> vector<32x384xf32>
    %55 = arith.addf %45, %54 : vector<32x384xf32>
    %c8 = arith.constant 8 : index
    %c0_33 = arith.constant 0 : index
    %c0_34 = arith.constant 0 : index
    %56 = vector.load %arg2[%c8, %c0_33, %c0_34] : memref<9x32x3xf32, #tpu.memory_space<vmem>>, vector<1x32x3xf32>
    %57 = vector.shape_cast %56 : vector<1x32x3xf32> to vector<32x3xf32>
    %cst_35 = arith.constant dense<0.000000e+00> : vector<32x384xf32>
    %58 = tpu.matmul %57, %51, %cst_35 {dimension_numbers = #tpu.dot_dimension_numbers<[1], [0], [0], [1], [0, 0, 1, 1], [], []>} : vector<32x3xf32>, vector<3x384xf32>, vector<32x384xf32> -> vector<32x384xf32>
    %59 = arith.addf %55, %58 : vector<32x384xf32>
    %c0_36 = arith.constant 0 : index
    %c0_37 = arith.constant 0 : index
    %60 = vector.load %arg3[%c0_36, %c0_37] : memref<32x1xf32, #tpu.memory_space<vmem>>, vector<32x1xf32>
    %61 = vector.broadcast %60 : vector<32x1xf32> to vector<32x384xf32>
    %62 = arith.addf %59, %61 : vector<32x384xf32>
    %cst_38 = arith.constant 0.000000e+00 : f32
    %63 = vector.broadcast %cst_38 : f32 to vector<32x384xf32>
    %64 = arith.maximumf %62, %63 : vector<32x384xf32>
    %c0_39 = arith.constant 0 : index
    %c0_40 = arith.constant 0 : index
    %65 = vector.load %arg4[%c0_39, %c0_40] : memref<32x32xf32, #tpu.memory_space<vmem>>, vector<32x32xf32>
    %cst_41 = arith.constant dense<0.000000e+00> : vector<32x384xf32>
    %66 = tpu.matmul %65, %64, %cst_41 {dimension_numbers = #tpu.dot_dimension_numbers<[1], [0], [0], [1], [0, 0, 1, 1], [], []>} : vector<32x32xf32>, vector<32x384xf32>, vector<32x384xf32> -> vector<32x384xf32>
    %c0_42 = arith.constant 0 : index
    %c0_43 = arith.constant 0 : index
    %67 = vector.load %arg5[%c0_42, %c0_43] : memref<32x1xf32, #tpu.memory_space<vmem>>, vector<32x1xf32>
    %68 = vector.broadcast %67 : vector<32x1xf32> to vector<32x384xf32>
    %69 = arith.addf %66, %68 : vector<32x384xf32>
    %cst_44 = arith.constant 0.000000e+00 : f32
    %70 = vector.broadcast %cst_44 : f32 to vector<32x384xf32>
    %71 = arith.maximumf %69, %70 : vector<32x384xf32>
    %c0_45 = arith.constant 0 : index
    %c0_46 = arith.constant 0 : index
    %72 = vector.load %arg6[%c0_45, %c0_46] : memref<3x32xf32, #tpu.memory_space<vmem>>, vector<3x32xf32>
    %cst_47 = arith.constant dense<0.000000e+00> : vector<3x384xf32>
    %73 = tpu.matmul %72, %71, %cst_47 {dimension_numbers = #tpu.dot_dimension_numbers<[1], [0], [0], [1], [0, 0, 1, 1], [], []>} : vector<3x32xf32>, vector<32x384xf32>, vector<3x384xf32> -> vector<3x384xf32>
    %c0_48 = arith.constant 0 : index
    %c0_49 = arith.constant 0 : index
    %74 = vector.load %arg7[%c0_48, %c0_49] : memref<3x1xf32, #tpu.memory_space<vmem>>, vector<3x1xf32>
    %75 = vector.broadcast %74 : vector<3x1xf32> to vector<3x384xf32>
    %76 = arith.addf %73, %75 : vector<3x384xf32>
    %cst_50 = arith.constant 0.000000e+00 : f32
    %77 = vector.broadcast %cst_50 : f32 to vector<3x384xf32>
    %78 = arith.maximumf %76, %77 : vector<3x384xf32>
    %c0_51 = arith.constant 0 : index
    %c0_52 = arith.constant 0 : index
    %79 = vector.load %arg8[%c0_51, %c0_52] : memref<3x384xf32, #tpu.memory_space<vmem>>, vector<3x384xf32>
    tpu.vector_store %arg8[%c0_51, %c0_52], %78 {strides = array<i32>} : memref<3x384xf32, #tpu.memory_space<vmem>>, vector<3x384xf32>,
    return
  }
  func.func @transform_0(%arg0: i32) -> (i32, i32) {
    %c0_i32 = arith.constant 0 : i32
    %c0_i32_0 = arith.constant 0 : i32
    return %c0_i32, %arg0 : i32, i32
  }
  func.func @transform_1(%arg0: i32) -> (i32, i32, i32) {
    %c0_i32 = arith.constant 0 : i32
    %c0_i32_0 = arith.constant 0 : i32
    %c0_i32_1 = arith.constant 0 : i32
    %c0_i32_2 = arith.constant 0 : i32
    return %c0_i32, %c0_i32_0, %c0_i32_1 : i32, i32, i32
  }
  func.func @transform_2(%arg0: i32) -> (i32, i32) {
    %c0_i32 = arith.constant 0 : i32
    %c0_i32_0 = arith.constant 0 : i32
    %c0_i32_1 = arith.constant 0 : i32
    return %c0_i32, %c0_i32_0 : i32, i32
  }
  func.func @transform_3(%arg0: i32) -> (i32, i32) {
    %c0_i32 = arith.constant 0 : i32
    %c0_i32_0 = arith.constant 0 : i32
    %c0_i32_1 = arith.constant 0 : i32
    return %c0_i32, %c0_i32_0 : i32, i32
  }
  func.func @transform_4(%arg0: i32) -> (i32, i32) {
    %c0_i32 = arith.constant 0 : i32
    %c0_i32_0 = arith.constant 0 : i32
    %c0_i32_1 = arith.constant 0 : i32
    return %c0_i32, %c0_i32_0 : i32, i32
  }
  func.func @transform_5(%arg0: i32) -> (i32, i32) {
    %c0_i32 = arith.constant 0 : i32
    %c0_i32_0 = arith.constant 0 : i32
    %c0_i32_1 = arith.constant 0 : i32
    return %c0_i32, %c0_i32_0 : i32, i32
  }
  func.func @transform_6(%arg0: i32) -> (i32, i32) {
    %c0_i32 = arith.constant 0 : i32
    %c0_i32_0 = arith.constant 0 : i32
    %c0_i32_1 = arith.constant 0 : i32
    return %c0_i32, %c0_i32_0 : i32, i32
  }
  func.func @transform_7(%arg0: i32) -> (i32, i32) {
    %c0_i32 = arith.constant 0 : i32
    %c0_i32_0 = arith.constant 0 : i32
    return %c0_i32, %arg0 : i32, i32
  }
}

</mosaic_0001>

<llo_original>
// kernel: tpu_custom_call.1
$region0: #{tpu_custom_call.1}
  #allocation0 [shape = 'u32[]', space=smem, size = 0x4, offset = 0x4, fixed_abs, tag = 'smem constant byte address 0x4 - core index']
  #allocation1 [shape = 'u32[144,128]{1,0:T(1,128)}', space=vmem, size = 0x12000, scoped, tag = 'internal scratch']
  %s0 = inlined_call_operand.vmem [shape: f32[3,384], index: 0, kind: input, shape index: {}]
  %s1 = inlined_call_operand.vmem [shape: f32[9,32,3], index: 1, kind: input, shape index: {}]
  %s2 = inlined_call_operand.vmem [shape: f32[32,1], index: 2, kind: input, shape index: {}]
  %s3 = inlined_call_operand.vmem [shape: f32[32,32], index: 3, kind: input, shape index: {}]
  %s4 = inlined_call_operand.vmem [shape: f32[32,1], index: 4, kind: input, shape index: {}]
  %s5 = inlined_call_operand.vmem [shape: f32[3,32], index: 5, kind: input, shape index: {}]
  %s6 = inlined_call_operand.vmem [shape: f32[3,1], index: 6, kind: input, shape index: {}]
  %s7 = inlined_call_operand.hbm [shape: f32[3,384], index: 7, kind: output, shape index: {}]
  %s8 = sld [smem:[#allocation0]]
  $region38: #{tpu_custom_call.1} parent=0
    _
  %s10 = ssub.s32 1, %s8
  %s11 = scalar_select 0, %s10, %s8
  $region1: #{tpu_custom_call.1} parent=0
    #allocation2 [shape = 'u8[6144]{0}', space=vmem, size = 0x1800, scoped, tag = 'output window, operand 0, single buffered']
    #allocation3 [shape = 's32[1]{0}', space=sflag, size = 0x4, scoped, tag = 'scoped memory for tpu_custom_call.1']
    %12 = vsyncpa [#allocation3], 0
    // Predicated region
    $region2: #{tpu_custom_call.1} parent=1 // pred_check
      _
    $region3: #{tpu_custom_call.1} parent=1 // pred_check_branch
      %14 = sbr.rel (0) target = $region5
    $region4: #{tpu_custom_call.1} parent=1 // pred_region
      _
    $region5: #{tpu_custom_call.1} parent=1 // pred_fallthru
      _
    // Predicated region
    $region6: #{tpu_custom_call.1} parent=1 // pred_check
      _
    $region7: #{tpu_custom_call.1} parent=1 // pred_check_branch
      %16 = sbr.rel (0) target = $region9
    $region8: #{tpu_custom_call.1} parent=1 // pred_region
      _
    $region9: #{tpu_custom_call.1} parent=1 // pred_fallthru
      _
    // Predicated region
    $region10: #{tpu_custom_call.1} parent=1 // pred_check
      _
    $region11: #{tpu_custom_call.1} parent=1 // pred_check_branch
      %18 = sbr.rel (0) target = $region13
    $region12: #{tpu_custom_call.1} parent=1 // pred_region
      _
    $region13: #{tpu_custom_call.1} parent=1 // pred_fallthru
      _
    // Predicated region
    $region14: #{tpu_custom_call.1} parent=1 // pred_check
      _
    $region15: #{tpu_custom_call.1} parent=1 // pred_check_branch
      %20 = sbr.rel (0) target = $region17
    $region16: #{tpu_custom_call.1} parent=1 // pred_region
      _
    $region17: #{tpu_custom_call.1} parent=1 // pred_fallthru
      _
    // Predicated region
    $region18: #{tpu_custom_call.1} parent=1 // pred_check
      _
    $region19: #{tpu_custom_call.1} parent=1 // pred_check_branch
      %22 = sbr.rel (0) target = $region21
    $region20: #{tpu_custom_call.1} parent=1 // pred_region
      _
    $region21: #{tpu_custom_call.1} parent=1 // pred_fallthru
      _
    // Predicated region
    $region22: #{tpu_custom_call.1} parent=1 // pred_check
      _
    $region23: #{tpu_custom_call.1} parent=1 // pred_check_branch
      %24 = sbr.rel (0) target = $region25
    $region24: #{tpu_custom_call.1} parent=1 // pred_region
      _
    $region25: #{tpu_custom_call.1} parent=1 // pred_fallthru
      _
    // Predicated region
    $region26: #{tpu_custom_call.1} parent=1 // pred_check
      _
    $region27: #{tpu_custom_call.1} parent=1 // pred_check_branch
      %26 = sbr.rel (0) target = $region29
    $region28: #{tpu_custom_call.1} parent=1 // pred_region
      _
    $region29: #{tpu_custom_call.1} parent=1 // pred_fallthru
      _
    %v27 = vld [vmem:[%s0] sm:$0x77]
    %v28 = vld [vmem:[%s0 + $0x8] sm:$0x7]
    %v29 = vld [vmem:[%s1] sm:$0xff]
    %v30 = vld [vmem:[%s1 + $0x8] sm:$0xff]
    %v31 = vld [vmem:[%s1 + $0x10] sm:$0xff]
    %v32 = vld [vmem:[%s1 + $0x18] sm:$0xff]
    %v33 = vmul.f32 %v27, 3.1415927
    %v34 = vmul.f32 %v28, 3.1415927
    %v35 = vand.u32 2147483647, %v33
    %vm36 = vcmp.le.f32.partialorder %v35, 0.7853982
    %vm37 = vcmp.lt.s32.totalorder %v33, 0
    %v38 = vand.u32 %v33, 2139095040
    %v39 = vshrl.u32 %v38, 23
    %v40 = vsub.s32 %v39, 127
    %v41 = vand.u32 2147483647, %v33
    %v42 = vand.u32 %v41, 8388607
    %v43 = vor.u32 %v42, 8388608
    %v44 = vsub.s32 0, %v43
    %v45 = vadd.s32 %v40, 1
    %vm46 = vcmp.gt.s32.totalorder %v45, 0
    %v47 = vsel %vm46, %v45, 0
    %v48 = vshrl.u32 %v47, 5
    %v49 = vand.u32 %v47, 31
    %v50 = vsub.s32 32, %v49
    %v51 = vshrl.u32 683565275, %v50
    %v52 = vshll.u32 683565275, %v49
    %v53 = vshrl.u32 2475754826, %v50
    %v54 = vor.u32 %v52, %v53
    %v55 = vshll.u32 2475754826, %v49
    %v56 = vshrl.u32 2131351028, %v50
    %v57 = vor.u32 %v55, %v56
    %v58 = vshll.u32 2131351028, %v49
    %v59 = vshrl.u32 2102212464, %v50
    %v60 = vor.u32 %v58, %v59
    %v61 = vshll.u32 2102212464, %v49
    %v62 = vshrl.u32 920167782, %v50
    %v63 = vor.u32 %v61, %v62
    %v64 = vshll.u32 920167782, %v49
    %v65 = vshrl.u32 1326507024, %v50
    %v66 = vor.u32 %v64, %v65
    %vm67 = vcmp.lt.s32.totalorder %v48, 1
    %vm68 = vcmp.lt.s32.totalorder %v48, 2
    %vm69 = vcmp.lt.s32.totalorder %v48, 3
    %vm70 = vcmp.lt.s32.totalorder %v48, 4
    %v71 = vsel %vm67, %v51, %v54
    %v72 = vsel %vm70, %v60, 2102212464
    %v73 = vsel %vm69, %v57, %v72
    %v74 = vsel %vm68, %v71, %v73
    %v75 = vsel %vm67, %v54, %v57
    %v76 = vsel %vm70, %v63, 920167782
    %v77 = vsel %vm69, %v60, %v76
    %v78 = vsel %vm68, %v75, %v77
    %v79 = vsel %vm67, %v57, %v60
    %v80 = vsel %vm70, %v66, 1326507024
    %v81 = vsel %vm69, %v63, %v80
    %v82 = vsel %vm68, %v79, %v81
    %v83 = vshll.u32 %v43, 8
    %v84 = vmul.u32.u64.compose %v83, %v82
    %v85 = vextract.low.u32 %v84
    %v86 = vextract.high.u32 %v84
    %v87 = vmul.u32.u64.compose %v83, %v78
    %v88 = vextract.low.u32 %v87
    %v89 = vextract.high.u32 %v87
    %v90 = vmul.u32 %v83, %v74
    %v91 = vadd.s32 %v86, %v88
    %vm92 = vc.u32 %v86, %v88
    %v93 = vadd.s32 %v89, 1
    %v94 = vsel %vm92, %v93, %v89
    %v95 = vadd.s32 %v90, %v94
    %v96 = vadd.s32 %v95, 536870912
    %v97 = vshrl.u32 %v96, 30
    %v98 = vshll.u32 %v97, 30
    %v99 = vsub.s32 %v95, %v98
    %vm100 = vcmp.lt.s32.totalorder %v99, 0
    %v101 = vsub.s32 0, %v99
    %v102 = vsel %vm100, %v101, %v99
    %v103 = vclz %v102
    %v104 = vsub.s32 %v103, 2
    %vm105 = vcmp.gt.s32.totalorder 0, %v104
    %v106 = vsel %vm105, 0, %v104
    %v107 = vsub.s32 32, %v106
    %v108 = vshll.u32 %v99, %v106
    %v109 = vshrl.u32 %v91, %v107
    %v110 = vor.u32 %v108, %v109
    %v111 = vsub.s32 4294967266, %v106
    %v112 = vadd.s32 %v111, 127
    %v113 = vshll.u32 %v112, 23
    %v114 = vor.u32 4788187, %v113
    %v115 = vand.u32 2147483647, %v114
    %v117 = vcvt.s32.f32 %v110
    %v118 = vmul.f32 %v117, %v115
    %v119 = vxor.u32 %v118, 2147483648
    %v120 = vsel %vm37, %v119, %v118
    %v121 = vsub.s32 4, %v97
    %v122 = vsel %vm37, %v121, %v97
    %v123 = vsel %vm36, %v33, %v120
    %v124 = vsel %vm36, 0, %v122
    %v125 = vcosq.f32.pop %v123
    %v126 = vsinq.f32.pop %v123
    %vm127 = vweird.f32 %v33
    %v128 = vadd.s32 %v124, 3
    %v129 = vand.u32 %v128, 3
    %vm130 = vcmp.lt.s32.totalorder %v129, 2
    %vm131 = vcmp.eq.s32.totalorder %v129, 0
    %v132 = vxor.u32 %v126, 2147483648
    %v133 = vsel %vm131, %v125, %v132
    %vm134 = vcmp.eq.s32.totalorder %v129, 2
    %v135 = vxor.u32 %v125, 2147483648
    %v136 = vsel %vm134, %v135, %v126
    %v137 = vsel %vm130, %v133, %v136
    %v138 = vsel %vm127, nan, %v137
    %v139 = vand.u32 2147483647, %v34
    %vm140 = vcmp.le.f32.partialorder %v139, 0.7853982
    %vm141 = vcmp.lt.s32.totalorder %v34, 0
    %v142 = vand.u32 %v34, 2139095040
    %v143 = vshrl.u32 %v142, 23
    %v144 = vsub.s32 %v143, 127
    %v145 = vand.u32 2147483647, %v34
    %v146 = vand.u32 %v145, 8388607
    %v147 = vor.u32 %v146, 8388608
    %v148 = vsub.s32 0, %v147
    %v149 = vadd.s32 %v144, 1
    %vm150 = vcmp.gt.s32.totalorder %v149, 0
    %v151 = vsel %vm150, %v149, 0
    %v152 = vshrl.u32 %v151, 5
    %v153 = vand.u32 %v151, 31
    %v154 = vsub.s32 32, %v153
    %v155 = vshrl.u32 683565275, %v154
    %v156 = vshll.u32 683565275, %v153
    %v157 = vshrl.u32 2475754826, %v154
    %v158 = vor.u32 %v156, %v157
    %v159 = vshll.u32 2475754826, %v153
    %v160 = vshrl.u32 2131351028, %v154
    %v161 = vor.u32 %v159, %v160
    %v162 = vshll.u32 2131351028, %v153
    %v163 = vshrl.u32 2102212464, %v154
    %v164 = vor.u32 %v162, %v163
    %v165 = vshll.u32 2102212464, %v153
    %v166 = vshrl.u32 920167782, %v154
    %v167 = vor.u32 %v165, %v166
    %v168 = vshll.u32 920167782, %v153
    %v169 = vshrl.u32 1326507024, %v154
    %v170 = vor.u32 %v168, %v169
    %vm171 = vcmp.lt.s32.totalorder %v152, 1
    %vm172 = vcmp.lt.s32.totalorder %v152, 2
    %vm173 = vcmp.lt.s32.totalorder %v152, 3
    %vm174 = vcmp.lt.s32.totalorder %v152, 4
    %v175 = vsel %vm171, %v155, %v158
    %v176 = vsel %vm174, %v164, 2102212464
    %v177 = vsel %vm173, %v161, %v176
    %v178 = vsel %vm172, %v175, %v177
    %v179 = vsel %vm171, %v158, %v161
    %v180 = vsel %vm174, %v167, 920167782
    %v181 = vsel %vm173, %v164, %v180
    %v182 = vsel %vm172, %v179, %v181
    %v183 = vsel %vm171, %v161, %v164
    %v184 = vsel %vm174, %v170, 1326507024
    %v185 = vsel %vm173, %v167, %v184
    %v186 = vsel %vm172, %v183, %v185
    %v187 = vshll.u32 %v147, 8
    %v188 = vmul.u32.u64.compose %v187, %v186
    %v189 = vextract.low.u32 %v188
    %v190 = vextract.high.u32 %v188
    %v191 = vmul.u32.u64.compose %v187, %v182
    %v192 = vextract.low.u32 %v191
    %v193 = vextract.high.u32 %v191
    %v194 = vmul.u32 %v187, %v178
    %v195 = vadd.s32 %v190, %v192
    %vm196 = vc.u32 %v190, %v192
    %v197 = vadd.s32 %v193, 1
    %v198 = vsel %vm196, %v197, %v193
    %v199 = vadd.s32 %v194, %v198
    %v200 = vadd.s32 %v199, 536870912
    %v201 = vshrl.u32 %v200, 30
    %v202 = vshll.u32 %v201, 30
    %v203 = vsub.s32 %v199, %v202
    %vm204 = vcmp.lt.s32.totalorder %v203, 0
    %v205 = vsub.s32 0, %v203
    %v206 = vsel %vm204, %v205, %v203
    %v207 = vclz %v206
    %v208 = vsub.s32 %v207, 2
    %vm209 = vcmp.gt.s32.totalorder 0, %v208
    %v210 = vsel %vm209, 0, %v208
    %v211 = vsub.s32 32, %v210
    %v212 = vshll.u32 %v203, %v210
    %v213 = vshrl.u32 %v195, %v211
    %v214 = vor.u32 %v212, %v213
    %v215 = vsub.s32 4294967266, %v210
    %v216 = vadd.s32 %v215, 127
    %v217 = vshll.u32 %v216, 23
    %v218 = vor.u32 4788187, %v217
    %v219 = vand.u32 2147483647, %v218
    %v221 = vcvt.s32.f32 %v214
    %v222 = vmul.f32 %v221, %v219
    %v223 = vxor.u32 %v222, 2147483648
    %v224 = vsel %vm141, %v223, %v222
    %v225 = vsub.s32 4, %v201
    %v226 = vsel %vm141, %v225, %v201
    %v227 = vsel %vm140, %v34, %v224
    %v228 = vsel %vm140, 0, %v226
    %v229 = vcosq.f32.pop %v227
    %v230 = vsinq.f32.pop %v227
    %vm231 = vweird.f32 %v34
    %v232 = vadd.s32 %v228, 3
    %v233 = vand.u32 %v232, 3
    %vm234 = vcmp.lt.s32.totalorder %v233, 2
    %vm235 = vcmp.eq.s32.totalorder %v233, 0
    %v236 = vxor.u32 %v230, 2147483648
    %v237 = vsel %vm235, %v229, %v236
    %vm238 = vcmp.eq.s32.totalorder %v233, 2
    %v239 = vxor.u32 %v229, 2147483648
    %v240 = vsel %vm238, %v239, %v230
    %v241 = vsel %vm234, %v237, %v240
    %v242 = vsel %vm231, nan, %v241
    %v243 = vand.u32 2147483647, %v33
    %vm244 = vcmp.le.f32.partialorder %v243, 0.7853982
    %vm245 = vcmp.lt.s32.totalorder %v33, 0
    %v246 = vand.u32 %v33, 2139095040
    %v247 = vshrl.u32 %v246, 23
    %v248 = vsub.s32 %v247, 127
    %v249 = vand.u32 2147483647, %v33
    %v250 = vand.u32 %v249, 8388607
    %v251 = vor.u32 %v250, 8388608
    %v252 = vsub.s32 0, %v251
    %v253 = vadd.s32 %v248, 1
    %vm254 = vcmp.gt.s32.totalorder %v253, 0
    %v255 = vsel %vm254, %v253, 0
    %v256 = vshrl.u32 %v255, 5
    %v257 = vand.u32 %v255, 31
    %v258 = vsub.s32 32, %v257
    %v259 = vshrl.u32 683565275, %v258
    %v260 = vshll.u32 683565275, %v257
    %v261 = vshrl.u32 2475754826, %v258
    %v262 = vor.u32 %v260, %v261
    %v263 = vshll.u32 2475754826, %v257
    %v264 = vshrl.u32 2131351028, %v258
    %v265 = vor.u32 %v263, %v264
    %v266 = vshll.u32 2131351028, %v257
    %v267 = vshrl.u32 2102212464, %v258
    %v268 = vor.u32 %v266, %v267
    %v269 = vshll.u32 2102212464, %v257
    %v270 = vshrl.u32 920167782, %v258
    %v271 = vor.u32 %v269, %v270
    %v272 = vshll.u32 920167782, %v257
    %v273 = vshrl.u32 1326507024, %v258
    %v274 = vor.u32 %v272, %v273
    %vm275 = vcmp.lt.s32.totalorder %v256, 1
    %vm276 = vcmp.lt.s32.totalorder %v256, 2
    %vm277 = vcmp.lt.s32.totalorder %v256, 3
    %vm278 = vcmp.lt.s32.totalorder %v256, 4
    %v279 = vsel %vm275, %v259, %v262
    %v280 = vsel %vm278, %v268, 2102212464
    %v281 = vsel %vm277, %v265, %v280
    %v282 = vsel %vm276, %v279, %v281
    %v283 = vsel %vm275, %v262, %v265
    %v284 = vsel %vm278, %v271, 920167782
    %v285 = vsel %vm277, %v268, %v284
    %v286 = vsel %vm276, %v283, %v285
    %v287 = vsel %vm275, %v265, %v268
    %v288 = vsel %vm278, %v274, 1326507024
    %v289 = vsel %vm277, %v271, %v288
    %v290 = vsel %vm276, %v287, %v289
    %v291 = vshll.u32 %v251, 8
    %v292 = vmul.u32.u64.compose %v291, %v290
    %v293 = vextract.low.u32 %v292
    %v294 = vextract.high.u32 %v292
    %v295 = vmul.u32.u64.compose %v291, %v286
    %v296 = vextract.low.u32 %v295
    %v297 = vextract.high.u32 %v295
    %v298 = vmul.u32 %v291, %v282
    %v299 = vadd.s32 %v294, %v296
    %vm300 = vc.u32 %v294, %v296
    %v301 = vadd.s32 %v297, 1
    %v302 = vsel %vm300, %v301, %v297
    %v303 = vadd.s32 %v298, %v302
    %v304 = vadd.s32 %v303, 536870912
    %v305 = vshrl.u32 %v304, 30
    %v306 = vshll.u32 %v305, 30
    %v307 = vsub.s32 %v303, %v306
    %vm308 = vcmp.lt.s32.totalorder %v307, 0
    %v309 = vsub.s32 0, %v307
    %v310 = vsel %vm308, %v309, %v307
    %v311 = vclz %v310
    %v312 = vsub.s32 %v311, 2
    %vm313 = vcmp.gt.s32.totalorder 0, %v312
    %v314 = vsel %vm313, 0, %v312
    %v315 = vsub.s32 32, %v314
    %v316 = vshll.u32 %v307, %v314
    %v317 = vshrl.u32 %v299, %v315
    %v318 = vor.u32 %v316, %v317
    %v319 = vsub.s32 4294967266, %v314
    %v320 = vadd.s32 %v319, 127
    %v321 = vshll.u32 %v320, 23
    %v322 = vor.u32 4788187, %v321
    %v323 = vand.u32 2147483647, %v322
    %v325 = vcvt.s32.f32 %v318
    %v326 = vmul.f32 %v325, %v323
    %v327 = vxor.u32 %v326, 2147483648
    %v328 = vsel %vm245, %v327, %v326
    %v329 = vsub.s32 4, %v305
    %v330 = vsel %vm245, %v329, %v305
    %v331 = vsel %vm244, %v33, %v328
    %v332 = vsel %vm244, 0, %v330
    %v333 = vcosq.f32.pop %v331
    %v334 = vsinq.f32.pop %v331
    %vm335 = vweird.f32 %v33
    %v336 = vand.u32 %v332, 3
    %vm337 = vcmp.lt.s32.totalorder %v336, 2
    %vm338 = vcmp.eq.s32.totalorder %v336, 0
    %v339 = vxor.u32 %v334, 2147483648
    %v340 = vsel %vm338, %v333, %v339
    %vm341 = vcmp.eq.s32.totalorder %v336, 2
    %v342 = vxor.u32 %v333, 2147483648
    %v343 = vsel %vm341, %v342, %v334
    %v344 = vsel %vm337, %v340, %v343
    %v345 = vsel %vm335, nan, %v344
    %v346 = vand.u32 2147483647, %v34
    %vm347 = vcmp.le.f32.partialorder %v346, 0.7853982
    %vm348 = vcmp.lt.s32.totalorder %v34, 0
    %v349 = vand.u32 %v34, 2139095040
    %v350 = vshrl.u32 %v349, 23
    %v351 = vsub.s32 %v350, 127
    %v352 = vand.u32 2147483647, %v34
    %v353 = vand.u32 %v352, 8388607
    %v354 = vor.u32 %v353, 8388608
    %v355 = vsub.s32 0, %v354
    %v356 = vadd.s32 %v351, 1
    %vm357 = vcmp.gt.s32.totalorder %v356, 0
    %v358 = vsel %vm357, %v356, 0
    %v359 = vshrl.u32 %v358, 5
    %v360 = vand.u32 %v358, 31
    %v361 = vsub.s32 32, %v360
    %v362 = vshrl.u32 683565275, %v361
    %v363 = vshll.u32 683565275, %v360
    %v364 = vshrl.u32 2475754826, %v361
    %v365 = vor.u32 %v363, %v364
    %v366 = vshll.u32 2475754826, %v360
    %v367 = vshrl.u32 2131351028, %v361
    %v368 = vor.u32 %v366, %v367
    %v369 = vshll.u32 2131351028, %v360
    %v370 = vshrl.u32 2102212464, %v361
    %v371 = vor.u32 %v369, %v370
    %v372 = vshll.u32 2102212464, %v360
    %v373 = vshrl.u32 920167782, %v361
    %v374 = vor.u32 %v372, %v373
    %v375 = vshll.u32 920167782, %v360
    %v376 = vshrl.u32 1326507024, %v361
    %v377 = vor.u32 %v375, %v376
    %vm378 = vcmp.lt.s32.totalorder %v359, 1
    %vm379 = vcmp.lt.s32.totalorder %v359, 2
    %vm380 = vcmp.lt.s32.totalorder %v359, 3
    %vm381 = vcmp.lt.s32.totalorder %v359, 4
    %v382 = vsel %vm378, %v362, %v365
    %v383 = vsel %vm381, %v371, 2102212464
    %v384 = vsel %vm380, %v368, %v383
    %v385 = vsel %vm379, %v382, %v384
    %v386 = vsel %vm378, %v365, %v368
    %v387 = vsel %vm381, %v374, 920167782
    %v388 = vsel %vm380, %v371, %v387
    %v389 = vsel %vm379, %v386, %v388
    %v390 = vsel %vm378, %v368, %v371
    %v391 = vsel %vm381, %v377, 1326507024
    %v392 = vsel %vm380, %v374, %v391
    %v393 = vsel %vm379, %v390, %v392
    %v394 = vshll.u32 %v354, 8
    %v395 = vmul.u32.u64.compose %v394, %v393
    %v396 = vextract.low.u32 %v395
    %v397 = vextract.high.u32 %v395
    %v398 = vmul.u32.u64.compose %v394, %v389
    %v399 = vextract.low.u32 %v398
    %v400 = vextract.high.u32 %v398
    %v401 = vmul.u32 %v394, %v385
    %v402 = vadd.s32 %v397, %v399
    %vm403 = vc.u32 %v397, %v399
    %v404 = vadd.s32 %v400, 1
    %v405 = vsel %vm403, %v404, %v400
    %v406 = vadd.s32 %v401, %v405
    %v407 = vadd.s32 %v406, 536870912
    %v408 = vshrl.u32 %v407, 30
    %v409 = vshll.u32 %v408, 30
    %v410 = vsub.s32 %v406, %v409
    %vm411 = vcmp.lt.s32.totalorder %v410, 0
    %v412 = vsub.s32 0, %v410
    %v413 = vsel %vm411, %v412, %v410
    %v414 = vclz %v413
    %v415 = vsub.s32 %v414, 2
    %vm416 = vcmp.gt.s32.totalorder 0, %v415
    %v417 = vsel %vm416, 0, %v415
    %v418 = vsub.s32 32, %v417
    %v419 = vshll.u32 %v410, %v417
    %v420 = vshrl.u32 %v402, %v418
    %v421 = vor.u32 %v419, %v420
    %v422 = vsub.s32 4294967266, %v417
    %v423 = vadd.s32 %v422, 127
    %v424 = vshll.u32 %v423, 23
    %v425 = vor.u32 4788187, %v424
    %v426 = vand.u32 2147483647, %v425
    %v428 = vcvt.s32.f32 %v421
    %v429 = vmul.f32 %v428, %v426
    %v430 = vxor.u32 %v429, 2147483648
    %v431 = vsel %vm348, %v430, %v429
    %v432 = vsub.s32 4, %v408
    %v433 = vsel %vm348, %v432, %v408
    %v434 = vsel %vm347, %v34, %v431
    %v435 = vsel %vm347, 0, %v433
    %v436 = vcosq.f32.pop %v434
    %v437 = vsinq.f32.pop %v434
    %vm438 = vweird.f32 %v34
    %v439 = vand.u32 %v435, 3
    %vm440 = vcmp.lt.s32.totalorder %v439, 2
    %vm441 = vcmp.eq.s32.totalorder %v439, 0
    %v442 = vxor.u32 %v437, 2147483648
    %v443 = vsel %vm441, %v436, %v442
    %vm444 = vcmp.eq.s32.totalorder %v439, 2
    %v445 = vxor.u32 %v436, 2147483648
    %v446 = vsel %vm444, %v445, %v437
    %v447 = vsel %vm440, %v443, %v446
    %v448 = vsel %vm438, nan, %v447
    %s449 = scalar_lea.vmem %s1, 32
    %v450 = vld [vmem:[%s449] sm:$0xff]
    %v451 = vld [vmem:[%s449 + $0x8] sm:$0xff]
    %v452 = vld [vmem:[%s449 + $0x10] sm:$0xff]
    %v453 = vld [vmem:[%s449 + $0x18] sm:$0xff]
    %v456 = vcombine.high %v138, %v138
    %vm457 = vcmask 23552
    %v459 = vsel %vm457, %v450, 0
    %v462 = vsel %vm457, %v451, 0
    %v465 = vsel %vm457, %v452, 0
    %v468 = vsel %vm457, %v453, 0
    %vm470 = vcmask 1042432
    %v471 = vsel %vm470, %v138, 0
    %v473 = vsel %vm470, %v456, 0
    %v475 = vsel %vm470, %v242, 0
    %477 = vmatprep.subr.mxu0 0.0
    %478 = vmatpush1.msra.mxu0 0.0
    %479 = vmatprep.subr.mxu0 0.0
    %480 = vmatpush1.msra.mxu0 0.0
    %481 = vmatprep.subr.mxu0 0.0
    %482 = vmatpush1.msra.mxu0 0.0
    %483 = vmatprep.subr.mxu0 0.0
    %484 = vmatpush1.msra.mxu0 0.0
    %485 = vmatprep.subr.mxu0 0.0
    %486 = vmatpush1.msra.mxu0 0.0
    %487 = vmatprep.subr.mxu0 0.0
    %488 = vmatpush1.msra.mxu0 0.0
    %489 = vmatprep.subr.mxu0 0.0
    %490 = vmatpush1.msra.mxu0 0.0
    %491 = vmatprep.subr.mxu0 0.0
    %492 = vmatpush1.msra.mxu0 0.0
    %493 = vmatprep.subr.mxu0 0.0
    %494 = vmatpush1.msra.mxu0 0.0
    %495 = vmatprep.subr.mxu0 0.0
    %496 = vmatpush1.msra.mxu0 0.0
    %497 = vmatprep.subr.mxu0 0.0
    %498 = vmatpush1.msra.mxu0 0.0
    %499 = vmatprep.subr.mxu0 0.0
    %500 = vmatpush1.msra.mxu0 0.0
    %501 = vmatprep.subr.mxu0 0.0
    %502 = vmatpush1.msra.mxu0 0.0
    %503 = vmatprep.subr.mxu0 0.0
    %504 = vmatpush1.msra.mxu0 0.0
    %505 = vmatprep.subr.mxu0 0.0
    %506 = vmatpush1.msra.mxu0 0.0
    %507 = vmatprep.subr.mxu0 %v473
    %508 = vmatpush1.msra.mxu0 %v471
    %509 = vmatprep.subr.mxu0 0.0
    %510 = vmatpush2.msra.mxu0 0.0
    %511 = vmatprep.subr.mxu0 0.0
    %512 = vmatpush2.msra.mxu0 0.0
    %513 = vmatprep.subr.mxu0 0.0
    %514 = vmatpush2.msra.mxu0 0.0
    %515 = vmatprep.subr.mxu0 0.0
    %516 = vmatpush2.msra.mxu0 0.0
    %517 = vmatprep.subr.mxu0 0.0
    %518 = vmatpush2.msra.mxu0 0.0
    %519 = vmatprep.subr.mxu0 0.0
    %520 = vmatpush2.msra.mxu0 0.0
    %521 = vmatprep.subr.mxu0 0.0
    %522 = vmatpush2.msra.mxu0 0.0
    %523 = vmatprep.subr.mxu0 0.0
    %524 = vmatpush2.msra.mxu0 0.0
    %525 = vmatprep.subr.mxu0 0.0
    %526 = vmatpush2.msra.mxu0 0.0
    %527 = vmatprep.subr.mxu0 0.0
    %528 = vmatpush2.msra.mxu0 0.0
    %529 = vmatprep.subr.mxu0 0.0
    %530 = vmatpush2.msra.mxu0 0.0
    %531 = vmatprep.subr.mxu0 0.0
    %532 = vmatpush2.msra.mxu0 0.0
    %533 = vmatprep.subr.mxu0 0.0
    %534 = vmatpush2.msra.mxu0 0.0
    %535 = vmatprep.subr.mxu0 0.0
    %536 = vmatpush2.msra.mxu0 0.0
    %537 = vmatprep.subr.mxu0 0.0
    %538 = vmatpush2.msra.mxu0 0.0
    %539 = vmatprep.subr.mxu0 0.0
    %540 = vmatpush2.msra.mxu0 0.0
    %541 = vmatprep.mubr.f32.mxu0 0.0
    %542 = vmatmul.mubr.f32.gmra.mxu0 %v459
    %v543 = vpop.f32.mrf.mxu0
    %v544 = vadd.f32 0.0, %v543
    %v545 = vpop.f32.mrf.mxu0
    %v546 = vadd.f32 0.0, %v545
    %547 = vmatprep.mubr.f32.mxu0 0.0
    %548 = vmatmul.mubr.f32.gmra.mxu0 %v462
    %v549 = vpop.f32.mrf.mxu0
    %v550 = vadd.f32 0.0, %v549
    %v551 = vpop.f32.mrf.mxu0
    %v552 = vadd.f32 0.0, %v551
    %553 = vmatprep.mubr.f32.mxu0 0.0
    %554 = vmatmul.mubr.f32.gmra.mxu0 %v465
    %v555 = vpop.f32.mrf.mxu0
    %v556 = vadd.f32 0.0, %v555
    %v557 = vpop.f32.mrf.mxu0
    %v558 = vadd.f32 0.0, %v557
    %559 = vmatprep.mubr.f32.mxu0 0.0
    %560 = vmatmul.mubr.f32.gmra.mxu0 %v468
    %v561 = vpop.f32.mrf.mxu0
    %v562 = vadd.f32 0.0, %v561
    %v563 = vpop.f32.mrf.mxu0
    %v564 = vadd.f32 0.0, %v563
    %565 = vdwg.mxu0
    %566 = vmatprep.subr.mxu0 0.0
    %567 = vmatpush1.msra.mxu0 0.0
    %568 = vmatprep.subr.mxu0 0.0
    %569 = vmatpush1.msra.mxu0 0.0
    %570 = vmatprep.subr.mxu0 0.0
    %571 = vmatpush1.msra.mxu0 0.0
    %572 = vmatprep.subr.mxu0 0.0
    %573 = vmatpush1.msra.mxu0 0.0
    %574 = vmatprep.subr.mxu0 0.0
    %575 = vmatpush1.msra.mxu0 0.0
    %576 = vmatprep.subr.mxu0 0.0
    %577 = vmatpush1.msra.mxu0 0.0
    %578 = vmatprep.subr.mxu0 0.0
    %579 = vmatpush1.msra.mxu0 0.0
    %580 = vmatprep.subr.mxu0 0.0
    %581 = vmatpush1.msra.mxu0 0.0
    %582 = vmatprep.subr.mxu0 0.0
    %583 = vmatpush1.msra.mxu0 0.0
    %584 = vmatprep.subr.mxu0 0.0
    %585 = vmatpush1.msra.mxu0 0.0
    %586 = vmatprep.subr.mxu0 0.0
    %587 = vmatpush1.msra.mxu0 0.0
    %588 = vmatprep.subr.mxu0 0.0
    %589 = vmatpush1.msra.mxu0 0.0
    %590 = vmatprep.subr.mxu0 0.0
    %591 = vmatpush1.msra.mxu0 0.0
    %592 = vmatprep.subr.mxu0 0.0
    %593 = vmatpush1.msra.mxu0 0.0
    %594 = vmatprep.subr.mxu0 0.0
    %595 = vmatpush1.msra.mxu0 0.0
    %596 = vmatprep.subr.mxu0 0.0
    %597 = vmatpush1.msra.mxu0 %v475
    %598 = vmatprep.subr.mxu0 0.0
    %599 = vmatpush2.msra.mxu0 0.0
    %600 = vmatprep.subr.mxu0 0.0
    %601 = vmatpush2.msra.mxu0 0.0
    %602 = vmatprep.subr.mxu0 0.0
    %603 = vmatpush2.msra.mxu0 0.0
    %604 = vmatprep.subr.mxu0 0.0
    %605 = vmatpush2.msra.mxu0 0.0
    %606 = vmatprep.subr.mxu0 0.0
    %607 = vmatpush2.msra.mxu0 0.0
    %608 = vmatprep.subr.mxu0 0.0
    %609 = vmatpush2.msra.mxu0 0.0
    %610 = vmatprep.subr.mxu0 0.0
    %611 = vmatpush2.msra.mxu0 0.0
    %612 = vmatprep.subr.mxu0 0.0
    %613 = vmatpush2.msra.mxu0 0.0
    %614 = vmatprep.subr.mxu0 0.0
    %615 = vmatpush2.msra.mxu0 0.0
    %616 = vmatprep.subr.mxu0 0.0
    %617 = vmatpush2.msra.mxu0 0.0
    %618 = vmatprep.subr.mxu0 0.0
    %619 = vmatpush2.msra.mxu0 0.0
    %620 = vmatprep.subr.mxu0 0.0
    %621 = vmatpush2.msra.mxu0 0.0
    %622 = vmatprep.subr.mxu0 0.0
    %623 = vmatpush2.msra.mxu0 0.0
    %624 = vmatprep.subr.mxu0 0.0
    %625 = vmatpush2.msra.mxu0 0.0
    %626 = vmatprep.subr.mxu0 0.0
    %627 = vmatpush2.msra.mxu0 0.0
    %628 = vmatprep.subr.mxu0 0.0
    %629 = vmatpush2.msra.mxu0 0.0
    %630 = vmatprep.mubr.f32.mxu0 0.0
    %631 = vmatmul.mubr.f32.gmra.mxu0 %v459
    %v632 = vpop.f32.mrf.mxu0
    %v633 = vadd.f32 0.0, %v632
    %v634 = vpop.f32.mrf.mxu0
    %635 = vmatprep.mubr.f32.mxu0 0.0
    %636 = vmatmul.mubr.f32.gmra.mxu0 %v462
    %v637 = vpop.f32.mrf.mxu0
    %v638 = vadd.f32 0.0, %v637
    %v639 = vpop.f32.mrf.mxu0
    %640 = vmatprep.mubr.f32.mxu0 0.0
    %641 = vmatmul.mubr.f32.gmra.mxu0 %v465
    %v642 = vpop.f32.mrf.mxu0
    %v643 = vadd.f32 0.0, %v642
    %v644 = vpop.f32.mrf.mxu0
    %645 = vmatprep.mubr.f32.mxu0 0.0
    %646 = vmatmul.mubr.f32.gmra.mxu0 %v468
    %v647 = vpop.f32.mrf.mxu0
    %v648 = vadd.f32 0.0, %v647
    %v649 = vpop.f32.mrf.mxu0
    %650 = vdwg.mxu0
    %v653 = vcombine.high %v27, %v27
    %v655 = vsel %vm457, %v29, 0
    %v658 = vsel %vm457, %v30, 0
    %v661 = vsel %vm457, %v31, 0
    %v664 = vsel %vm457, %v32, 0
    %v666 = vsel %vm470, %v27, 0
    %v668 = vsel %vm470, %v653, 0
    %v670 = vsel %vm470, %v28, 0
    %672 = vmatprep.subr.mxu0 0.0
    %673 = vmatpush1.msra.mxu0 0.0
    %674 = vmatprep.subr.mxu0 0.0
    %675 = vmatpush1.msra.mxu0 0.0
    %676 = vmatprep.subr.mxu0 0.0
    %677 = vmatpush1.msra.mxu0 0.0
    %678 = vmatprep.subr.mxu0 0.0
    %679 = vmatpush1.msra.mxu0 0.0
    %680 = vmatprep.subr.mxu0 0.0
    %681 = vmatpush1.msra.mxu0 0.0
    %682 = vmatprep.subr.mxu0 0.0
    %683 = vmatpush1.msra.mxu0 0.0
    %684 = vmatprep.subr.mxu0 0.0
    %685 = vmatpush1.msra.mxu0 0.0
    %686 = vmatprep.subr.mxu0 0.0
    %687 = vmatpush1.msra.mxu0 0.0
    %688 = vmatprep.subr.mxu0 0.0
    %689 = vmatpush1.msra.mxu0 0.0
    %690 = vmatprep.subr.mxu0 0.0
    %691 = vmatpush1.msra.mxu0 0.0
    %692 = vmatprep.subr.mxu0 0.0
    %693 = vmatpush1.msra.mxu0 0.0
    %694 = vmatprep.subr.mxu0 0.0
    %695 = vmatpush1.msra.mxu0 0.0
    %696 = vmatprep.subr.mxu0 0.0
    %697 = vmatpush1.msra.mxu0 0.0
    %698 = vmatprep.subr.mxu0 0.0
    %699 = vmatpush1.msra.mxu0 0.0
    %700 = vmatprep.subr.mxu0 0.0
    %701 = vmatpush1.msra.mxu0 0.0
    %702 = vmatprep.subr.mxu0 %v668
    %703 = vmatpush1.msra.mxu0 %v666
    %704 = vmatprep.subr.mxu0 0.0
    %705 = vmatpush2.msra.mxu0 0.0
    %706 = vmatprep.subr.mxu0 0.0
    %707 = vmatpush2.msra.mxu0 0.0
    %708 = vmatprep.subr.mxu0 0.0
    %709 = vmatpush2.msra.mxu0 0.0
    %710 = vmatprep.subr.mxu0 0.0
    %711 = vmatpush2.msra.mxu0 0.0
    %712 = vmatprep.subr.mxu0 0.0
    %713 = vmatpush2.msra.mxu0 0.0
    %714 = vmatprep.subr.mxu0 0.0
    %715 = vmatpush2.msra.mxu0 0.0
    %716 = vmatprep.subr.mxu0 0.0
    %717 = vmatpush2.msra.mxu0 0.0
    %718 = vmatprep.subr.mxu0 0.0
    %719 = vmatpush2.msra.mxu0 0.0
    %720 = vmatprep.subr.mxu0 0.0
    %721 = vmatpush2.msra.mxu0 0.0
    %722 = vmatprep.subr.mxu0 0.0
    %723 = vmatpush2.msra.mxu0 0.0
    %724 = vmatprep.subr.mxu0 0.0
    %725 = vmatpush2.msra.mxu0 0.0
    %726 = vmatprep.subr.mxu0 0.0
    %727 = vmatpush2.msra.mxu0 0.0
    %728 = vmatprep.subr.mxu0 0.0
    %729 = vmatpush2.msra.mxu0 0.0
    %730 = vmatprep.subr.mxu0 0.0
    %731 = vmatpush2.msra.mxu0 0.0
    %732 = vmatprep.subr.mxu0 0.0
    %733 = vmatpush2.msra.mxu0 0.0
    %734 = vmatprep.subr.mxu0 0.0
    %735 = vmatpush2.msra.mxu0 0.0
    %736 = vmatprep.mubr.f32.mxu0 0.0
    %737 = vmatmul.mubr.f32.gmra.mxu0 %v655
    %v738 = vpop.f32.mrf.mxu0
    %v739 = vadd.f32 %v544, %v738
    %v740 = vpop.f32.mrf.mxu0
    %v741 = vadd.f32 %v546, %v740
    %742 = vmatprep.mubr.f32.mxu0 0.0
    %743 = vmatmul.mubr.f32.gmra.mxu0 %v658
    %v744 = vpop.f32.mrf.mxu0
    %v745 = vadd.f32 %v550, %v744
    %v746 = vpop.f32.mrf.mxu0
    %v747 = vadd.f32 %v552, %v746
    %748 = vmatprep.mubr.f32.mxu0 0.0
    %749 = vmatmul.mubr.f32.gmra.mxu0 %v661
    %v750 = vpop.f32.mrf.mxu0
    %v751 = vadd.f32 %v556, %v750
    %v752 = vpop.f32.mrf.mxu0
    %v753 = vadd.f32 %v558, %v752
    %754 = vmatprep.mubr.f32.mxu0 0.0
    %755 = vmatmul.mubr.f32.gmra.mxu0 %v664
    %v756 = vpop.f32.mrf.mxu0
    %v757 = vadd.f32 %v562, %v756
    %v758 = vpop.f32.mrf.mxu0
    %v759 = vadd.f32 %v564, %v758
    %760 = vdwg.mxu0
    %761 = vmatprep.subr.mxu0 0.0
    %762 = vmatpush1.msra.mxu0 0.0
    %763 = vmatprep.subr.mxu0 0.0
    %764 = vmatpush1.msra.mxu0 0.0
    %765 = vmatprep.subr.mxu0 0.0
    %766 = vmatpush1.msra.mxu0 0.0
    %767 = vmatprep.subr.mxu0 0.0
    %768 = vmatpush1.msra.mxu0 0.0
    %769 = vmatprep.subr.mxu0 0.0
    %770 = vmatpush1.msra.mxu0 0.0
    %771 = vmatprep.subr.mxu0 0.0
    %772 = vmatpush1.msra.mxu0 0.0
    %773 = vmatprep.subr.mxu0 0.0
    %774 = vmatpush1.msra.mxu0 0.0
    %775 = vmatprep.subr.mxu0 0.0
    %776 = vmatpush1.msra.mxu0 0.0
    %777 = vmatprep.subr.mxu0 0.0
    %778 = vmatpush1.msra.mxu0 0.0
    %779 = vmatprep.subr.mxu0 0.0
    %780 = vmatpush1.msra.mxu0 0.0
    %781 = vmatprep.subr.mxu0 0.0
    %782 = vmatpush1.msra.mxu0 0.0
    %783 = vmatprep.subr.mxu0 0.0
    %784 = vmatpush1.msra.mxu0 0.0
    %785 = vmatprep.subr.mxu0 0.0
    %786 = vmatpush1.msra.mxu0 0.0
    %787 = vmatprep.subr.mxu0 0.0
    %788 = vmatpush1.msra.mxu0 0.0
    %789 = vmatprep.subr.mxu0 0.0
    %790 = vmatpush1.msra.mxu0 0.0
    %791 = vmatprep.subr.mxu0 0.0
    %792 = vmatpush1.msra.mxu0 %v670
    %793 = vmatprep.subr.mxu0 0.0
    %794 = vmatpush2.msra.mxu0 0.0
    %795 = vmatprep.subr.mxu0 0.0
    %796 = vmatpush2.msra.mxu0 0.0
    %797 = vmatprep.subr.mxu0 0.0
    %798 = vmatpush2.msra.mxu0 0.0
    %799 = vmatprep.subr.mxu0 0.0
    %800 = vmatpush2.msra.mxu0 0.0
    %801 = vmatprep.subr.mxu0 0.0
    %802 = vmatpush2.msra.mxu0 0.0
    %803 = vmatprep.subr.mxu0 0.0
    %804 = vmatpush2.msra.mxu0 0.0
    %805 = vmatprep.subr.mxu0 0.0
    %806 = vmatpush2.msra.mxu0 0.0
    %807 = vmatprep.subr.mxu0 0.0
    %808 = vmatpush2.msra.mxu0 0.0
    %809 = vmatprep.subr.mxu0 0.0
    %810 = vmatpush2.msra.mxu0 0.0
    %811 = vmatprep.subr.mxu0 0.0
    %812 = vmatpush2.msra.mxu0 0.0
    %813 = vmatprep.subr.mxu0 0.0
    %814 = vmatpush2.msra.mxu0 0.0
    %815 = vmatprep.subr.mxu0 0.0
    %816 = vmatpush2.msra.mxu0 0.0
    %817 = vmatprep.subr.mxu0 0.0
    %818 = vmatpush2.msra.mxu0 0.0
    %819 = vmatprep.subr.mxu0 0.0
    %820 = vmatpush2.msra.mxu0 0.0
    %821 = vmatprep.subr.mxu0 0.0
    %822 = vmatpush2.msra.mxu0 0.0
    %823 = vmatprep.subr.mxu0 0.0
    %824 = vmatpush2.msra.mxu0 0.0
    %825 = vmatprep.mubr.f32.mxu0 0.0
    %826 = vmatmul.mubr.f32.gmra.mxu0 %v655
    %v827 = vpop.f32.mrf.mxu0
    %v828 = vadd.f32 %v633, %v827
    %v829 = vpop.f32.mrf.mxu0
    %830 = vmatprep.mubr.f32.mxu0 0.0
    %831 = vmatmul.mubr.f32.gmra.mxu0 %v658
    %v832 = vpop.f32.mrf.mxu0
    %v833 = vadd.f32 %v638, %v832
    %v834 = vpop.f32.mrf.mxu0
    %835 = vmatprep.mubr.f32.mxu0 0.0
    %836 = vmatmul.mubr.f32.gmra.mxu0 %v661
    %v837 = vpop.f32.mrf.mxu0
    %v838 = vadd.f32 %v643, %v837
    %v839 = vpop.f32.mrf.mxu0
    %840 = vmatprep.mubr.f32.mxu0 0.0
    %841 = vmatmul.mubr.f32.gmra.mxu0 %v664
    %v842 = vpop.f32.mrf.mxu0
    %v843 = vadd.f32 %v648, %v842
    %v844 = vpop.f32.mrf.mxu0
    %845 = vdwg.mxu0
    %s846 = scalar_lea.vmem %s1, 64
    %v847 = vld [vmem:[%s846] sm:$0xff]
    %v848 = vld [vmem:[%s846 + $0x8] sm:$0xff]
    %v849 = vld [vmem:[%s846 + $0x10] sm:$0xff]
    %v850 = vld [vmem:[%s846 + $0x18] sm:$0xff]
    %v853 = vcombine.high %v345, %v345
    %v855 = vsel %vm457, %v847, 0
    %v858 = vsel %vm457, %v848, 0
    %v861 = vsel %vm457, %v849, 0
    %v864 = vsel %vm457, %v850, 0
    %v866 = vsel %vm470, %v345, 0
    %v868 = vsel %vm470, %v853, 0
    %v870 = vsel %vm470, %v448, 0
    %872 = vmatprep.subr.mxu0 0.0
    %873 = vmatpush1.msra.mxu0 0.0
    %874 = vmatprep.subr.mxu0 0.0
    %875 = vmatpush1.msra.mxu0 0.0
    %876 = vmatprep.subr.mxu0 0.0
    %877 = vmatpush1.msra.mxu0 0.0
    %878 = vmatprep.subr.mxu0 0.0
    %879 = vmatpush1.msra.mxu0 0.0
    %880 = vmatprep.subr.mxu0 0.0
    %881 = vmatpush1.msra.mxu0 0.0
    %882 = vmatprep.subr.mxu0 0.0
    %883 = vmatpush1.msra.mxu0 0.0
    %884 = vmatprep.subr.mxu0 0.0
    %885 = vmatpush1.msra.mxu0 0.0
    %886 = vmatprep.subr.mxu0 0.0
    %887 = vmatpush1.msra.mxu0 0.0
    %888 = vmatprep.subr.mxu0 0.0
    %889 = vmatpush1.msra.mxu0 0.0
    %890 = vmatprep.subr.mxu0 0.0
    %891 = vmatpush1.msra.mxu0 0.0
    %892 = vmatprep.subr.mxu0 0.0
    %893 = vmatpush1.msra.mxu0 0.0
    %894 = vmatprep.subr.mxu0 0.0
    %895 = vmatpush1.msra.mxu0 0.0
    %896 = vmatprep.subr.mxu0 0.0
    %897 = vmatpush1.msra.mxu0 0.0
    %898 = vmatprep.subr.mxu0 0.0
    %899 = vmatpush1.msra.mxu0 0.0
    %900 = vmatprep.subr.mxu0 0.0
    %901 = vmatpush1.msra.mxu0 0.0
    %902 = vmatprep.subr.mxu0 %v868
    %903 = vmatpush1.msra.mxu0 %v866
    %904 = vmatprep.subr.mxu0 0.0
    %905 = vmatpush2.msra.mxu0 0.0
    %906 = vmatprep.subr.mxu0 0.0
    %907 = vmatpush2.msra.mxu0 0.0
    %908 = vmatprep.subr.mxu0 0.0
    %909 = vmatpush2.msra.mxu0 0.0
    %910 = vmatprep.subr.mxu0 0.0
    %911 = vmatpush2.msra.mxu0 0.0
    %912 = vmatprep.subr.mxu0 0.0
    %913 = vmatpush2.msra.mxu0 0.0
    %914 = vmatprep.subr.mxu0 0.0
    %915 = vmatpush2.msra.mxu0 0.0
    %916 = vmatprep.subr.mxu0 0.0
    %917 = vmatpush2.msra.mxu0 0.0
    %918 = vmatprep.subr.mxu0 0.0
    %919 = vmatpush2.msra.mxu0 0.0
    %920 = vmatprep.subr.mxu0 0.0
    %921 = vmatpush2.msra.mxu0 0.0
    %922 = vmatprep.subr.mxu0 0.0
    %923 = vmatpush2.msra.mxu0 0.0
    %924 = vmatprep.subr.mxu0 0.0
    %925 = vmatpush2.msra.mxu0 0.0
    %926 = vmatprep.subr.mxu0 0.0
    %927 = vmatpush2.msra.mxu0 0.0
    %928 = vmatprep.subr.mxu0 0.0
    %929 = vmatpush2.msra.mxu0 0.0
    %930 = vmatprep.subr.mxu0 0.0
    %931 = vmatpush2.msra.mxu0 0.0
    %932 = vmatprep.subr.mxu0 0.0
    %933 = vmatpush2.msra.mxu0 0.0
    %934 = vmatprep.subr.mxu0 0.0
    %935 = vmatpush2.msra.mxu0 0.0
    %936 = vmatprep.mubr.f32.mxu0 0.0
    %937 = vmatmul.mubr.f32.gmra.mxu0 %v855
    %v938 = vpop.f32.mrf.mxu0
    %v939 = vadd.f32 0.0, %v938
    %v940 = vpop.f32.mrf.mxu0
    %v941 = vadd.f32 0.0, %v940
    %942 = vmatprep.mubr.f32.mxu0 0.0
    %943 = vmatmul.mubr.f32.gmra.mxu0 %v858
    %v944 = vpop.f32.mrf.mxu0
    %v945 = vadd.f32 0.0, %v944
    %v946 = vpop.f32.mrf.mxu0
    %v947 = vadd.f32 0.0, %v946
    %948 = vmatprep.mubr.f32.mxu0 0.0
    %949 = vmatmul.mubr.f32.gmra.mxu0 %v861
    %v950 = vpop.f32.mrf.mxu0
    %v951 = vadd.f32 0.0, %v950
    %v952 = vpop.f32.mrf.mxu0
    %v953 = vadd.f32 0.0, %v952
    %954 = vmatprep.mubr.f32.mxu0 0.0
    %955 = vmatmul.mubr.f32.gmra.mxu0 %v864
    %v956 = vpop.f32.mrf.mxu0
    %v957 = vadd.f32 0.0, %v956
    %v958 = vpop.f32.mrf.mxu0
    %v959 = vadd.f32 0.0, %v958
    %960 = vdwg.mxu0
    %961 = vmatprep.subr.mxu0 0.0
    %962 = vmatpush1.msra.mxu0 0.0
    %963 = vmatprep.subr.mxu0 0.0
    %964 = vmatpush1.msra.mxu0 0.0
    %965 = vmatprep.subr.mxu0 0.0
    %966 = vmatpush1.msra.mxu0 0.0
    %967 = vmatprep.subr.mxu0 0.0
    %968 = vmatpush1.msra.mxu0 0.0
    %969 = vmatprep.subr.mxu0 0.0
    %970 = vmatpush1.msra.mxu0 0.0
    %971 = vmatprep.subr.mxu0 0.0
    %972 = vmatpush1.msra.mxu0 0.0
    %973 = vmatprep.subr.mxu0 0.0
    %974 = vmatpush1.msra.mxu0 0.0
    %975 = vmatprep.subr.mxu0 0.0
    %976 = vmatpush1.msra.mxu0 0.0
    %977 = vmatprep.subr.mxu0 0.0
    %978 = vmatpush1.msra.mxu0 0.0
    %979 = vmatprep.subr.mxu0 0.0
    %980 = vmatpush1.msra.mxu0 0.0
    %981 = vmatprep.subr.mxu0 0.0
    %982 = vmatpush1.msra.mxu0 0.0
    %983 = vmatprep.subr.mxu0 0.0
    %984 = vmatpush1.msra.mxu0 0.0
    %985 = vmatprep.subr.mxu0 0.0
    %986 = vmatpush1.msra.mxu0 0.0
    %987 = vmatprep.subr.mxu0 0.0
    %988 = vmatpush1.msra.mxu0 0.0
    %989 = vmatprep.subr.mxu0 0.0
    %990 = vmatpush1.msra.mxu0 0.0
    %991 = vmatprep.subr.mxu0 0.0
    %992 = vmatpush1.msra.mxu0 %v870
    %993 = vmatprep.subr.mxu0 0.0
    %994 = vmatpush2.msra.mxu0 0.0
    %995 = vmatprep.subr.mxu0 0.0
    %996 = vmatpush2.msra.mxu0 0.0
    %997 = vmatprep.subr.mxu0 0.0
    %998 = vmatpush2.msra.mxu0 0.0
    %999 = vmatprep.subr.mxu0 0.0
    %1000 = vmatpush2.msra.mxu0 0.0
    %1001 = vmatprep.subr.mxu0 0.0
    %1002 = vmatpush2.msra.mxu0 0.0
    %1003 = vmatprep.subr.mxu0 0.0
    %1004 = vmatpush2.msra.mxu0 0.0
    %1005 = vmatprep.subr.mxu0 0.0
    %1006 = vmatpush2.msra.mxu0 0.0
    %1007 = vmatprep.subr.mxu0 0.0
    %1008 = vmatpush2.msra.mxu0 0.0
    %1009 = vmatprep.subr.mxu0 0.0
    %1010 = vmatpush2.msra.mxu0 0.0
    %1011 = vmatprep.subr.mxu0 0.0
    %1012 = vmatpush2.msra.mxu0 0.0
    %1013 = vmatprep.subr.mxu0 0.0
    %1014 = vmatpush2.msra.mxu0 0.0
    %1015 = vmatprep.subr.mxu0 0.0
    %1016 = vmatpush2.msra.mxu0 0.0
    %1017 = vmatprep.subr.mxu0 0.0
    %1018 = vmatpush2.msra.mxu0 0.0
    %1019 = vmatprep.subr.mxu0 0.0
    %1020 = vmatpush2.msra.mxu0 0.0
    %1021 = vmatprep.subr.mxu0 0.0
    %1022 = vmatpush2.msra.mxu0 0.0
    %1023 = vmatprep.subr.mxu0 0.0
    %1024 = vmatpush2.msra.mxu0 0.0
    %1025 = vmatprep.mubr.f32.mxu0 0.0
    %1026 = vmatmul.mubr.f32.gmra.mxu0 %v855
    %v1027 = vpop.f32.mrf.mxu0
    %v1028 = vadd.f32 0.0, %v1027
    %v1029 = vpop.f32.mrf.mxu0
    %1030 = vmatprep.mubr.f32.mxu0 0.0
    %1031 = vmatmul.mubr.f32.gmra.mxu0 %v858
    %v1032 = vpop.f32.mrf.mxu0
    %v1033 = vadd.f32 0.0, %v1032
    %v1034 = vpop.f32.mrf.mxu0
    %1035 = vmatprep.mubr.f32.mxu0 0.0
    %1036 = vmatmul.mubr.f32.gmra.mxu0 %v861
    %v1037 = vpop.f32.mrf.mxu0
    %v1038 = vadd.f32 0.0, %v1037
    %v1039 = vpop.f32.mrf.mxu0
    %1040 = vmatprep.mubr.f32.mxu0 0.0
    %1041 = vmatmul.mubr.f32.gmra.mxu0 %v864
    %v1042 = vpop.f32.mrf.mxu0
    %v1043 = vadd.f32 0.0, %v1042
    %v1044 = vpop.f32.mrf.mxu0
    %1045 = vdwg.mxu0
    %v1046 = vadd.f32 %v739, %v939
    %v1047 = vadd.f32 %v741, %v941
    %v1048 = vadd.f32 %v828, %v1028
    %v1049 = vadd.f32 %v745, %v945
    %v1050 = vadd.f32 %v747, %v947
    %v1051 = vadd.f32 %v833, %v1033
    %v1052 = vadd.f32 %v751, %v951
    %v1053 = vadd.f32 %v753, %v953
    %v1054 = vadd.f32 %v838, %v1038
    %v1055 = vadd.f32 %v757, %v957
    %v1056 = vadd.f32 %v759, %v959
    %v1057 = vadd.f32 %v843, %v1043
    %v1058 = vmul.f32 %v27, 6.2831855
    %v1059 = vmul.f32 %v28, 6.2831855
    %v1060 = vand.u32 2147483647, %v1058
    %vm1061 = vcmp.le.f32.partialorder %v1060, 0.7853982
    %vm1062 = vcmp.lt.s32.totalorder %v1058, 0
    %v1063 = vand.u32 %v1058, 2139095040
    %v1064 = vshrl.u32 %v1063, 23
    %v1065 = vsub.s32 %v1064, 127
    %v1066 = vand.u32 2147483647, %v1058
    %v1067 = vand.u32 %v1066, 8388607
    %v1068 = vor.u32 %v1067, 8388608
    %v1069 = vsub.s32 0, %v1068
    %v1070 = vadd.s32 %v1065, 1
    %vm1071 = vcmp.gt.s32.totalorder %v1070, 0
    %v1072 = vsel %vm1071, %v1070, 0
    %v1073 = vshrl.u32 %v1072, 5
    %v1074 = vand.u32 %v1072, 31
    %v1075 = vsub.s32 32, %v1074
    %v1076 = vshrl.u32 683565275, %v1075
    %v1077 = vshll.u32 683565275, %v1074
    %v1078 = vshrl.u32 2475754826, %v1075
    %v1079 = vor.u32 %v1077, %v1078
    %v1080 = vshll.u32 2475754826, %v1074
    %v1081 = vshrl.u32 2131351028, %v1075
    %v1082 = vor.u32 %v1080, %v1081
    %v1083 = vshll.u32 2131351028, %v1074
    %v1084 = vshrl.u32 2102212464, %v1075
    %v1085 = vor.u32 %v1083, %v1084
    %v1086 = vshll.u32 2102212464, %v1074
    %v1087 = vshrl.u32 920167782, %v1075
    %v1088 = vor.u32 %v1086, %v1087
    %v1089 = vshll.u32 920167782, %v1074
    %v1090 = vshrl.u32 1326507024, %v1075
    %v1091 = vor.u32 %v1089, %v1090
    %vm1092 = vcmp.lt.s32.totalorder %v1073, 1
    %vm1093 = vcmp.lt.s32.totalorder %v1073, 2
    %vm1094 = vcmp.lt.s32.totalorder %v1073, 3
    %vm1095 = vcmp.lt.s32.totalorder %v1073, 4
    %v1096 = vsel %vm1092, %v1076, %v1079
    %v1097 = vsel %vm1095, %v1085, 2102212464
    %v1098 = vsel %vm1094, %v1082, %v1097
    %v1099 = vsel %vm1093, %v1096, %v1098
    %v1100 = vsel %vm1092, %v1079, %v1082
    %v1101 = vsel %vm1095, %v1088, 920167782
    %v1102 = vsel %vm1094, %v1085, %v1101
    %v1103 = vsel %vm1093, %v1100, %v1102
    %v1104 = vsel %vm1092, %v1082, %v1085
    %v1105 = vsel %vm1095, %v1091, 1326507024
    %v1106 = vsel %vm1094, %v1088, %v1105
    %v1107 = vsel %vm1093, %v1104, %v1106
    %v1108 = vshll.u32 %v1068, 8
    %v1109 = vmul.u32.u64.compose %v1108, %v1107
    %v1110 = vextract.low.u32 %v1109
    %v1111 = vextract.high.u32 %v1109
    %v1112 = vmul.u32.u64.compose %v1108, %v1103
    %v1113 = vextract.low.u32 %v1112
    %v1114 = vextract.high.u32 %v1112
    %v1115 = vmul.u32 %v1108, %v1099
    %v1116 = vadd.s32 %v1111, %v1113
    %vm1117 = vc.u32 %v1111, %v1113
    %v1118 = vadd.s32 %v1114, 1
    %v1119 = vsel %vm1117, %v1118, %v1114
    %v1120 = vadd.s32 %v1115, %v1119
    %v1121 = vadd.s32 %v1120, 536870912
    %v1122 = vshrl.u32 %v1121, 30
    %v1123 = vshll.u32 %v1122, 30
    %v1124 = vsub.s32 %v1120, %v1123
    %vm1125 = vcmp.lt.s32.totalorder %v1124, 0
    %v1126 = vsub.s32 0, %v1124
    %v1127 = vsel %vm1125, %v1126, %v1124
    %v1128 = vclz %v1127
    %v1129 = vsub.s32 %v1128, 2
    %vm1130 = vcmp.gt.s32.totalorder 0, %v1129
    %v1131 = vsel %vm1130, 0, %v1129
    %v1132 = vsub.s32 32, %v1131
    %v1133 = vshll.u32 %v1124, %v1131
    %v1134 = vshrl.u32 %v1116, %v1132
    %v1135 = vor.u32 %v1133, %v1134
    %v1136 = vsub.s32 4294967266, %v1131
    %v1137 = vadd.s32 %v1136, 127
    %v1138 = vshll.u32 %v1137, 23
    %v1139 = vor.u32 4788187, %v1138
    %v1140 = vand.u32 2147483647, %v1139
    %v1142 = vcvt.s32.f32 %v1135
    %v1143 = vmul.f32 %v1142, %v1140
    %v1144 = vxor.u32 %v1143, 2147483648
    %v1145 = vsel %vm1062, %v1144, %v1143
    %v1146 = vsub.s32 4, %v1122
    %v1147 = vsel %vm1062, %v1146, %v1122
    %v1148 = vsel %vm1061, %v1058, %v1145
    %v1149 = vsel %vm1061, 0, %v1147
    %v1150 = vcosq.f32.pop %v1148
    %v1151 = vsinq.f32.pop %v1148
    %vm1152 = vweird.f32 %v1058
    %v1153 = vadd.s32 %v1149, 3
    %v1154 = vand.u32 %v1153, 3
    %vm1155 = vcmp.lt.s32.totalorder %v1154, 2
    %vm1156 = vcmp.eq.s32.totalorder %v1154, 0
    %v1157 = vxor.u32 %v1151, 2147483648
    %v1158 = vsel %vm1156, %v1150, %v1157
    %vm1159 = vcmp.eq.s32.totalorder %v1154, 2
    %v1160 = vxor.u32 %v1150, 2147483648
    %v1161 = vsel %vm1159, %v1160, %v1151
    %v1162 = vsel %vm1155, %v1158, %v1161
    %v1163 = vsel %vm1152, nan, %v1162
    %v1164 = vand.u32 2147483647, %v1059
    %vm1165 = vcmp.le.f32.partialorder %v1164, 0.7853982
    %vm1166 = vcmp.lt.s32.totalorder %v1059, 0
    %v1167 = vand.u32 %v1059, 2139095040
    %v1168 = vshrl.u32 %v1167, 23
    %v1169 = vsub.s32 %v1168, 127
    %v1170 = vand.u32 2147483647, %v1059
    %v1171 = vand.u32 %v1170, 8388607
    %v1172 = vor.u32 %v1171, 8388608
    %v1173 = vsub.s32 0, %v1172
    %v1174 = vadd.s32 %v1169, 1
    %vm1175 = vcmp.gt.s32.totalorder %v1174, 0
    %v1176 = vsel %vm1175, %v1174, 0
    %v1177 = vshrl.u32 %v1176, 5
    %v1178 = vand.u32 %v1176, 31
    %v1179 = vsub.s32 32, %v1178
    %v1180 = vshrl.u32 683565275, %v1179
    %v1181 = vshll.u32 683565275, %v1178
    %v1182 = vshrl.u32 2475754826, %v1179
    %v1183 = vor.u32 %v1181, %v1182
    %v1184 = vshll.u32 2475754826, %v1178
    %v1185 = vshrl.u32 2131351028, %v1179
    %v1186 = vor.u32 %v1184, %v1185
    %v1187 = vshll.u32 2131351028, %v1178
    %v1188 = vshrl.u32 2102212464, %v1179
    %v1189 = vor.u32 %v1187, %v1188
    %v1190 = vshll.u32 2102212464, %v1178
    %v1191 = vshrl.u32 920167782, %v1179
    %v1192 = vor.u32 %v1190, %v1191
    %v1193 = vshll.u32 920167782, %v1178
    %v1194 = vshrl.u32 1326507024, %v1179
    %v1195 = vor.u32 %v1193, %v1194
    %vm1196 = vcmp.lt.s32.totalorder %v1177, 1
    %vm1197 = vcmp.lt.s32.totalorder %v1177, 2
    %vm1198 = vcmp.lt.s32.totalorder %v1177, 3
    %vm1199 = vcmp.lt.s32.totalorder %v1177, 4
    %v1200 = vsel %vm1196, %v1180, %v1183
    %v1201 = vsel %vm1199, %v1189, 2102212464
    %v1202 = vsel %vm1198, %v1186, %v1201
    %v1203 = vsel %vm1197, %v1200, %v1202
    %v1204 = vsel %vm1196, %v1183, %v1186
    %v1205 = vsel %vm1199, %v1192, 920167782
    %v1206 = vsel %vm1198, %v1189, %v1205
    %v1207 = vsel %vm1197, %v1204, %v1206
    %v1208 = vsel %vm1196, %v1186, %v1189
    %v1209 = vsel %vm1199, %v1195, 1326507024
    %v1210 = vsel %vm1198, %v1192, %v1209
    %v1211 = vsel %vm1197, %v1208, %v1210
    %v1212 = vshll.u32 %v1172, 8
    %v1213 = vmul.u32.u64.compose %v1212, %v1211
    %v1214 = vextract.low.u32 %v1213
    %v1215 = vextract.high.u32 %v1213
    %v1216 = vmul.u32.u64.compose %v1212, %v1207
    %v1217 = vextract.low.u32 %v1216
    %v1218 = vextract.high.u32 %v1216
    %v1219 = vmul.u32 %v1212, %v1203
    %v1220 = vadd.s32 %v1215, %v1217
    %vm1221 = vc.u32 %v1215, %v1217
    %v1222 = vadd.s32 %v1218, 1
    %v1223 = vsel %vm1221, %v1222, %v1218
    %v1224 = vadd.s32 %v1219, %v1223
    %v1225 = vadd.s32 %v1224, 536870912
    %v1226 = vshrl.u32 %v1225, 30
    %v1227 = vshll.u32 %v1226, 30
    %v1228 = vsub.s32 %v1224, %v1227
    %vm1229 = vcmp.lt.s32.totalorder %v1228, 0
    %v1230 = vsub.s32 0, %v1228
    %v1231 = vsel %vm1229, %v1230, %v1228
    %v1232 = vclz %v1231
    %v1233 = vsub.s32 %v1232, 2
    %vm1234 = vcmp.gt.s32.totalorder 0, %v1233
    %v1235 = vsel %vm1234, 0, %v1233
    %v1236 = vsub.s32 32, %v1235
    %v1237 = vshll.u32 %v1228, %v1235
    %v1238 = vshrl.u32 %v1220, %v1236
    %v1239 = vor.u32 %v1237, %v1238
    %v1240 = vsub.s32 4294967266, %v1235
    %v1241 = vadd.s32 %v1240, 127
    %v1242 = vshll.u32 %v1241, 23
    %v1243 = vor.u32 4788187, %v1242
    %v1244 = vand.u32 2147483647, %v1243
    %v1246 = vcvt.s32.f32 %v1239
    %v1247 = vmul.f32 %v1246, %v1244
    %v1248 = vxor.u32 %v1247, 2147483648
    %v1249 = vsel %vm1166, %v1248, %v1247
    %v1250 = vsub.s32 4, %v1226
    %v1251 = vsel %vm1166, %v1250, %v1226
    %v1252 = vsel %vm1165, %v1059, %v1249
    %v1253 = vsel %vm1165, 0, %v1251
    %v1254 = vcosq.f32.pop %v1252
    %v1255 = vsinq.f32.pop %v1252
    %vm1256 = vweird.f32 %v1059
    %v1257 = vadd.s32 %v1253, 3
    %v1258 = vand.u32 %v1257, 3
    %vm1259 = vcmp.lt.s32.totalorder %v1258, 2
    %vm1260 = vcmp.eq.s32.totalorder %v1258, 0
    %v1261 = vxor.u32 %v1255, 2147483648
    %v1262 = vsel %vm1260, %v1254, %v1261
    %vm1263 = vcmp.eq.s32.totalorder %v1258, 2
    %v1264 = vxor.u32 %v1254, 2147483648
    %v1265 = vsel %vm1263, %v1264, %v1255
    %v1266 = vsel %vm1259, %v1262, %v1265
    %v1267 = vsel %vm1256, nan, %v1266
    %v1268 = vand.u32 2147483647, %v1058
    %vm1269 = vcmp.le.f32.partialorder %v1268, 0.7853982
    %vm1270 = vcmp.lt.s32.totalorder %v1058, 0
    %v1271 = vand.u32 %v1058, 2139095040
    %v1272 = vshrl.u32 %v1271, 23
    %v1273 = vsub.s32 %v1272, 127
    %v1274 = vand.u32 2147483647, %v1058
    %v1275 = vand.u32 %v1274, 8388607
    %v1276 = vor.u32 %v1275, 8388608
    %v1277 = vsub.s32 0, %v1276
    %v1278 = vadd.s32 %v1273, 1
    %vm1279 = vcmp.gt.s32.totalorder %v1278, 0
    %v1280 = vsel %vm1279, %v1278, 0
    %v1281 = vshrl.u32 %v1280, 5
    %v1282 = vand.u32 %v1280, 31
    %v1283 = vsub.s32 32, %v1282
    %v1284 = vshrl.u32 683565275, %v1283
    %v1285 = vshll.u32 683565275, %v1282
    %v1286 = vshrl.u32 2475754826, %v1283
    %v1287 = vor.u32 %v1285, %v1286
    %v1288 = vshll.u32 2475754826, %v1282
    %v1289 = vshrl.u32 2131351028, %v1283
    %v1290 = vor.u32 %v1288, %v1289
    %v1291 = vshll.u32 2131351028, %v1282
    %v1292 = vshrl.u32 2102212464, %v1283
    %v1293 = vor.u32 %v1291, %v1292
    %v1294 = vshll.u32 2102212464, %v1282
    %v1295 = vshrl.u32 920167782, %v1283
    %v1296 = vor.u32 %v1294, %v1295
    %v1297 = vshll.u32 920167782, %v1282
    %v1298 = vshrl.u32 1326507024, %v1283
    %v1299 = vor.u32 %v1297, %v1298
    %vm1300 = vcmp.lt.s32.totalorder %v1281, 1
    %vm1301 = vcmp.lt.s32.totalorder %v1281, 2
    %vm1302 = vcmp.lt.s32.totalorder %v1281, 3
    %vm1303 = vcmp.lt.s32.totalorder %v1281, 4
    %v1304 = vsel %vm1300, %v1284, %v1287
    %v1305 = vsel %vm1303, %v1293, 2102212464
    %v1306 = vsel %vm1302, %v1290, %v1305
    %v1307 = vsel %vm1301, %v1304, %v1306
    %v1308 = vsel %vm1300, %v1287, %v1290
    %v1309 = vsel %vm1303, %v1296, 920167782
    %v1310 = vsel %vm1302, %v1293, %v1309
    %v1311 = vsel %vm1301, %v1308, %v1310
    %v1312 = vsel %vm1300, %v1290, %v1293
    %v1313 = vsel %vm1303, %v1299, 1326507024
    %v1314 = vsel %vm1302, %v1296, %v1313
    %v1315 = vsel %vm1301, %v1312, %v1314
    %v1316 = vshll.u32 %v1276, 8
    %v1317 = vmul.u32.u64.compose %v1316, %v1315
    %v1318 = vextract.low.u32 %v1317
    %v1319 = vextract.high.u32 %v1317
    %v1320 = vmul.u32.u64.compose %v1316, %v1311
    %v1321 = vextract.low.u32 %v1320
    %v1322 = vextract.high.u32 %v1320
    %v1323 = vmul.u32 %v1316, %v1307
    %v1324 = vadd.s32 %v1319, %v1321
    %vm1325 = vc.u32 %v1319, %v1321
    %v1326 = vadd.s32 %v1322, 1
    %v1327 = vsel %vm1325, %v1326, %v1322
    %v1328 = vadd.s32 %v1323, %v1327
    %v1329 = vadd.s32 %v1328, 536870912
    %v1330 = vshrl.u32 %v1329, 30
    %v1331 = vshll.u32 %v1330, 30
    %v1332 = vsub.s32 %v1328, %v1331
    %vm1333 = vcmp.lt.s32.totalorder %v1332, 0
    %v1334 = vsub.s32 0, %v1332
    %v1335 = vsel %vm1333, %v1334, %v1332
    %v1336 = vclz %v1335
    %v1337 = vsub.s32 %v1336, 2
    %vm1338 = vcmp.gt.s32.totalorder 0, %v1337
    %v1339 = vsel %vm1338, 0, %v1337
    %v1340 = vsub.s32 32, %v1339
    %v1341 = vshll.u32 %v1332, %v1339
    %v1342 = vshrl.u32 %v1324, %v1340
    %v1343 = vor.u32 %v1341, %v1342
    %v1344 = vsub.s32 4294967266, %v1339
    %v1345 = vadd.s32 %v1344, 127
    %v1346 = vshll.u32 %v1345, 23
    %v1347 = vor.u32 4788187, %v1346
    %v1348 = vand.u32 2147483647, %v1347
    %v1350 = vcvt.s32.f32 %v1343
    %v1351 = vmul.f32 %v1350, %v1348
    %v1352 = vxor.u32 %v1351, 2147483648
    %v1353 = vsel %vm1270, %v1352, %v1351
    %v1354 = vsub.s32 4, %v1330
    %v1355 = vsel %vm1270, %v1354, %v1330
    %v1356 = vsel %vm1269, %v1058, %v1353
    %v1357 = vsel %vm1269, 0, %v1355
    %v1358 = vcosq.f32.pop %v1356
    %v1359 = vsinq.f32.pop %v1356
    %vm1360 = vweird.f32 %v1058
    %v1361 = vand.u32 %v1357, 3
    %vm1362 = vcmp.lt.s32.totalorder %v1361, 2
    %vm1363 = vcmp.eq.s32.totalorder %v1361, 0
    %v1364 = vxor.u32 %v1359, 2147483648
    %v1365 = vsel %vm1363, %v1358, %v1364
    %vm1366 = vcmp.eq.s32.totalorder %v1361, 2
    %v1367 = vxor.u32 %v1358, 2147483648
    %v1368 = vsel %vm1366, %v1367, %v1359
    %v1369 = vsel %vm1362, %v1365, %v1368
    %v1370 = vsel %vm1360, nan, %v1369
    %v1371 = vand.u32 2147483647, %v1059
    %vm1372 = vcmp.le.f32.partialorder %v1371, 0.7853982
    %vm1373 = vcmp.lt.s32.totalorder %v1059, 0
    %v1374 = vand.u32 %v1059, 2139095040
    %v1375 = vshrl.u32 %v1374, 23
    %v1376 = vsub.s32 %v1375, 127
    %v1377 = vand.u32 2147483647, %v1059
    %v1378 = vand.u32 %v1377, 8388607
    %v1379 = vor.u32 %v1378, 8388608
    %v1380 = vsub.s32 0, %v1379
    %v1381 = vadd.s32 %v1376, 1
    %vm1382 = vcmp.gt.s32.totalorder %v1381, 0
    %v1383 = vsel %vm1382, %v1381, 0
    %v1384 = vshrl.u32 %v1383, 5
    %v1385 = vand.u32 %v1383, 31
    %v1386 = vsub.s32 32, %v1385
    %v1387 = vshrl.u32 683565275, %v1386
    %v1388 = vshll.u32 683565275, %v1385
    %v1389 = vshrl.u32 2475754826, %v1386
    %v1390 = vor.u32 %v1388, %v1389
    %v1391 = vshll.u32 2475754826, %v1385
    %v1392 = vshrl.u32 2131351028, %v1386
    %v1393 = vor.u32 %v1391, %v1392
    %v1394 = vshll.u32 2131351028, %v1385
    %v1395 = vshrl.u32 2102212464, %v1386
    %v1396 = vor.u32 %v1394, %v1395
    %v1397 = vshll.u32 2102212464, %v1385
    %v1398 = vshrl.u32 920167782, %v1386
    %v1399 = vor.u32 %v1397, %v1398
    %v1400 = vshll.u32 920167782, %v1385
    %v1401 = vshrl.u32 1326507024, %v1386
    %v1402 = vor.u32 %v1400, %v1401
    %vm1403 = vcmp.lt.s32.totalorder %v1384, 1
    %vm1404 = vcmp.lt.s32.totalorder %v1384, 2
    %vm1405 = vcmp.lt.s32.totalorder %v1384, 3
    %vm1406 = vcmp.lt.s32.totalorder %v1384, 4
    %v1407 = vsel %vm1403, %v1387, %v1390
    %v1408 = vsel %vm1406, %v1396, 2102212464
    %v1409 = vsel %vm1405, %v1393, %v1408
    %v1410 = vsel %vm1404, %v1407, %v1409
    %v1411 = vsel %vm1403, %v1390, %v1393
    %v1412 = vsel %vm1406, %v1399, 920167782
    %v1413 = vsel %vm1405, %v1396, %v1412
    %v1414 = vsel %vm1404, %v1411, %v1413
    %v1415 = vsel %vm1403, %v1393, %v1396
    %v1416 = vsel %vm1406, %v1402, 1326507024
    %v1417 = vsel %vm1405, %v1399, %v1416
    %v1418 = vsel %vm1404, %v1415, %v1417
    %v1419 = vshll.u32 %v1379, 8
    %v1420 = vmul.u32.u64.compose %v1419, %v1418
    %v1421 = vextract.low.u32 %v1420
    %v1422 = vextract.high.u32 %v1420
    %v1423 = vmul.u32.u64.compose %v1419, %v1414
    %v1424 = vextract.low.u32 %v1423
    %v1425 = vextract.high.u32 %v1423
    %v1426 = vmul.u32 %v1419, %v1410
    %v1427 = vadd.s32 %v1422, %v1424
    %vm1428 = vc.u32 %v1422, %v1424
    %v1429 = vadd.s32 %v1425, 1
    %v1430 = vsel %vm1428, %v1429, %v1425
    %v1431 = vadd.s32 %v1426, %v1430
    %v1432 = vadd.s32 %v1431, 536870912
    %v1433 = vshrl.u32 %v1432, 30
    %v1434 = vshll.u32 %v1433, 30
    %v1435 = vsub.s32 %v1431, %v1434
    %vm1436 = vcmp.lt.s32.totalorder %v1435, 0
    %v1437 = vsub.s32 0, %v1435
    %v1438 = vsel %vm1436, %v1437, %v1435
    %v1439 = vclz %v1438
    %v1440 = vsub.s32 %v1439, 2
    %vm1441 = vcmp.gt.s32.totalorder 0, %v1440
    %v1442 = vsel %vm1441, 0, %v1440
    %v1443 = vsub.s32 32, %v1442
    %v1444 = vshll.u32 %v1435, %v1442
    %v1445 = vshrl.u32 %v1427, %v1443
    %v1446 = vor.u32 %v1444, %v1445
    %v1447 = vsub.s32 4294967266, %v1442
    %v1448 = vadd.s32 %v1447, 127
    %v1449 = vshll.u32 %v1448, 23
    %v1450 = vor.u32 4788187, %v1449
    %v1451 = vand.u32 2147483647, %v1450
    %v1453 = vcvt.s32.f32 %v1446
    %v1454 = vmul.f32 %v1453, %v1451
    %v1455 = vxor.u32 %v1454, 2147483648
    %v1456 = vsel %vm1373, %v1455, %v1454
    %v1457 = vsub.s32 4, %v1433
    %v1458 = vsel %vm1373, %v1457, %v1433
    %v1459 = vsel %vm1372, %v1059, %v1456
    %v1460 = vsel %vm1372, 0, %v1458
    %v1461 = vcosq.f32.pop %v1459
    %v1462 = vsinq.f32.pop %v1459
    %vm1463 = vweird.f32 %v1059
    %v1464 = vand.u32 %v1460, 3
    %vm1465 = vcmp.lt.s32.totalorder %v1464, 2
    %vm1466 = vcmp.eq.s32.totalorder %v1464, 0
    %v1467 = vxor.u32 %v1462, 2147483648
    %v1468 = vsel %vm1466, %v1461, %v1467
    %vm1469 = vcmp.eq.s32.totalorder %v1464, 2
    %v1470 = vxor.u32 %v1461, 2147483648
    %v1471 = vsel %vm1469, %v1470, %v1462
    %v1472 = vsel %vm1465, %v1468, %v1471
    %v1473 = vsel %vm1463, nan, %v1472
    %s1474 = scalar_lea.vmem %s1, 96
    %v1475 = vld [vmem:[%s1474] sm:$0xff]
    %v1476 = vld [vmem:[%s1474 + $0x8] sm:$0xff]
    %v1477 = vld [vmem:[%s1474 + $0x10] sm:$0xff]
    %v1478 = vld [vmem:[%s1474 + $0x18] sm:$0xff]
    %v1481 = vcombine.high %v1163, %v1163
    %v1483 = vsel %vm457, %v1475, 0
    %v1486 = vsel %vm457, %v1476, 0
    %v1489 = vsel %vm457, %v1477, 0
    %v1492 = vsel %vm457, %v1478, 0
    %v1494 = vsel %vm470, %v1163, 0
    %v1496 = vsel %vm470, %v1481, 0
    %v1498 = vsel %vm470, %v1267, 0
    %1500 = vmatprep.subr.mxu0 0.0
    %1501 = vmatpush1.msra.mxu0 0.0
    %1502 = vmatprep.subr.mxu0 0.0
    %1503 = vmatpush1.msra.mxu0 0.0
    %1504 = vmatprep.subr.mxu0 0.0
    %1505 = vmatpush1.msra.mxu0 0.0
    %1506 = vmatprep.subr.mxu0 0.0
    %1507 = vmatpush1.msra.mxu0 0.0
    %1508 = vmatprep.subr.mxu0 0.0
    %1509 = vmatpush1.msra.mxu0 0.0
    %1510 = vmatprep.subr.mxu0 0.0
    %1511 = vmatpush1.msra.mxu0 0.0
    %1512 = vmatprep.subr.mxu0 0.0
    %1513 = vmatpush1.msra.mxu0 0.0
    %1514 = vmatprep.subr.mxu0 0.0
    %1515 = vmatpush1.msra.mxu0 0.0
    %1516 = vmatprep.subr.mxu0 0.0
    %1517 = vmatpush1.msra.mxu0 0.0
    %1518 = vmatprep.subr.mxu0 0.0
    %1519 = vmatpush1.msra.mxu0 0.0
    %1520 = vmatprep.subr.mxu0 0.0
    %1521 = vmatpush1.msra.mxu0 0.0
    %1522 = vmatprep.subr.mxu0 0.0
    %1523 = vmatpush1.msra.mxu0 0.0
    %1524 = vmatprep.subr.mxu0 0.0
    %1525 = vmatpush1.msra.mxu0 0.0
    %1526 = vmatprep.subr.mxu0 0.0
    %1527 = vmatpush1.msra.mxu0 0.0
    %1528 = vmatprep.subr.mxu0 0.0
    %1529 = vmatpush1.msra.mxu0 0.0
    %1530 = vmatprep.subr.mxu0 %v1496
    %1531 = vmatpush1.msra.mxu0 %v1494
    %1532 = vmatprep.subr.mxu0 0.0
    %1533 = vmatpush2.msra.mxu0 0.0
    %1534 = vmatprep.subr.mxu0 0.0
    %1535 = vmatpush2.msra.mxu0 0.0
    %1536 = vmatprep.subr.mxu0 0.0
    %1537 = vmatpush2.msra.mxu0 0.0
    %1538 = vmatprep.subr.mxu0 0.0
    %1539 = vmatpush2.msra.mxu0 0.0
    %1540 = vmatprep.subr.mxu0 0.0
    %1541 = vmatpush2.msra.mxu0 0.0
    %1542 = vmatprep.subr.mxu0 0.0
    %1543 = vmatpush2.msra.mxu0 0.0
    %1544 = vmatprep.subr.mxu0 0.0
    %1545 = vmatpush2.msra.mxu0 0.0
    %1546 = vmatprep.subr.mxu0 0.0
    %1547 = vmatpush2.msra.mxu0 0.0
    %1548 = vmatprep.subr.mxu0 0.0
    %1549 = vmatpush2.msra.mxu0 0.0
    %1550 = vmatprep.subr.mxu0 0.0
    %1551 = vmatpush2.msra.mxu0 0.0
    %1552 = vmatprep.subr.mxu0 0.0
    %1553 = vmatpush2.msra.mxu0 0.0
    %1554 = vmatprep.subr.mxu0 0.0
    %1555 = vmatpush2.msra.mxu0 0.0
    %1556 = vmatprep.subr.mxu0 0.0
    %1557 = vmatpush2.msra.mxu0 0.0
    %1558 = vmatprep.subr.mxu0 0.0
    %1559 = vmatpush2.msra.mxu0 0.0
    %1560 = vmatprep.subr.mxu0 0.0
    %1561 = vmatpush2.msra.mxu0 0.0
    %1562 = vmatprep.subr.mxu0 0.0
    %1563 = vmatpush2.msra.mxu0 0.0
    %1564 = vmatprep.mubr.f32.mxu0 0.0
    %1565 = vmatmul.mubr.f32.gmra.mxu0 %v1483
    %v1566 = vpop.f32.mrf.mxu0
    %v1567 = vadd.f32 0.0, %v1566
    %v1568 = vpop.f32.mrf.mxu0
    %v1569 = vadd.f32 0.0, %v1568
    %1570 = vmatprep.mubr.f32.mxu0 0.0
    %1571 = vmatmul.mubr.f32.gmra.mxu0 %v1486
    %v1572 = vpop.f32.mrf.mxu0
    %v1573 = vadd.f32 0.0, %v1572
    %v1574 = vpop.f32.mrf.mxu0
    %v1575 = vadd.f32 0.0, %v1574
    %1576 = vmatprep.mubr.f32.mxu0 0.0
    %1577 = vmatmul.mubr.f32.gmra.mxu0 %v1489
    %v1578 = vpop.f32.mrf.mxu0
    %v1579 = vadd.f32 0.0, %v1578
    %v1580 = vpop.f32.mrf.mxu0
    %v1581 = vadd.f32 0.0, %v1580
    %1582 = vmatprep.mubr.f32.mxu0 0.0
    %1583 = vmatmul.mubr.f32.gmra.mxu0 %v1492
    %v1584 = vpop.f32.mrf.mxu0
    %v1585 = vadd.f32 0.0, %v1584
    %v1586 = vpop.f32.mrf.mxu0
    %v1587 = vadd.f32 0.0, %v1586
    %1588 = vdwg.mxu0
    %1589 = vmatprep.subr.mxu0 0.0
    %1590 = vmatpush1.msra.mxu0 0.0
    %1591 = vmatprep.subr.mxu0 0.0
    %1592 = vmatpush1.msra.mxu0 0.0
    %1593 = vmatprep.subr.mxu0 0.0
    %1594 = vmatpush1.msra.mxu0 0.0
    %1595 = vmatprep.subr.mxu0 0.0
    %1596 = vmatpush1.msra.mxu0 0.0
    %1597 = vmatprep.subr.mxu0 0.0
    %1598 = vmatpush1.msra.mxu0 0.0
    %1599 = vmatprep.subr.mxu0 0.0
    %1600 = vmatpush1.msra.mxu0 0.0
    %1601 = vmatprep.subr.mxu0 0.0
    %1602 = vmatpush1.msra.mxu0 0.0
    %1603 = vmatprep.subr.mxu0 0.0
    %1604 = vmatpush1.msra.mxu0 0.0
    %1605 = vmatprep.subr.mxu0 0.0
    %1606 = vmatpush1.msra.mxu0 0.0
    %1607 = vmatprep.subr.mxu0 0.0
    %1608 = vmatpush1.msra.mxu0 0.0
    %1609 = vmatprep.subr.mxu0 0.0
    %1610 = vmatpush1.msra.mxu0 0.0
    %1611 = vmatprep.subr.mxu0 0.0
    %1612 = vmatpush1.msra.mxu0 0.0
    %1613 = vmatprep.subr.mxu0 0.0
    %1614 = vmatpush1.msra.mxu0 0.0
    %1615 = vmatprep.subr.mxu0 0.0
    %1616 = vmatpush1.msra.mxu0 0.0
    %1617 = vmatprep.subr.mxu0 0.0
    %1618 = vmatpush1.msra.mxu0 0.0
    %1619 = vmatprep.subr.mxu0 0.0
    %1620 = vmatpush1.msra.mxu0 %v1498
    %1621 = vmatprep.subr.mxu0 0.0
    %1622 = vmatpush2.msra.mxu0 0.0
    %1623 = vmatprep.subr.mxu0 0.0
    %1624 = vmatpush2.msra.mxu0 0.0
    %1625 = vmatprep.subr.mxu0 0.0
    %1626 = vmatpush2.msra.mxu0 0.0
    %1627 = vmatprep.subr.mxu0 0.0
    %1628 = vmatpush2.msra.mxu0 0.0
    %1629 = vmatprep.subr.mxu0 0.0
    %1630 = vmatpush2.msra.mxu0 0.0
    %1631 = vmatprep.subr.mxu0 0.0
    %1632 = vmatpush2.msra.mxu0 0.0
    %1633 = vmatprep.subr.mxu0 0.0
    %1634 = vmatpush2.msra.mxu0 0.0
    %1635 = vmatprep.subr.mxu0 0.0
    %1636 = vmatpush2.msra.mxu0 0.0
    %1637 = vmatprep.subr.mxu0 0.0
    %1638 = vmatpush2.msra.mxu0 0.0
    %1639 = vmatprep.subr.mxu0 0.0
    %1640 = vmatpush2.msra.mxu0 0.0
    %1641 = vmatprep.subr.mxu0 0.0
    %1642 = vmatpush2.msra.mxu0 0.0
    %1643 = vmatprep.subr.mxu0 0.0
    %1644 = vmatpush2.msra.mxu0 0.0
    %1645 = vmatprep.subr.mxu0 0.0
    %1646 = vmatpush2.msra.mxu0 0.0
    %1647 = vmatprep.subr.mxu0 0.0
    %1648 = vmatpush2.msra.mxu0 0.0
    %1649 = vmatprep.subr.mxu0 0.0
    %1650 = vmatpush2.msra.mxu0 0.0
    %1651 = vmatprep.subr.mxu0 0.0
    %1652 = vmatpush2.msra.mxu0 0.0
    %1653 = vmatprep.mubr.f32.mxu0 0.0
    %1654 = vmatmul.mubr.f32.gmra.mxu0 %v1483
    %v1655 = vpop.f32.mrf.mxu0
    %v1656 = vadd.f32 0.0, %v1655
    %v1657 = vpop.f32.mrf.mxu0
    %1658 = vmatprep.mubr.f32.mxu0 0.0
    %1659 = vmatmul.mubr.f32.gmra.mxu0 %v1486
    %v1660 = vpop.f32.mrf.mxu0
    %v1661 = vadd.f32 0.0, %v1660
    %v1662 = vpop.f32.mrf.mxu0
    %1663 = vmatprep.mubr.f32.mxu0 0.0
    %1664 = vmatmul.mubr.f32.gmra.mxu0 %v1489
    %v1665 = vpop.f32.mrf.mxu0
    %v1666 = vadd.f32 0.0, %v1665
    %v1667 = vpop.f32.mrf.mxu0
    %1668 = vmatprep.mubr.f32.mxu0 0.0
    %1669 = vmatmul.mubr.f32.gmra.mxu0 %v1492
    %v1670 = vpop.f32.mrf.mxu0
    %v1671 = vadd.f32 0.0, %v1670
    %v1672 = vpop.f32.mrf.mxu0
    %1673 = vdwg.mxu0
    %v1674 = vadd.f32 %v1046, %v1567
    %v1675 = vadd.f32 %v1047, %v1569
    %v1676 = vadd.f32 %v1048, %v1656
    %v1677 = vadd.f32 %v1049, %v1573
    %v1678 = vadd.f32 %v1050, %v1575
    %v1679 = vadd.f32 %v1051, %v1661
    %v1680 = vadd.f32 %v1052, %v1579
    %v1681 = vadd.f32 %v1053, %v1581
    %v1682 = vadd.f32 %v1054, %v1666
    %v1683 = vadd.f32 %v1055, %v1585
    %v1684 = vadd.f32 %v1056, %v1587
    %v1685 = vadd.f32 %v1057, %v1671
    %s1686 = scalar_lea.vmem %s1, 128
    %v1687 = vld [vmem:[%s1686] sm:$0xff]
    %v1688 = vld [vmem:[%s1686 + $0x8] sm:$0xff]
    %v1689 = vld [vmem:[%s1686 + $0x10] sm:$0xff]
    %v1690 = vld [vmem:[%s1686 + $0x18] sm:$0xff]
    %v1693 = vcombine.high %v1370, %v1370
    %v1695 = vsel %vm457, %v1687, 0
    %v1698 = vsel %vm457, %v1688, 0
    %v1701 = vsel %vm457, %v1689, 0
    %v1704 = vsel %vm457, %v1690, 0
    %v1706 = vsel %vm470, %v1370, 0
    %v1708 = vsel %vm470, %v1693, 0
    %v1710 = vsel %vm470, %v1473, 0
    %1712 = vmatprep.subr.mxu0 0.0
    %1713 = vmatpush1.msra.mxu0 0.0
    %1714 = vmatprep.subr.mxu0 0.0
    %1715 = vmatpush1.msra.mxu0 0.0
    %1716 = vmatprep.subr.mxu0 0.0
    %1717 = vmatpush1.msra.mxu0 0.0
    %1718 = vmatprep.subr.mxu0 0.0
    %1719 = vmatpush1.msra.mxu0 0.0
    %1720 = vmatprep.subr.mxu0 0.0
    %1721 = vmatpush1.msra.mxu0 0.0
    %1722 = vmatprep.subr.mxu0 0.0
    %1723 = vmatpush1.msra.mxu0 0.0
    %1724 = vmatprep.subr.mxu0 0.0
    %1725 = vmatpush1.msra.mxu0 0.0
    %1726 = vmatprep.subr.mxu0 0.0
    %1727 = vmatpush1.msra.mxu0 0.0
    %1728 = vmatprep.subr.mxu0 0.0
    %1729 = vmatpush1.msra.mxu0 0.0
    %1730 = vmatprep.subr.mxu0 0.0
    %1731 = vmatpush1.msra.mxu0 0.0
    %1732 = vmatprep.subr.mxu0 0.0
    %1733 = vmatpush1.msra.mxu0 0.0
    %1734 = vmatprep.subr.mxu0 0.0
    %1735 = vmatpush1.msra.mxu0 0.0
    %1736 = vmatprep.subr.mxu0 0.0
    %1737 = vmatpush1.msra.mxu0 0.0
    %1738 = vmatprep.subr.mxu0 0.0
    %1739 = vmatpush1.msra.mxu0 0.0
    %1740 = vmatprep.subr.mxu0 0.0
    %1741 = vmatpush1.msra.mxu0 0.0
    %1742 = vmatprep.subr.mxu0 %v1708
    %1743 = vmatpush1.msra.mxu0 %v1706
    %1744 = vmatprep.subr.mxu0 0.0
    %1745 = vmatpush2.msra.mxu0 0.0
    %1746 = vmatprep.subr.mxu0 0.0
    %1747 = vmatpush2.msra.mxu0 0.0
    %1748 = vmatprep.subr.mxu0 0.0
    %1749 = vmatpush2.msra.mxu0 0.0
    %1750 = vmatprep.subr.mxu0 0.0
    %1751 = vmatpush2.msra.mxu0 0.0
    %1752 = vmatprep.subr.mxu0 0.0
    %1753 = vmatpush2.msra.mxu0 0.0
    %1754 = vmatprep.subr.mxu0 0.0
    %1755 = vmatpush2.msra.mxu0 0.0
    %1756 = vmatprep.subr.mxu0 0.0
    %1757 = vmatpush2.msra.mxu0 0.0
    %1758 = vmatprep.subr.mxu0 0.0
    %1759 = vmatpush2.msra.mxu0 0.0
    %1760 = vmatprep.subr.mxu0 0.0
    %1761 = vmatpush2.msra.mxu0 0.0
    %1762 = vmatprep.subr.mxu0 0.0
    %1763 = vmatpush2.msra.mxu0 0.0
    %1764 = vmatprep.subr.mxu0 0.0
    %1765 = vmatpush2.msra.mxu0 0.0
    %1766 = vmatprep.subr.mxu0 0.0
    %1767 = vmatpush2.msra.mxu0 0.0
    %1768 = vmatprep.subr.mxu0 0.0
    %1769 = vmatpush2.msra.mxu0 0.0
    %1770 = vmatprep.subr.mxu0 0.0
    %1771 = vmatpush2.msra.mxu0 0.0
    %1772 = vmatprep.subr.mxu0 0.0
    %1773 = vmatpush2.msra.mxu0 0.0
    %1774 = vmatprep.subr.mxu0 0.0
    %1775 = vmatpush2.msra.mxu0 0.0
    %1776 = vmatprep.mubr.f32.mxu0 0.0
    %1777 = vmatmul.mubr.f32.gmra.mxu0 %v1695
    %v1778 = vpop.f32.mrf.mxu0
    %v1779 = vadd.f32 0.0, %v1778
    %v1780 = vpop.f32.mrf.mxu0
    %v1781 = vadd.f32 0.0, %v1780
    %1782 = vmatprep.mubr.f32.mxu0 0.0
    %1783 = vmatmul.mubr.f32.gmra.mxu0 %v1698
    %v1784 = vpop.f32.mrf.mxu0
    %v1785 = vadd.f32 0.0, %v1784
    %v1786 = vpop.f32.mrf.mxu0
    %v1787 = vadd.f32 0.0, %v1786
    %1788 = vmatprep.mubr.f32.mxu0 0.0
    %1789 = vmatmul.mubr.f32.gmra.mxu0 %v1701
    %v1790 = vpop.f32.mrf.mxu0
    %v1791 = vadd.f32 0.0, %v1790
    %v1792 = vpop.f32.mrf.mxu0
    %v1793 = vadd.f32 0.0, %v1792
    %1794 = vmatprep.mubr.f32.mxu0 0.0
    %1795 = vmatmul.mubr.f32.gmra.mxu0 %v1704
    %v1796 = vpop.f32.mrf.mxu0
    %v1797 = vadd.f32 0.0, %v1796
    %v1798 = vpop.f32.mrf.mxu0
    %v1799 = vadd.f32 0.0, %v1798
    %1800 = vdwg.mxu0
    %1801 = vmatprep.subr.mxu0 0.0
    %1802 = vmatpush1.msra.mxu0 0.0
    %1803 = vmatprep.subr.mxu0 0.0
    %1804 = vmatpush1.msra.mxu0 0.0
    %1805 = vmatprep.subr.mxu0 0.0
    %1806 = vmatpush1.msra.mxu0 0.0
    %1807 = vmatprep.subr.mxu0 0.0
    %1808 = vmatpush1.msra.mxu0 0.0
    %1809 = vmatprep.subr.mxu0 0.0
    %1810 = vmatpush1.msra.mxu0 0.0
    %1811 = vmatprep.subr.mxu0 0.0
    %1812 = vmatpush1.msra.mxu0 0.0
    %1813 = vmatprep.subr.mxu0 0.0
    %1814 = vmatpush1.msra.mxu0 0.0
    %1815 = vmatprep.subr.mxu0 0.0
    %1816 = vmatpush1.msra.mxu0 0.0
    %1817 = vmatprep.subr.mxu0 0.0
    %1818 = vmatpush1.msra.mxu0 0.0
    %1819 = vmatprep.subr.mxu0 0.0
    %1820 = vmatpush1.msra.mxu0 0.0
    %1821 = vmatprep.subr.mxu0 0.0
    %1822 = vmatpush1.msra.mxu0 0.0
    %1823 = vmatprep.subr.mxu0 0.0
    %1824 = vmatpush1.msra.mxu0 0.0
    %1825 = vmatprep.subr.mxu0 0.0
    %1826 = vmatpush1.msra.mxu0 0.0
    %1827 = vmatprep.subr.mxu0 0.0
    %1828 = vmatpush1.msra.mxu0 0.0
    %1829 = vmatprep.subr.mxu0 0.0
    %1830 = vmatpush1.msra.mxu0 0.0
    %1831 = vmatprep.subr.mxu0 0.0
    %1832 = vmatpush1.msra.mxu0 %v1710
    %1833 = vmatprep.subr.mxu0 0.0
    %1834 = vmatpush2.msra.mxu0 0.0
    %1835 = vmatprep.subr.mxu0 0.0
    %1836 = vmatpush2.msra.mxu0 0.0
    %1837 = vmatprep.subr.mxu0 0.0
    %1838 = vmatpush2.msra.mxu0 0.0
    %1839 = vmatprep.subr.mxu0 0.0
    %1840 = vmatpush2.msra.mxu0 0.0
    %1841 = vmatprep.subr.mxu0 0.0
    %1842 = vmatpush2.msra.mxu0 0.0
    %1843 = vmatprep.subr.mxu0 0.0
    %1844 = vmatpush2.msra.mxu0 0.0
    %1845 = vmatprep.subr.mxu0 0.0
    %1846 = vmatpush2.msra.mxu0 0.0
    %1847 = vmatprep.subr.mxu0 0.0
    %1848 = vmatpush2.msra.mxu0 0.0
    %1849 = vmatprep.subr.mxu0 0.0
    %1850 = vmatpush2.msra.mxu0 0.0
    %1851 = vmatprep.subr.mxu0 0.0
    %1852 = vmatpush2.msra.mxu0 0.0
    %1853 = vmatprep.subr.mxu0 0.0
    %1854 = vmatpush2.msra.mxu0 0.0
    %1855 = vmatprep.subr.mxu0 0.0
    %1856 = vmatpush2.msra.mxu0 0.0
    %1857 = vmatprep.subr.mxu0 0.0
    %1858 = vmatpush2.msra.mxu0 0.0
    %1859 = vmatprep.subr.mxu0 0.0
    %1860 = vmatpush2.msra.mxu0 0.0
    %1861 = vmatprep.subr.mxu0 0.0
    %1862 = vmatpush2.msra.mxu0 0.0
    %1863 = vmatprep.subr.mxu0 0.0
    %1864 = vmatpush2.msra.mxu0 0.0
    %1865 = vmatprep.mubr.f32.mxu0 0.0
    %1866 = vmatmul.mubr.f32.gmra.mxu0 %v1695
    %v1867 = vpop.f32.mrf.mxu0
    %v1868 = vadd.f32 0.0, %v1867
    %v1869 = vpop.f32.mrf.mxu0
    %1870 = vmatprep.mubr.f32.mxu0 0.0
    %1871 = vmatmul.mubr.f32.gmra.mxu0 %v1698
    %v1872 = vpop.f32.mrf.mxu0
    %v1873 = vadd.f32 0.0, %v1872
    %v1874 = vpop.f32.mrf.mxu0
    %1875 = vmatprep.mubr.f32.mxu0 0.0
    %1876 = vmatmul.mubr.f32.gmra.mxu0 %v1701
    %v1877 = vpop.f32.mrf.mxu0
    %v1878 = vadd.f32 0.0, %v1877
    %v1879 = vpop.f32.mrf.mxu0
    %1880 = vmatprep.mubr.f32.mxu0 0.0
    %1881 = vmatmul.mubr.f32.gmra.mxu0 %v1704
    %v1882 = vpop.f32.mrf.mxu0
    %v1883 = vadd.f32 0.0, %v1882
    %v1884 = vpop.f32.mrf.mxu0
    %1885 = vdwg.mxu0
    %v1886 = vadd.f32 %v1674, %v1779
    %v1887 = vadd.f32 %v1675, %v1781
    %v1888 = vadd.f32 %v1676, %v1868
    %v1889 = vadd.f32 %v1677, %v1785
    %v1890 = vadd.f32 %v1678, %v1787
    %v1891 = vadd.f32 %v1679, %v1873
    %v1892 = vadd.f32 %v1680, %v1791
    %v1893 = vadd.f32 %v1681, %v1793
    %v1894 = vadd.f32 %v1682, %v1878
    %v1895 = vadd.f32 %v1683, %v1797
    %v1896 = vadd.f32 %v1684, %v1799
    %v1897 = vadd.f32 %v1685, %v1883
    %v1898 = vmul.f32 %v27, 12.566371
    %v1899 = vmul.f32 %v28, 12.566371
    %v1900 = vand.u32 2147483647, %v1898
    %vm1901 = vcmp.le.f32.partialorder %v1900, 0.7853982
    %vm1902 = vcmp.lt.s32.totalorder %v1898, 0
    %v1903 = vand.u32 %v1898, 2139095040
    %v1904 = vshrl.u32 %v1903, 23
    %v1905 = vsub.s32 %v1904, 127
    %v1906 = vand.u32 2147483647, %v1898
    %v1907 = vand.u32 %v1906, 8388607
    %v1908 = vor.u32 %v1907, 8388608
    %v1909 = vsub.s32 0, %v1908
    %v1910 = vadd.s32 %v1905, 1
    %vm1911 = vcmp.gt.s32.totalorder %v1910, 0
    %v1912 = vsel %vm1911, %v1910, 0
    %v1913 = vshrl.u32 %v1912, 5
    %v1914 = vand.u32 %v1912, 31
    %v1915 = vsub.s32 32, %v1914
    %v1916 = vshrl.u32 683565275, %v1915
    %v1917 = vshll.u32 683565275, %v1914
    %v1918 = vshrl.u32 2475754826, %v1915
    %v1919 = vor.u32 %v1917, %v1918
    %v1920 = vshll.u32 2475754826, %v1914
    %v1921 = vshrl.u32 2131351028, %v1915
    %v1922 = vor.u32 %v1920, %v1921
    %v1923 = vshll.u32 2131351028, %v1914
    %v1924 = vshrl.u32 2102212464, %v1915
    %v1925 = vor.u32 %v1923, %v1924
    %v1926 = vshll.u32 2102212464, %v1914
    %v1927 = vshrl.u32 920167782, %v1915
    %v1928 = vor.u32 %v1926, %v1927
    %v1929 = vshll.u32 920167782, %v1914
    %v1930 = vshrl.u32 1326507024, %v1915
    %v1931 = vor.u32 %v1929, %v1930
    %vm1932 = vcmp.lt.s32.totalorder %v1913, 1
    %vm1933 = vcmp.lt.s32.totalorder %v1913, 2
    %vm1934 = vcmp.lt.s32.totalorder %v1913, 3
    %vm1935 = vcmp.lt.s32.totalorder %v1913, 4
    %v1936 = vsel %vm1932, %v1916, %v1919
    %v1937 = vsel %vm1935, %v1925, 2102212464
    %v1938 = vsel %vm1934, %v1922, %v1937
    %v1939 = vsel %vm1933, %v1936, %v1938
    %v1940 = vsel %vm1932, %v1919, %v1922
    %v1941 = vsel %vm1935, %v1928, 920167782
    %v1942 = vsel %vm1934, %v1925, %v1941
    %v1943 = vsel %vm1933, %v1940, %v1942
    %v1944 = vsel %vm1932, %v1922, %v1925
    %v1945 = vsel %vm1935, %v1931, 1326507024
    %v1946 = vsel %vm1934, %v1928, %v1945
    %v1947 = vsel %vm1933, %v1944, %v1946
    %v1948 = vshll.u32 %v1908, 8
    %v1949 = vmul.u32.u64.compose %v1948, %v1947
    %v1950 = vextract.low.u32 %v1949
    %v1951 = vextract.high.u32 %v1949
    %v1952 = vmul.u32.u64.compose %v1948, %v1943
    %v1953 = vextract.low.u32 %v1952
    %v1954 = vextract.high.u32 %v1952
    %v1955 = vmul.u32 %v1948, %v1939
    %v1956 = vadd.s32 %v1951, %v1953
    %vm1957 = vc.u32 %v1951, %v1953
    %v1958 = vadd.s32 %v1954, 1
    %v1959 = vsel %vm1957, %v1958, %v1954
    %v1960 = vadd.s32 %v1955, %v1959
    %v1961 = vadd.s32 %v1960, 536870912
    %v1962 = vshrl.u32 %v1961, 30
    %v1963 = vshll.u32 %v1962, 30
    %v1964 = vsub.s32 %v1960, %v1963
    %vm1965 = vcmp.lt.s32.totalorder %v1964, 0
    %v1966 = vsub.s32 0, %v1964
    %v1967 = vsel %vm1965, %v1966, %v1964
    %v1968 = vclz %v1967
    %v1969 = vsub.s32 %v1968, 2
    %vm1970 = vcmp.gt.s32.totalorder 0, %v1969
    %v1971 = vsel %vm1970, 0, %v1969
    %v1972 = vsub.s32 32, %v1971
    %v1973 = vshll.u32 %v1964, %v1971
    %v1974 = vshrl.u32 %v1956, %v1972
    %v1975 = vor.u32 %v1973, %v1974
    %v1976 = vsub.s32 4294967266, %v1971
    %v1977 = vadd.s32 %v1976, 127
    %v1978 = vshll.u32 %v1977, 23
    %v1979 = vor.u32 4788187, %v1978
    %v1980 = vand.u32 2147483647, %v1979
    %v1982 = vcvt.s32.f32 %v1975
    %v1983 = vmul.f32 %v1982, %v1980
    %v1984 = vxor.u32 %v1983, 2147483648
    %v1985 = vsel %vm1902, %v1984, %v1983
    %v1986 = vsub.s32 4, %v1962
    %v1987 = vsel %vm1902, %v1986, %v1962
    %v1988 = vsel %vm1901, %v1898, %v1985
    %v1989 = vsel %vm1901, 0, %v1987
    %v1990 = vcosq.f32.pop %v1988
    %v1991 = vsinq.f32.pop %v1988
    %vm1992 = vweird.f32 %v1898
    %v1993 = vadd.s32 %v1989, 3
    %v1994 = vand.u32 %v1993, 3
    %vm1995 = vcmp.lt.s32.totalorder %v1994, 2
    %vm1996 = vcmp.eq.s32.totalorder %v1994, 0
    %v1997 = vxor.u32 %v1991, 2147483648
    %v1998 = vsel %vm1996, %v1990, %v1997
    %vm1999 = vcmp.eq.s32.totalorder %v1994, 2
    %v2000 = vxor.u32 %v1990, 2147483648
    %v2001 = vsel %vm1999, %v2000, %v1991
    %v2002 = vsel %vm1995, %v1998, %v2001
    %v2003 = vsel %vm1992, nan, %v2002
    %v2004 = vand.u32 2147483647, %v1899
    %vm2005 = vcmp.le.f32.partialorder %v2004, 0.7853982
    %vm2006 = vcmp.lt.s32.totalorder %v1899, 0
    %v2007 = vand.u32 %v1899, 2139095040
    %v2008 = vshrl.u32 %v2007, 23
    %v2009 = vsub.s32 %v2008, 127
    %v2010 = vand.u32 2147483647, %v1899
    %v2011 = vand.u32 %v2010, 8388607
    %v2012 = vor.u32 %v2011, 8388608
    %v2013 = vsub.s32 0, %v2012
    %v2014 = vadd.s32 %v2009, 1
    %vm2015 = vcmp.gt.s32.totalorder %v2014, 0
    %v2016 = vsel %vm2015, %v2014, 0
    %v2017 = vshrl.u32 %v2016, 5
    %v2018 = vand.u32 %v2016, 31
    %v2019 = vsub.s32 32, %v2018
    %v2020 = vshrl.u32 683565275, %v2019
    %v2021 = vshll.u32 683565275, %v2018
    %v2022 = vshrl.u32 2475754826, %v2019
    %v2023 = vor.u32 %v2021, %v2022
    %v2024 = vshll.u32 2475754826, %v2018
    %v2025 = vshrl.u32 2131351028, %v2019
    %v2026 = vor.u32 %v2024, %v2025
    %v2027 = vshll.u32 2131351028, %v2018
    %v2028 = vshrl.u32 2102212464, %v2019
    %v2029 = vor.u32 %v2027, %v2028
    %v2030 = vshll.u32 2102212464, %v2018
    %v2031 = vshrl.u32 920167782, %v2019
    %v2032 = vor.u32 %v2030, %v2031
    %v2033 = vshll.u32 920167782, %v2018
    %v2034 = vshrl.u32 1326507024, %v2019
    %v2035 = vor.u32 %v2033, %v2034
    %vm2036 = vcmp.lt.s32.totalorder %v2017, 1
    %vm2037 = vcmp.lt.s32.totalorder %v2017, 2
    %vm2038 = vcmp.lt.s32.totalorder %v2017, 3
    %vm2039 = vcmp.lt.s32.totalorder %v2017, 4
    %v2040 = vsel %vm2036, %v2020, %v2023
    %v2041 = vsel %vm2039, %v2029, 2102212464
    %v2042 = vsel %vm2038, %v2026, %v2041
    %v2043 = vsel %vm2037, %v2040, %v2042
    %v2044 = vsel %vm2036, %v2023, %v2026
    %v2045 = vsel %vm2039, %v2032, 920167782
    %v2046 = vsel %vm2038, %v2029, %v2045
    %v2047 = vsel %vm2037, %v2044, %v2046
    %v2048 = vsel %vm2036, %v2026, %v2029
    %v2049 = vsel %vm2039, %v2035, 1326507024
    %v2050 = vsel %vm2038, %v2032, %v2049
    %v2051 = vsel %vm2037, %v2048, %v2050
    %v2052 = vshll.u32 %v2012, 8
    %v2053 = vmul.u32.u64.compose %v2052, %v2051
    %v2054 = vextract.low.u32 %v2053
    %v2055 = vextract.high.u32 %v2053
    %v2056 = vmul.u32.u64.compose %v2052, %v2047
    %v2057 = vextract.low.u32 %v2056
    %v2058 = vextract.high.u32 %v2056
    %v2059 = vmul.u32 %v2052, %v2043
    %v2060 = vadd.s32 %v2055, %v2057
    %vm2061 = vc.u32 %v2055, %v2057
    %v2062 = vadd.s32 %v2058, 1
    %v2063 = vsel %vm2061, %v2062, %v2058
    %v2064 = vadd.s32 %v2059, %v2063
    %v2065 = vadd.s32 %v2064, 536870912
    %v2066 = vshrl.u32 %v2065, 30
    %v2067 = vshll.u32 %v2066, 30
    %v2068 = vsub.s32 %v2064, %v2067
    %vm2069 = vcmp.lt.s32.totalorder %v2068, 0
    %v2070 = vsub.s32 0, %v2068
    %v2071 = vsel %vm2069, %v2070, %v2068
    %v2072 = vclz %v2071
    %v2073 = vsub.s32 %v2072, 2
    %vm2074 = vcmp.gt.s32.totalorder 0, %v2073
    %v2075 = vsel %vm2074, 0, %v2073
    %v2076 = vsub.s32 32, %v2075
    %v2077 = vshll.u32 %v2068, %v2075
    %v2078 = vshrl.u32 %v2060, %v2076
    %v2079 = vor.u32 %v2077, %v2078
    %v2080 = vsub.s32 4294967266, %v2075
    %v2081 = vadd.s32 %v2080, 127
    %v2082 = vshll.u32 %v2081, 23
    %v2083 = vor.u32 4788187, %v2082
    %v2084 = vand.u32 2147483647, %v2083
    %v2086 = vcvt.s32.f32 %v2079
    %v2087 = vmul.f32 %v2086, %v2084
    %v2088 = vxor.u32 %v2087, 2147483648
    %v2089 = vsel %vm2006, %v2088, %v2087
    %v2090 = vsub.s32 4, %v2066
    %v2091 = vsel %vm2006, %v2090, %v2066
    %v2092 = vsel %vm2005, %v1899, %v2089
    %v2093 = vsel %vm2005, 0, %v2091
    %v2094 = vcosq.f32.pop %v2092
    %v2095 = vsinq.f32.pop %v2092
    %vm2096 = vweird.f32 %v1899
    %v2097 = vadd.s32 %v2093, 3
    %v2098 = vand.u32 %v2097, 3
    %vm2099 = vcmp.lt.s32.totalorder %v2098, 2
    %vm2100 = vcmp.eq.s32.totalorder %v2098, 0
    %v2101 = vxor.u32 %v2095, 2147483648
    %v2102 = vsel %vm2100, %v2094, %v2101
    %vm2103 = vcmp.eq.s32.totalorder %v2098, 2
    %v2104 = vxor.u32 %v2094, 2147483648
    %v2105 = vsel %vm2103, %v2104, %v2095
    %v2106 = vsel %vm2099, %v2102, %v2105
    %v2107 = vsel %vm2096, nan, %v2106
    %v2108 = vand.u32 2147483647, %v1898
    %vm2109 = vcmp.le.f32.partialorder %v2108, 0.7853982
    %vm2110 = vcmp.lt.s32.totalorder %v1898, 0
    %v2111 = vand.u32 %v1898, 2139095040
    %v2112 = vshrl.u32 %v2111, 23
    %v2113 = vsub.s32 %v2112, 127
    %v2114 = vand.u32 2147483647, %v1898
    %v2115 = vand.u32 %v2114, 8388607
    %v2116 = vor.u32 %v2115, 8388608
    %v2117 = vsub.s32 0, %v2116
    %v2118 = vadd.s32 %v2113, 1
    %vm2119 = vcmp.gt.s32.totalorder %v2118, 0
    %v2120 = vsel %vm2119, %v2118, 0
    %v2121 = vshrl.u32 %v2120, 5
    %v2122 = vand.u32 %v2120, 31
    %v2123 = vsub.s32 32, %v2122
    %v2124 = vshrl.u32 683565275, %v2123
    %v2125 = vshll.u32 683565275, %v2122
    %v2126 = vshrl.u32 2475754826, %v2123
    %v2127 = vor.u32 %v2125, %v2126
    %v2128 = vshll.u32 2475754826, %v2122
    %v2129 = vshrl.u32 2131351028, %v2123
    %v2130 = vor.u32 %v2128, %v2129
    %v2131 = vshll.u32 2131351028, %v2122
    %v2132 = vshrl.u32 2102212464, %v2123
    %v2133 = vor.u32 %v2131, %v2132
    %v2134 = vshll.u32 2102212464, %v2122
    %v2135 = vshrl.u32 920167782, %v2123
    %v2136 = vor.u32 %v2134, %v2135
    %v2137 = vshll.u32 920167782, %v2122
    %v2138 = vshrl.u32 1326507024, %v2123
    %v2139 = vor.u32 %v2137, %v2138
    %vm2140 = vcmp.lt.s32.totalorder %v2121, 1
    %vm2141 = vcmp.lt.s32.totalorder %v2121, 2
    %vm2142 = vcmp.lt.s32.totalorder %v2121, 3
    %vm2143 = vcmp.lt.s32.totalorder %v2121, 4
    %v2144 = vsel %vm2140, %v2124, %v2127
    %v2145 = vsel %vm2143, %v2133, 2102212464
    %v2146 = vsel %vm2142, %v2130, %v2145
    %v2147 = vsel %vm2141, %v2144, %v2146
    %v2148 = vsel %vm2140, %v2127, %v2130
    %v2149 = vsel %vm2143, %v2136, 920167782
    %v2150 = vsel %vm2142, %v2133, %v2149
    %v2151 = vsel %vm2141, %v2148, %v2150
    %v2152 = vsel %vm2140, %v2130, %v2133
    %v2153 = vsel %vm2143, %v2139, 1326507024
    %v2154 = vsel %vm2142, %v2136, %v2153
    %v2155 = vsel %vm2141, %v2152, %v2154
    %v2156 = vshll.u32 %v2116, 8
    %v2157 = vmul.u32.u64.compose %v2156, %v2155
    %v2158 = vextract.low.u32 %v2157
    %v2159 = vextract.high.u32 %v2157
    %v2160 = vmul.u32.u64.compose %v2156, %v2151
    %v2161 = vextract.low.u32 %v2160
    %v2162 = vextract.high.u32 %v2160
    %v2163 = vmul.u32 %v2156, %v2147
    %v2164 = vadd.s32 %v2159, %v2161
    %vm2165 = vc.u32 %v2159, %v2161
    %v2166 = vadd.s32 %v2162, 1
    %v2167 = vsel %vm2165, %v2166, %v2162
    %v2168 = vadd.s32 %v2163, %v2167
    %v2169 = vadd.s32 %v2168, 536870912
    %v2170 = vshrl.u32 %v2169, 30
    %v2171 = vshll.u32 %v2170, 30
    %v2172 = vsub.s32 %v2168, %v2171
    %vm2173 = vcmp.lt.s32.totalorder %v2172, 0
    %v2174 = vsub.s32 0, %v2172
    %v2175 = vsel %vm2173, %v2174, %v2172
    %v2176 = vclz %v2175
    %v2177 = vsub.s32 %v2176, 2
    %vm2178 = vcmp.gt.s32.totalorder 0, %v2177
    %v2179 = vsel %vm2178, 0, %v2177
    %v2180 = vsub.s32 32, %v2179
    %v2181 = vshll.u32 %v2172, %v2179
    %v2182 = vshrl.u32 %v2164, %v2180
    %v2183 = vor.u32 %v2181, %v2182
    %v2184 = vsub.s32 4294967266, %v2179
    %v2185 = vadd.s32 %v2184, 127
    %v2186 = vshll.u32 %v2185, 23
    %v2187 = vor.u32 4788187, %v2186
    %v2188 = vand.u32 2147483647, %v2187
    %v2190 = vcvt.s32.f32 %v2183
    %v2191 = vmul.f32 %v2190, %v2188
    %v2192 = vxor.u32 %v2191, 2147483648
    %v2193 = vsel %vm2110, %v2192, %v2191
    %v2194 = vsub.s32 4, %v2170
    %v2195 = vsel %vm2110, %v2194, %v2170
    %v2196 = vsel %vm2109, %v1898, %v2193
    %v2197 = vsel %vm2109, 0, %v2195
    %v2198 = vcosq.f32.pop %v2196
    %v2199 = vsinq.f32.pop %v2196
    %vm2200 = vweird.f32 %v1898
    %v2201 = vand.u32 %v2197, 3
    %vm2202 = vcmp.lt.s32.totalorder %v2201, 2
    %vm2203 = vcmp.eq.s32.totalorder %v2201, 0
    %v2204 = vxor.u32 %v2199, 2147483648
    %v2205 = vsel %vm2203, %v2198, %v2204
    %vm2206 = vcmp.eq.s32.totalorder %v2201, 2
    %v2207 = vxor.u32 %v2198, 2147483648
    %v2208 = vsel %vm2206, %v2207, %v2199
    %v2209 = vsel %vm2202, %v2205, %v2208
    %v2210 = vsel %vm2200, nan, %v2209
    %v2211 = vand.u32 2147483647, %v1899
    %vm2212 = vcmp.le.f32.partialorder %v2211, 0.7853982
    %vm2213 = vcmp.lt.s32.totalorder %v1899, 0
    %v2214 = vand.u32 %v1899, 2139095040
    %v2215 = vshrl.u32 %v2214, 23
    %v2216 = vsub.s32 %v2215, 127
    %v2217 = vand.u32 2147483647, %v1899
    %v2218 = vand.u32 %v2217, 8388607
    %v2219 = vor.u32 %v2218, 8388608
    %v2220 = vsub.s32 0, %v2219
    %v2221 = vadd.s32 %v2216, 1
    %vm2222 = vcmp.gt.s32.totalorder %v2221, 0
    %v2223 = vsel %vm2222, %v2221, 0
    %v2224 = vshrl.u32 %v2223, 5
    %v2225 = vand.u32 %v2223, 31
    %v2226 = vsub.s32 32, %v2225
    %v2227 = vshrl.u32 683565275, %v2226
    %v2228 = vshll.u32 683565275, %v2225
    %v2229 = vshrl.u32 2475754826, %v2226
    %v2230 = vor.u32 %v2228, %v2229
    %v2231 = vshll.u32 2475754826, %v2225
    %v2232 = vshrl.u32 2131351028, %v2226
    %v2233 = vor.u32 %v2231, %v2232
    %v2234 = vshll.u32 2131351028, %v2225
    %v2235 = vshrl.u32 2102212464, %v2226
    %v2236 = vor.u32 %v2234, %v2235
    %v2237 = vshll.u32 2102212464, %v2225
    %v2238 = vshrl.u32 920167782, %v2226
    %v2239 = vor.u32 %v2237, %v2238
    %v2240 = vshll.u32 920167782, %v2225
    %v2241 = vshrl.u32 1326507024, %v2226
    %v2242 = vor.u32 %v2240, %v2241
    %vm2243 = vcmp.lt.s32.totalorder %v2224, 1
    %vm2244 = vcmp.lt.s32.totalorder %v2224, 2
    %vm2245 = vcmp.lt.s32.totalorder %v2224, 3
    %vm2246 = vcmp.lt.s32.totalorder %v2224, 4
    %v2247 = vsel %vm2243, %v2227, %v2230
    %v2248 = vsel %vm2246, %v2236, 2102212464
    %v2249 = vsel %vm2245, %v2233, %v2248
    %v2250 = vsel %vm2244, %v2247, %v2249
    %v2251 = vsel %vm2243, %v2230, %v2233
    %v2252 = vsel %vm2246, %v2239, 920167782
    %v2253 = vsel %vm2245, %v2236, %v2252
    %v2254 = vsel %vm2244, %v2251, %v2253
    %v2255 = vsel %vm2243, %v2233, %v2236
    %v2256 = vsel %vm2246, %v2242, 1326507024
    %v2257 = vsel %vm2245, %v2239, %v2256
    %v2258 = vsel %vm2244, %v2255, %v2257
    %v2259 = vshll.u32 %v2219, 8
    %v2260 = vmul.u32.u64.compose %v2259, %v2258
    %v2261 = vextract.low.u32 %v2260
    %v2262 = vextract.high.u32 %v2260
    %v2263 = vmul.u32.u64.compose %v2259, %v2254
    %v2264 = vextract.low.u32 %v2263
    %v2265 = vextract.high.u32 %v2263
    %v2266 = vmul.u32 %v2259, %v2250
    %v2267 = vadd.s32 %v2262, %v2264
    %vm2268 = vc.u32 %v2262, %v2264
    %v2269 = vadd.s32 %v2265, 1
    %v2270 = vsel %vm2268, %v2269, %v2265
    %v2271 = vadd.s32 %v2266, %v2270
    %v2272 = vadd.s32 %v2271, 536870912
    %v2273 = vshrl.u32 %v2272, 30
    %v2274 = vshll.u32 %v2273, 30
    %v2275 = vsub.s32 %v2271, %v2274
    %vm2276 = vcmp.lt.s32.totalorder %v2275, 0
    %v2277 = vsub.s32 0, %v2275
    %v2278 = vsel %vm2276, %v2277, %v2275
    %v2279 = vclz %v2278
    %v2280 = vsub.s32 %v2279, 2
    %vm2281 = vcmp.gt.s32.totalorder 0, %v2280
    %v2282 = vsel %vm2281, 0, %v2280
    %v2283 = vsub.s32 32, %v2282
    %v2284 = vshll.u32 %v2275, %v2282
    %v2285 = vshrl.u32 %v2267, %v2283
    %v2286 = vor.u32 %v2284, %v2285
    %v2287 = vsub.s32 4294967266, %v2282
    %v2288 = vadd.s32 %v2287, 127
    %v2289 = vshll.u32 %v2288, 23
    %v2290 = vor.u32 4788187, %v2289
    %v2291 = vand.u32 2147483647, %v2290
    %v2293 = vcvt.s32.f32 %v2286
    %v2294 = vmul.f32 %v2293, %v2291
    %v2295 = vxor.u32 %v2294, 2147483648
    %v2296 = vsel %vm2213, %v2295, %v2294
    %v2297 = vsub.s32 4, %v2273
    %v2298 = vsel %vm2213, %v2297, %v2273
    %v2299 = vsel %vm2212, %v1899, %v2296
    %v2300 = vsel %vm2212, 0, %v2298
    %v2301 = vcosq.f32.pop %v2299
    %v2302 = vsinq.f32.pop %v2299
    %vm2303 = vweird.f32 %v1899
    %v2304 = vand.u32 %v2300, 3
    %vm2305 = vcmp.lt.s32.totalorder %v2304, 2
    %vm2306 = vcmp.eq.s32.totalorder %v2304, 0
    %v2307 = vxor.u32 %v2302, 2147483648
    %v2308 = vsel %vm2306, %v2301, %v2307
    %vm2309 = vcmp.eq.s32.totalorder %v2304, 2
    %v2310 = vxor.u32 %v2301, 2147483648
    %v2311 = vsel %vm2309, %v2310, %v2302
    %v2312 = vsel %vm2305, %v2308, %v2311
    %v2313 = vsel %vm2303, nan, %v2312
    %s2314 = scalar_lea.vmem %s1, 160
    %v2315 = vld [vmem:[%s2314] sm:$0xff]
    %v2316 = vld [vmem:[%s2314 + $0x8] sm:$0xff]
    %v2317 = vld [vmem:[%s2314 + $0x10] sm:$0xff]
    %v2318 = vld [vmem:[%s2314 + $0x18] sm:$0xff]
    %v2321 = vcombine.high %v2003, %v2003
    %v2323 = vsel %vm457, %v2315, 0
    %v2326 = vsel %vm457, %v2316, 0
    %v2329 = vsel %vm457, %v2317, 0
    %v2332 = vsel %vm457, %v2318, 0
    %v2334 = vsel %vm470, %v2003, 0
    %v2336 = vsel %vm470, %v2321, 0
    %v2338 = vsel %vm470, %v2107, 0
    %2340 = vmatprep.subr.mxu0 0.0
    %2341 = vmatpush1.msra.mxu0 0.0
    %2342 = vmatprep.subr.mxu0 0.0
    %2343 = vmatpush1.msra.mxu0 0.0
    %2344 = vmatprep.subr.mxu0 0.0
    %2345 = vmatpush1.msra.mxu0 0.0
    %2346 = vmatprep.subr.mxu0 0.0
    %2347 = vmatpush1.msra.mxu0 0.0
    %2348 = vmatprep.subr.mxu0 0.0
    %2349 = vmatpush1.msra.mxu0 0.0
    %2350 = vmatprep.subr.mxu0 0.0
    %2351 = vmatpush1.msra.mxu0 0.0
    %2352 = vmatprep.subr.mxu0 0.0
    %2353 = vmatpush1.msra.mxu0 0.0
    %2354 = vmatprep.subr.mxu0 0.0
    %2355 = vmatpush1.msra.mxu0 0.0
    %2356 = vmatprep.subr.mxu0 0.0
    %2357 = vmatpush1.msra.mxu0 0.0
    %2358 = vmatprep.subr.mxu0 0.0
    %2359 = vmatpush1.msra.mxu0 0.0
    %2360 = vmatprep.subr.mxu0 0.0
    %2361 = vmatpush1.msra.mxu0 0.0
    %2362 = vmatprep.subr.mxu0 0.0
    %2363 = vmatpush1.msra.mxu0 0.0
    %2364 = vmatprep.subr.mxu0 0.0
    %2365 = vmatpush1.msra.mxu0 0.0
    %2366 = vmatprep.subr.mxu0 0.0
    %2367 = vmatpush1.msra.mxu0 0.0
    %2368 = vmatprep.subr.mxu0 0.0
    %2369 = vmatpush1.msra.mxu0 0.0
    %2370 = vmatprep.subr.mxu0 %v2336
    %2371 = vmatpush1.msra.mxu0 %v2334
    %2372 = vmatprep.subr.mxu0 0.0
    %2373 = vmatpush2.msra.mxu0 0.0
    %2374 = vmatprep.subr.mxu0 0.0
    %2375 = vmatpush2.msra.mxu0 0.0
    %2376 = vmatprep.subr.mxu0 0.0
    %2377 = vmatpush2.msra.mxu0 0.0
    %2378 = vmatprep.subr.mxu0 0.0
    %2379 = vmatpush2.msra.mxu0 0.0
    %2380 = vmatprep.subr.mxu0 0.0
    %2381 = vmatpush2.msra.mxu0 0.0
    %2382 = vmatprep.subr.mxu0 0.0
    %2383 = vmatpush2.msra.mxu0 0.0
    %2384 = vmatprep.subr.mxu0 0.0
    %2385 = vmatpush2.msra.mxu0 0.0
    %2386 = vmatprep.subr.mxu0 0.0
    %2387 = vmatpush2.msra.mxu0 0.0
    %2388 = vmatprep.subr.mxu0 0.0
    %2389 = vmatpush2.msra.mxu0 0.0
    %2390 = vmatprep.subr.mxu0 0.0
    %2391 = vmatpush2.msra.mxu0 0.0
    %2392 = vmatprep.subr.mxu0 0.0
    %2393 = vmatpush2.msra.mxu0 0.0
    %2394 = vmatprep.subr.mxu0 0.0
    %2395 = vmatpush2.msra.mxu0 0.0
    %2396 = vmatprep.subr.mxu0 0.0
    %2397 = vmatpush2.msra.mxu0 0.0
    %2398 = vmatprep.subr.mxu0 0.0
    %2399 = vmatpush2.msra.mxu0 0.0
    %2400 = vmatprep.subr.mxu0 0.0
    %2401 = vmatpush2.msra.mxu0 0.0
    %2402 = vmatprep.subr.mxu0 0.0
    %2403 = vmatpush2.msra.mxu0 0.0
    %2404 = vmatprep.mubr.f32.mxu0 0.0
    %2405 = vmatmul.mubr.f32.gmra.mxu0 %v2323
    %v2406 = vpop.f32.mrf.mxu0
    %v2407 = vadd.f32 0.0, %v2406
    %v2408 = vpop.f32.mrf.mxu0
    %v2409 = vadd.f32 0.0, %v2408
    %2410 = vmatprep.mubr.f32.mxu0 0.0
    %2411 = vmatmul.mubr.f32.gmra.mxu0 %v2326
    %v2412 = vpop.f32.mrf.mxu0
    %v2413 = vadd.f32 0.0, %v2412
    %v2414 = vpop.f32.mrf.mxu0
    %v2415 = vadd.f32 0.0, %v2414
    %2416 = vmatprep.mubr.f32.mxu0 0.0
    %2417 = vmatmul.mubr.f32.gmra.mxu0 %v2329
    %v2418 = vpop.f32.mrf.mxu0
    %v2419 = vadd.f32 0.0, %v2418
    %v2420 = vpop.f32.mrf.mxu0
    %v2421 = vadd.f32 0.0, %v2420
    %2422 = vmatprep.mubr.f32.mxu0 0.0
    %2423 = vmatmul.mubr.f32.gmra.mxu0 %v2332
    %v2424 = vpop.f32.mrf.mxu0
    %v2425 = vadd.f32 0.0, %v2424
    %v2426 = vpop.f32.mrf.mxu0
    %v2427 = vadd.f32 0.0, %v2426
    %2428 = vdwg.mxu0
    %2429 = vmatprep.subr.mxu0 0.0
    %2430 = vmatpush1.msra.mxu0 0.0
    %2431 = vmatprep.subr.mxu0 0.0
    %2432 = vmatpush1.msra.mxu0 0.0
    %2433 = vmatprep.subr.mxu0 0.0
    %2434 = vmatpush1.msra.mxu0 0.0
    %2435 = vmatprep.subr.mxu0 0.0
    %2436 = vmatpush1.msra.mxu0 0.0
    %2437 = vmatprep.subr.mxu0 0.0
    %2438 = vmatpush1.msra.mxu0 0.0
    %2439 = vmatprep.subr.mxu0 0.0
    %2440 = vmatpush1.msra.mxu0 0.0
    %2441 = vmatprep.subr.mxu0 0.0
    %2442 = vmatpush1.msra.mxu0 0.0
    %2443 = vmatprep.subr.mxu0 0.0
    %2444 = vmatpush1.msra.mxu0 0.0
    %2445 = vmatprep.subr.mxu0 0.0
    %2446 = vmatpush1.msra.mxu0 0.0
    %2447 = vmatprep.subr.mxu0 0.0
    %2448 = vmatpush1.msra.mxu0 0.0
    %2449 = vmatprep.subr.mxu0 0.0
    %2450 = vmatpush1.msra.mxu0 0.0
    %2451 = vmatprep.subr.mxu0 0.0
    %2452 = vmatpush1.msra.mxu0 0.0
    %2453 = vmatprep.subr.mxu0 0.0
    %2454 = vmatpush1.msra.mxu0 0.0
    %2455 = vmatprep.subr.mxu0 0.0
    %2456 = vmatpush1.msra.mxu0 0.0
    %2457 = vmatprep.subr.mxu0 0.0
    %2458 = vmatpush1.msra.mxu0 0.0
    %2459 = vmatprep.subr.mxu0 0.0
    %2460 = vmatpush1.msra.mxu0 %v2338
    %2461 = vmatprep.subr.mxu0 0.0
    %2462 = vmatpush2.msra.mxu0 0.0
    %2463 = vmatprep.subr.mxu0 0.0
    %2464 = vmatpush2.msra.mxu0 0.0
    %2465 = vmatprep.subr.mxu0 0.0
    %2466 = vmatpush2.msra.mxu0 0.0
    %2467 = vmatprep.subr.mxu0 0.0
    %2468 = vmatpush2.msra.mxu0 0.0
    %2469 = vmatprep.subr.mxu0 0.0
    %2470 = vmatpush2.msra.mxu0 0.0
    %2471 = vmatprep.subr.mxu0 0.0
    %2472 = vmatpush2.msra.mxu0 0.0
    %2473 = vmatprep.subr.mxu0 0.0
    %2474 = vmatpush2.msra.mxu0 0.0
    %2475 = vmatprep.subr.mxu0 0.0
    %2476 = vmatpush2.msra.mxu0 0.0
    %2477 = vmatprep.subr.mxu0 0.0
    %2478 = vmatpush2.msra.mxu0 0.0
    %2479 = vmatprep.subr.mxu0 0.0
    %2480 = vmatpush2.msra.mxu0 0.0
    %2481 = vmatprep.subr.mxu0 0.0
    %2482 = vmatpush2.msra.mxu0 0.0
    %2483 = vmatprep.subr.mxu0 0.0
    %2484 = vmatpush2.msra.mxu0 0.0
    %2485 = vmatprep.subr.mxu0 0.0
    %2486 = vmatpush2.msra.mxu0 0.0
    %2487 = vmatprep.subr.mxu0 0.0
    %2488 = vmatpush2.msra.mxu0 0.0
    %2489 = vmatprep.subr.mxu0 0.0
    %2490 = vmatpush2.msra.mxu0 0.0
    %2491 = vmatprep.subr.mxu0 0.0
    %2492 = vmatpush2.msra.mxu0 0.0
    %2493 = vmatprep.mubr.f32.mxu0 0.0
    %2494 = vmatmul.mubr.f32.gmra.mxu0 %v2323
    %v2495 = vpop.f32.mrf.mxu0
    %v2496 = vadd.f32 0.0, %v2495
    %v2497 = vpop.f32.mrf.mxu0
    %2498 = vmatprep.mubr.f32.mxu0 0.0
    %2499 = vmatmul.mubr.f32.gmra.mxu0 %v2326
    %v2500 = vpop.f32.mrf.mxu0
    %v2501 = vadd.f32 0.0, %v2500
    %v2502 = vpop.f32.mrf.mxu0
    %2503 = vmatprep.mubr.f32.mxu0 0.0
    %2504 = vmatmul.mubr.f32.gmra.mxu0 %v2329
    %v2505 = vpop.f32.mrf.mxu0
    %v2506 = vadd.f32 0.0, %v2505
    %v2507 = vpop.f32.mrf.mxu0
    %2508 = vmatprep.mubr.f32.mxu0 0.0
    %2509 = vmatmul.mubr.f32.gmra.mxu0 %v2332
    %v2510 = vpop.f32.mrf.mxu0
    %v2511 = vadd.f32 0.0, %v2510
    %v2512 = vpop.f32.mrf.mxu0
    %2513 = vdwg.mxu0
    %v2514 = vadd.f32 %v1886, %v2407
    %v2515 = vadd.f32 %v1887, %v2409
    %v2516 = vadd.f32 %v1888, %v2496
    %v2517 = vadd.f32 %v1889, %v2413
    %v2518 = vadd.f32 %v1890, %v2415
    %v2519 = vadd.f32 %v1891, %v2501
    %v2520 = vadd.f32 %v1892, %v2419
    %v2521 = vadd.f32 %v1893, %v2421
    %v2522 = vadd.f32 %v1894, %v2506
    %v2523 = vadd.f32 %v1895, %v2425
    %v2524 = vadd.f32 %v1896, %v2427
    %v2525 = vadd.f32 %v1897, %v2511
    %s2526 = scalar_lea.vmem %s1, 192
    %v2527 = vld [vmem:[%s2526] sm:$0xff]
    %v2528 = vld [vmem:[%s2526 + $0x8] sm:$0xff]
    %v2529 = vld [vmem:[%s2526 + $0x10] sm:$0xff]
    %v2530 = vld [vmem:[%s2526 + $0x18] sm:$0xff]
    %v2533 = vcombine.high %v2210, %v2210
    %v2535 = vsel %vm457, %v2527, 0
    %v2538 = vsel %vm457, %v2528, 0
    %v2541 = vsel %vm457, %v2529, 0
    %v2544 = vsel %vm457, %v2530, 0
    %v2546 = vsel %vm470, %v2210, 0
    %v2548 = vsel %vm470, %v2533, 0
    %v2550 = vsel %vm470, %v2313, 0
    %2552 = vmatprep.subr.mxu0 0.0
    %2553 = vmatpush1.msra.mxu0 0.0
    %2554 = vmatprep.subr.mxu0 0.0
    %2555 = vmatpush1.msra.mxu0 0.0
    %2556 = vmatprep.subr.mxu0 0.0
    %2557 = vmatpush1.msra.mxu0 0.0
    %2558 = vmatprep.subr.mxu0 0.0
    %2559 = vmatpush1.msra.mxu0 0.0
    %2560 = vmatprep.subr.mxu0 0.0
    %2561 = vmatpush1.msra.mxu0 0.0
    %2562 = vmatprep.subr.mxu0 0.0
    %2563 = vmatpush1.msra.mxu0 0.0
    %2564 = vmatprep.subr.mxu0 0.0
    %2565 = vmatpush1.msra.mxu0 0.0
    %2566 = vmatprep.subr.mxu0 0.0
    %2567 = vmatpush1.msra.mxu0 0.0
    %2568 = vmatprep.subr.mxu0 0.0
    %2569 = vmatpush1.msra.mxu0 0.0
    %2570 = vmatprep.subr.mxu0 0.0
    %2571 = vmatpush1.msra.mxu0 0.0
    %2572 = vmatprep.subr.mxu0 0.0
    %2573 = vmatpush1.msra.mxu0 0.0
    %2574 = vmatprep.subr.mxu0 0.0
    %2575 = vmatpush1.msra.mxu0 0.0
    %2576 = vmatprep.subr.mxu0 0.0
    %2577 = vmatpush1.msra.mxu0 0.0
    %2578 = vmatprep.subr.mxu0 0.0
    %2579 = vmatpush1.msra.mxu0 0.0
    %2580 = vmatprep.subr.mxu0 0.0
    %2581 = vmatpush1.msra.mxu0 0.0
    %2582 = vmatprep.subr.mxu0 %v2548
    %2583 = vmatpush1.msra.mxu0 %v2546
    %2584 = vmatprep.subr.mxu0 0.0
    %2585 = vmatpush2.msra.mxu0 0.0
    %2586 = vmatprep.subr.mxu0 0.0
    %2587 = vmatpush2.msra.mxu0 0.0
    %2588 = vmatprep.subr.mxu0 0.0
    %2589 = vmatpush2.msra.mxu0 0.0
    %2590 = vmatprep.subr.mxu0 0.0
    %2591 = vmatpush2.msra.mxu0 0.0
    %2592 = vmatprep.subr.mxu0 0.0
    %2593 = vmatpush2.msra.mxu0 0.0
    %2594 = vmatprep.subr.mxu0 0.0
    %2595 = vmatpush2.msra.mxu0 0.0
    %2596 = vmatprep.subr.mxu0 0.0
    %2597 = vmatpush2.msra.mxu0 0.0
    %2598 = vmatprep.subr.mxu0 0.0
    %2599 = vmatpush2.msra.mxu0 0.0
    %2600 = vmatprep.subr.mxu0 0.0
    %2601 = vmatpush2.msra.mxu0 0.0
    %2602 = vmatprep.subr.mxu0 0.0
    %2603 = vmatpush2.msra.mxu0 0.0
    %2604 = vmatprep.subr.mxu0 0.0
    %2605 = vmatpush2.msra.mxu0 0.0
    %2606 = vmatprep.subr.mxu0 0.0
    %2607 = vmatpush2.msra.mxu0 0.0
    %2608 = vmatprep.subr.mxu0 0.0
    %2609 = vmatpush2.msra.mxu0 0.0
    %2610 = vmatprep.subr.mxu0 0.0
    %2611 = vmatpush2.msra.mxu0 0.0
    %2612 = vmatprep.subr.mxu0 0.0
    %2613 = vmatpush2.msra.mxu0 0.0
    %2614 = vmatprep.subr.mxu0 0.0
    %2615 = vmatpush2.msra.mxu0 0.0
    %2616 = vmatprep.mubr.f32.mxu0 0.0
    %2617 = vmatmul.mubr.f32.gmra.mxu0 %v2535
    %v2618 = vpop.f32.mrf.mxu0
    %v2619 = vadd.f32 0.0, %v2618
    %v2620 = vpop.f32.mrf.mxu0
    %v2621 = vadd.f32 0.0, %v2620
    %2622 = vmatprep.mubr.f32.mxu0 0.0
    %2623 = vmatmul.mubr.f32.gmra.mxu0 %v2538
    %v2624 = vpop.f32.mrf.mxu0
    %v2625 = vadd.f32 0.0, %v2624
    %v2626 = vpop.f32.mrf.mxu0
    %v2627 = vadd.f32 0.0, %v2626
    %2628 = vmatprep.mubr.f32.mxu0 0.0
    %2629 = vmatmul.mubr.f32.gmra.mxu0 %v2541
    %v2630 = vpop.f32.mrf.mxu0
    %v2631 = vadd.f32 0.0, %v2630
    %v2632 = vpop.f32.mrf.mxu0
    %v2633 = vadd.f32 0.0, %v2632
    %2634 = vmatprep.mubr.f32.mxu0 0.0
    %2635 = vmatmul.mubr.f32.gmra.mxu0 %v2544
    %v2636 = vpop.f32.mrf.mxu0
    %v2637 = vadd.f32 0.0, %v2636
    %v2638 = vpop.f32.mrf.mxu0
    %v2639 = vadd.f32 0.0, %v2638
    %2640 = vdwg.mxu0
    %2641 = vmatprep.subr.mxu0 0.0
    %2642 = vmatpush1.msra.mxu0 0.0
    %2643 = vmatprep.subr.mxu0 0.0
    %2644 = vmatpush1.msra.mxu0 0.0
    %2645 = vmatprep.subr.mxu0 0.0
    %2646 = vmatpush1.msra.mxu0 0.0
    %2647 = vmatprep.subr.mxu0 0.0
    %2648 = vmatpush1.msra.mxu0 0.0
    %2649 = vmatprep.subr.mxu0 0.0
    %2650 = vmatpush1.msra.mxu0 0.0
    %2651 = vmatprep.subr.mxu0 0.0
    %2652 = vmatpush1.msra.mxu0 0.0
    %2653 = vmatprep.subr.mxu0 0.0
    %2654 = vmatpush1.msra.mxu0 0.0
    %2655 = vmatprep.subr.mxu0 0.0
    %2656 = vmatpush1.msra.mxu0 0.0
    %2657 = vmatprep.subr.mxu0 0.0
    %2658 = vmatpush1.msra.mxu0 0.0
    %2659 = vmatprep.subr.mxu0 0.0
    %2660 = vmatpush1.msra.mxu0 0.0
    %2661 = vmatprep.subr.mxu0 0.0
    %2662 = vmatpush1.msra.mxu0 0.0
    %2663 = vmatprep.subr.mxu0 0.0
    %2664 = vmatpush1.msra.mxu0 0.0
    %2665 = vmatprep.subr.mxu0 0.0
    %2666 = vmatpush1.msra.mxu0 0.0
    %2667 = vmatprep.subr.mxu0 0.0
    %2668 = vmatpush1.msra.mxu0 0.0
    %2669 = vmatprep.subr.mxu0 0.0
    %2670 = vmatpush1.msra.mxu0 0.0
    %2671 = vmatprep.subr.mxu0 0.0
    %2672 = vmatpush1.msra.mxu0 %v2550
    %2673 = vmatprep.subr.mxu0 0.0
    %2674 = vmatpush2.msra.mxu0 0.0
    %2675 = vmatprep.subr.mxu0 0.0
    %2676 = vmatpush2.msra.mxu0 0.0
    %2677 = vmatprep.subr.mxu0 0.0
    %2678 = vmatpush2.msra.mxu0 0.0
    %2679 = vmatprep.subr.mxu0 0.0
    %2680 = vmatpush2.msra.mxu0 0.0
    %2681 = vmatprep.subr.mxu0 0.0
    %2682 = vmatpush2.msra.mxu0 0.0
    %2683 = vmatprep.subr.mxu0 0.0
    %2684 = vmatpush2.msra.mxu0 0.0
    %2685 = vmatprep.subr.mxu0 0.0
    %2686 = vmatpush2.msra.mxu0 0.0
    %2687 = vmatprep.subr.mxu0 0.0
    %2688 = vmatpush2.msra.mxu0 0.0
    %2689 = vmatprep.subr.mxu0 0.0
    %2690 = vmatpush2.msra.mxu0 0.0
    %2691 = vmatprep.subr.mxu0 0.0
    %2692 = vmatpush2.msra.mxu0 0.0
    %2693 = vmatprep.subr.mxu0 0.0
    %2694 = vmatpush2.msra.mxu0 0.0
    %2695 = vmatprep.subr.mxu0 0.0
    %2696 = vmatpush2.msra.mxu0 0.0
    %2697 = vmatprep.subr.mxu0 0.0
    %2698 = vmatpush2.msra.mxu0 0.0
    %2699 = vmatprep.subr.mxu0 0.0
    %2700 = vmatpush2.msra.mxu0 0.0
    %2701 = vmatprep.subr.mxu0 0.0
    %2702 = vmatpush2.msra.mxu0 0.0
    %2703 = vmatprep.subr.mxu0 0.0
    %2704 = vmatpush2.msra.mxu0 0.0
    %2705 = vmatprep.mubr.f32.mxu0 0.0
    %2706 = vmatmul.mubr.f32.gmra.mxu0 %v2535
    %v2707 = vpop.f32.mrf.mxu0
    %v2708 = vadd.f32 0.0, %v2707
    %v2709 = vpop.f32.mrf.mxu0
    %2710 = vmatprep.mubr.f32.mxu0 0.0
    %2711 = vmatmul.mubr.f32.gmra.mxu0 %v2538
    %v2712 = vpop.f32.mrf.mxu0
    %v2713 = vadd.f32 0.0, %v2712
    %v2714 = vpop.f32.mrf.mxu0
    %2715 = vmatprep.mubr.f32.mxu0 0.0
    %2716 = vmatmul.mubr.f32.gmra.mxu0 %v2541
    %v2717 = vpop.f32.mrf.mxu0
    %v2718 = vadd.f32 0.0, %v2717
    %v2719 = vpop.f32.mrf.mxu0
    %2720 = vmatprep.mubr.f32.mxu0 0.0
    %2721 = vmatmul.mubr.f32.gmra.mxu0 %v2544
    %v2722 = vpop.f32.mrf.mxu0
    %v2723 = vadd.f32 0.0, %v2722
    %v2724 = vpop.f32.mrf.mxu0
    %2725 = vdwg.mxu0
    %v2726 = vadd.f32 %v2514, %v2619
    %v2727 = vadd.f32 %v2515, %v2621
    %v2728 = vadd.f32 %v2516, %v2708
    %v2729 = vadd.f32 %v2517, %v2625
    %v2730 = vadd.f32 %v2518, %v2627
    %v2731 = vadd.f32 %v2519, %v2713
    %v2732 = vadd.f32 %v2520, %v2631
    %v2733 = vadd.f32 %v2521, %v2633
    %v2734 = vadd.f32 %v2522, %v2718
    %v2735 = vadd.f32 %v2523, %v2637
    %v2736 = vadd.f32 %v2524, %v2639
    %v2737 = vadd.f32 %v2525, %v2723
    %v2738 = vmul.f32 %v27, 25.132742
    %v2739 = vmul.f32 %v28, 25.132742
    %v2740 = vand.u32 2147483647, %v2738
    %vm2741 = vcmp.le.f32.partialorder %v2740, 0.7853982
    %vm2742 = vcmp.lt.s32.totalorder %v2738, 0
    %v2743 = vand.u32 %v2738, 2139095040
    %v2744 = vshrl.u32 %v2743, 23
    %v2745 = vsub.s32 %v2744, 127
    %v2746 = vand.u32 2147483647, %v2738
    %v2747 = vand.u32 %v2746, 8388607
    %v2748 = vor.u32 %v2747, 8388608
    %v2749 = vsub.s32 0, %v2748
    %v2750 = vadd.s32 %v2745, 1
    %vm2751 = vcmp.gt.s32.totalorder %v2750, 0
    %v2752 = vsel %vm2751, %v2750, 0
    %v2753 = vshrl.u32 %v2752, 5
    %v2754 = vand.u32 %v2752, 31
    %v2755 = vsub.s32 32, %v2754
    %v2756 = vshrl.u32 683565275, %v2755
    %v2757 = vshll.u32 683565275, %v2754
    %v2758 = vshrl.u32 2475754826, %v2755
    %v2759 = vor.u32 %v2757, %v2758
    %v2760 = vshll.u32 2475754826, %v2754
    %v2761 = vshrl.u32 2131351028, %v2755
    %v2762 = vor.u32 %v2760, %v2761
    %v2763 = vshll.u32 2131351028, %v2754
    %v2764 = vshrl.u32 2102212464, %v2755
    %v2765 = vor.u32 %v2763, %v2764
    %v2766 = vshll.u32 2102212464, %v2754
    %v2767 = vshrl.u32 920167782, %v2755
    %v2768 = vor.u32 %v2766, %v2767
    %v2769 = vshll.u32 920167782, %v2754
    %v2770 = vshrl.u32 1326507024, %v2755
    %v2771 = vor.u32 %v2769, %v2770
    %vm2772 = vcmp.lt.s32.totalorder %v2753, 1
    %vm2773 = vcmp.lt.s32.totalorder %v2753, 2
    %vm2774 = vcmp.lt.s32.totalorder %v2753, 3
    %vm2775 = vcmp.lt.s32.totalorder %v2753, 4
    %v2776 = vsel %vm2772, %v2756, %v2759
    %v2777 = vsel %vm2775, %v2765, 2102212464
    %v2778 = vsel %vm2774, %v2762, %v2777
    %v2779 = vsel %vm2773, %v2776, %v2778
    %v2780 = vsel %vm2772, %v2759, %v2762
    %v2781 = vsel %vm2775, %v2768, 920167782
    %v2782 = vsel %vm2774, %v2765, %v2781
    %v2783 = vsel %vm2773, %v2780, %v2782
    %v2784 = vsel %vm2772, %v2762, %v2765
    %v2785 = vsel %vm2775, %v2771, 1326507024
    %v2786 = vsel %vm2774, %v2768, %v2785
    %v2787 = vsel %vm2773, %v2784, %v2786
    %v2788 = vshll.u32 %v2748, 8
    %v2789 = vmul.u32.u64.compose %v2788, %v2787
    %v2790 = vextract.low.u32 %v2789
    %v2791 = vextract.high.u32 %v2789
    %v2792 = vmul.u32.u64.compose %v2788, %v2783
    %v2793 = vextract.low.u32 %v2792
    %v2794 = vextract.high.u32 %v2792
    %v2795 = vmul.u32 %v2788, %v2779
    %v2796 = vadd.s32 %v2791, %v2793
    %vm2797 = vc.u32 %v2791, %v2793
    %v2798 = vadd.s32 %v2794, 1
    %v2799 = vsel %vm2797, %v2798, %v2794
    %v2800 = vadd.s32 %v2795, %v2799
    %v2801 = vadd.s32 %v2800, 536870912
    %v2802 = vshrl.u32 %v2801, 30
    %v2803 = vshll.u32 %v2802, 30
    %v2804 = vsub.s32 %v2800, %v2803
    %vm2805 = vcmp.lt.s32.totalorder %v2804, 0
    %v2806 = vsub.s32 0, %v2804
    %v2807 = vsel %vm2805, %v2806, %v2804
    %v2808 = vclz %v2807
    %v2809 = vsub.s32 %v2808, 2
    %vm2810 = vcmp.gt.s32.totalorder 0, %v2809
    %v2811 = vsel %vm2810, 0, %v2809
    %v2812 = vsub.s32 32, %v2811
    %v2813 = vshll.u32 %v2804, %v2811
    %v2814 = vshrl.u32 %v2796, %v2812
    %v2815 = vor.u32 %v2813, %v2814
    %v2816 = vsub.s32 4294967266, %v2811
    %v2817 = vadd.s32 %v2816, 127
    %v2818 = vshll.u32 %v2817, 23
    %v2819 = vor.u32 4788187, %v2818
    %v2820 = vand.u32 2147483647, %v2819
    %v2822 = vcvt.s32.f32 %v2815
    %v2823 = vmul.f32 %v2822, %v2820
    %v2824 = vxor.u32 %v2823, 2147483648
    %v2825 = vsel %vm2742, %v2824, %v2823
    %v2826 = vsub.s32 4, %v2802
    %v2827 = vsel %vm2742, %v2826, %v2802
    %v2828 = vsel %vm2741, %v2738, %v2825
    %v2829 = vsel %vm2741, 0, %v2827
    %v2830 = vcosq.f32.pop %v2828
    %v2831 = vsinq.f32.pop %v2828
    %vm2832 = vweird.f32 %v2738
    %v2833 = vadd.s32 %v2829, 3
    %v2834 = vand.u32 %v2833, 3
    %vm2835 = vcmp.lt.s32.totalorder %v2834, 2
    %vm2836 = vcmp.eq.s32.totalorder %v2834, 0
    %v2837 = vxor.u32 %v2831, 2147483648
    %v2838 = vsel %vm2836, %v2830, %v2837
    %vm2839 = vcmp.eq.s32.totalorder %v2834, 2
    %v2840 = vxor.u32 %v2830, 2147483648
    %v2841 = vsel %vm2839, %v2840, %v2831
    %v2842 = vsel %vm2835, %v2838, %v2841
    %v2843 = vsel %vm2832, nan, %v2842
    %v2844 = vand.u32 2147483647, %v2739
    %vm2845 = vcmp.le.f32.partialorder %v2844, 0.7853982
    %vm2846 = vcmp.lt.s32.totalorder %v2739, 0
    %v2847 = vand.u32 %v2739, 2139095040
    %v2848 = vshrl.u32 %v2847, 23
    %v2849 = vsub.s32 %v2848, 127
    %v2850 = vand.u32 2147483647, %v2739
    %v2851 = vand.u32 %v2850, 8388607
    %v2852 = vor.u32 %v2851, 8388608
    %v2853 = vsub.s32 0, %v2852
    %v2854 = vadd.s32 %v2849, 1
    %vm2855 = vcmp.gt.s32.totalorder %v2854, 0
    %v2856 = vsel %vm2855, %v2854, 0
    %v2857 = vshrl.u32 %v2856, 5
    %v2858 = vand.u32 %v2856, 31
    %v2859 = vsub.s32 32, %v2858
    %v2860 = vshrl.u32 683565275, %v2859
    %v2861 = vshll.u32 683565275, %v2858
    %v2862 = vshrl.u32 2475754826, %v2859
    %v2863 = vor.u32 %v2861, %v2862
    %v2864 = vshll.u32 2475754826, %v2858
    %v2865 = vshrl.u32 2131351028, %v2859
    %v2866 = vor.u32 %v2864, %v2865
    %v2867 = vshll.u32 2131351028, %v2858
    %v2868 = vshrl.u32 2102212464, %v2859
    %v2869 = vor.u32 %v2867, %v2868
    %v2870 = vshll.u32 2102212464, %v2858
    %v2871 = vshrl.u32 920167782, %v2859
    %v2872 = vor.u32 %v2870, %v2871
    %v2873 = vshll.u32 920167782, %v2858
    %v2874 = vshrl.u32 1326507024, %v2859
    %v2875 = vor.u32 %v2873, %v2874
    %vm2876 = vcmp.lt.s32.totalorder %v2857, 1
    %vm2877 = vcmp.lt.s32.totalorder %v2857, 2
    %vm2878 = vcmp.lt.s32.totalorder %v2857, 3
    %vm2879 = vcmp.lt.s32.totalorder %v2857, 4
    %v2880 = vsel %vm2876, %v2860, %v2863
    %v2881 = vsel %vm2879, %v2869, 2102212464
    %v2882 = vsel %vm2878, %v2866, %v2881
    %v2883 = vsel %vm2877, %v2880, %v2882
    %v2884 = vsel %vm2876, %v2863, %v2866
    %v2885 = vsel %vm2879, %v2872, 920167782
    %v2886 = vsel %vm2878, %v2869, %v2885
    %v2887 = vsel %vm2877, %v2884, %v2886
    %v2888 = vsel %vm2876, %v2866, %v2869
    %v2889 = vsel %vm2879, %v2875, 1326507024
    %v2890 = vsel %vm2878, %v2872, %v2889
    %v2891 = vsel %vm2877, %v2888, %v2890
    %v2892 = vshll.u32 %v2852, 8
    %v2893 = vmul.u32.u64.compose %v2892, %v2891
    %v2894 = vextract.low.u32 %v2893
    %v2895 = vextract.high.u32 %v2893
    %v2896 = vmul.u32.u64.compose %v2892, %v2887
    %v2897 = vextract.low.u32 %v2896
    %v2898 = vextract.high.u32 %v2896
    %v2899 = vmul.u32 %v2892, %v2883
    %v2900 = vadd.s32 %v2895, %v2897
    %vm2901 = vc.u32 %v2895, %v2897
    %v2902 = vadd.s32 %v2898, 1
    %v2903 = vsel %vm2901, %v2902, %v2898
    %v2904 = vadd.s32 %v2899, %v2903
    %v2905 = vadd.s32 %v2904, 536870912
    %v2906 = vshrl.u32 %v2905, 30
    %v2907 = vshll.u32 %v2906, 30
    %v2908 = vsub.s32 %v2904, %v2907
    %vm2909 = vcmp.lt.s32.totalorder %v2908, 0
    %v2910 = vsub.s32 0, %v2908
    %v2911 = vsel %vm2909, %v2910, %v2908
    %v2912 = vclz %v2911
    %v2913 = vsub.s32 %v2912, 2
    %vm2914 = vcmp.gt.s32.totalorder 0, %v2913
    %v2915 = vsel %vm2914, 0, %v2913
    %v2916 = vsub.s32 32, %v2915
    %v2917 = vshll.u32 %v2908, %v2915
    %v2918 = vshrl.u32 %v2900, %v2916
    %v2919 = vor.u32 %v2917, %v2918
    %v2920 = vsub.s32 4294967266, %v2915
    %v2921 = vadd.s32 %v2920, 127
    %v2922 = vshll.u32 %v2921, 23
    %v2923 = vor.u32 4788187, %v2922
    %v2924 = vand.u32 2147483647, %v2923
    %v2926 = vcvt.s32.f32 %v2919
    %v2927 = vmul.f32 %v2926, %v2924
    %v2928 = vxor.u32 %v2927, 2147483648
    %v2929 = vsel %vm2846, %v2928, %v2927
    %v2930 = vsub.s32 4, %v2906
    %v2931 = vsel %vm2846, %v2930, %v2906
    %v2932 = vsel %vm2845, %v2739, %v2929
    %v2933 = vsel %vm2845, 0, %v2931
    %v2934 = vcosq.f32.pop %v2932
    %v2935 = vsinq.f32.pop %v2932
    %vm2936 = vweird.f32 %v2739
    %v2937 = vadd.s32 %v2933, 3
    %v2938 = vand.u32 %v2937, 3
    %vm2939 = vcmp.lt.s32.totalorder %v2938, 2
    %vm2940 = vcmp.eq.s32.totalorder %v2938, 0
    %v2941 = vxor.u32 %v2935, 2147483648
    %v2942 = vsel %vm2940, %v2934, %v2941
    %vm2943 = vcmp.eq.s32.totalorder %v2938, 2
    %v2944 = vxor.u32 %v2934, 2147483648
    %v2945 = vsel %vm2943, %v2944, %v2935
    %v2946 = vsel %vm2939, %v2942, %v2945
    %v2947 = vsel %vm2936, nan, %v2946
    %v2948 = vand.u32 2147483647, %v2738
    %vm2949 = vcmp.le.f32.partialorder %v2948, 0.7853982
    %vm2950 = vcmp.lt.s32.totalorder %v2738, 0
    %v2951 = vand.u32 %v2738, 2139095040
    %v2952 = vshrl.u32 %v2951, 23
    %v2953 = vsub.s32 %v2952, 127
    %v2954 = vand.u32 2147483647, %v2738
    %v2955 = vand.u32 %v2954, 8388607
    %v2956 = vor.u32 %v2955, 8388608
    %v2957 = vsub.s32 0, %v2956
    %v2958 = vadd.s32 %v2953, 1
    %vm2959 = vcmp.gt.s32.totalorder %v2958, 0
    %v2960 = vsel %vm2959, %v2958, 0
    %v2961 = vshrl.u32 %v2960, 5
    %v2962 = vand.u32 %v2960, 31
    %v2963 = vsub.s32 32, %v2962
    %v2964 = vshrl.u32 683565275, %v2963
    %v2965 = vshll.u32 683565275, %v2962
    %v2966 = vshrl.u32 2475754826, %v2963
    %v2967 = vor.u32 %v2965, %v2966
    %v2968 = vshll.u32 2475754826, %v2962
    %v2969 = vshrl.u32 2131351028, %v2963
    %v2970 = vor.u32 %v2968, %v2969
    %v2971 = vshll.u32 2131351028, %v2962
    %v2972 = vshrl.u32 2102212464, %v2963
    %v2973 = vor.u32 %v2971, %v2972
    %v2974 = vshll.u32 2102212464, %v2962
    %v2975 = vshrl.u32 920167782, %v2963
    %v2976 = vor.u32 %v2974, %v2975
    %v2977 = vshll.u32 920167782, %v2962
    %v2978 = vshrl.u32 1326507024, %v2963
    %v2979 = vor.u32 %v2977, %v2978
    %vm2980 = vcmp.lt.s32.totalorder %v2961, 1
    %vm2981 = vcmp.lt.s32.totalorder %v2961, 2
    %vm2982 = vcmp.lt.s32.totalorder %v2961, 3
    %vm2983 = vcmp.lt.s32.totalorder %v2961, 4
    %v2984 = vsel %vm2980, %v2964, %v2967
    %v2985 = vsel %vm2983, %v2973, 2102212464
    %v2986 = vsel %vm2982, %v2970, %v2985
    %v2987 = vsel %vm2981, %v2984, %v2986
    %v2988 = vsel %vm2980, %v2967, %v2970
    %v2989 = vsel %vm2983, %v2976, 920167782
    %v2990 = vsel %vm2982, %v2973, %v2989
    %v2991 = vsel %vm2981, %v2988, %v2990
    %v2992 = vsel %vm2980, %v2970, %v2973
    %v2993 = vsel %vm2983, %v2979, 1326507024
    %v2994 = vsel %vm2982, %v2976, %v2993
    %v2995 = vsel %vm2981, %v2992, %v2994
    %v2996 = vshll.u32 %v2956, 8
    %v2997 = vmul.u32.u64.compose %v2996, %v2995
    %v2998 = vextract.low.u32 %v2997
    %v2999 = vextract.high.u32 %v2997
    %v3000 = vmul.u32.u64.compose %v2996, %v2991
    %v3001 = vextract.low.u32 %v3000
    %v3002 = vextract.high.u32 %v3000
    %v3003 = vmul.u32 %v2996, %v2987
    %v3004 = vadd.s32 %v2999, %v3001
    %vm3005 = vc.u32 %v2999, %v3001
    %v3006 = vadd.s32 %v3002, 1
    %v3007 = vsel %vm3005, %v3006, %v3002
    %v3008 = vadd.s32 %v3003, %v3007
    %v3009 = vadd.s32 %v3008, 536870912
    %v3010 = vshrl.u32 %v3009, 30
    %v3011 = vshll.u32 %v3010, 30
    %v3012 = vsub.s32 %v3008, %v3011
    %vm3013 = vcmp.lt.s32.totalorder %v3012, 0
    %v3014 = vsub.s32 0, %v3012
    %v3015 = vsel %vm3013, %v3014, %v3012
    %v3016 = vclz %v3015
    %v3017 = vsub.s32 %v3016, 2
    %vm3018 = vcmp.gt.s32.totalorder 0, %v3017
    %v3019 = vsel %vm3018, 0, %v3017
    %v3020 = vsub.s32 32, %v3019
    %v3021 = vshll.u32 %v3012, %v3019
    %v3022 = vshrl.u32 %v3004, %v3020
    %v3023 = vor.u32 %v3021, %v3022
    %v3024 = vsub.s32 4294967266, %v3019
    %v3025 = vadd.s32 %v3024, 127
    %v3026 = vshll.u32 %v3025, 23
    %v3027 = vor.u32 4788187, %v3026
    %v3028 = vand.u32 2147483647, %v3027
    %v3030 = vcvt.s32.f32 %v3023
    %v3031 = vmul.f32 %v3030, %v3028
    %v3032 = vxor.u32 %v3031, 2147483648
    %v3033 = vsel %vm2950, %v3032, %v3031
    %v3034 = vsub.s32 4, %v3010
    %v3035 = vsel %vm2950, %v3034, %v3010
    %v3036 = vsel %vm2949, %v2738, %v3033
    %v3037 = vsel %vm2949, 0, %v3035
    %v3038 = vcosq.f32.pop %v3036
    %v3039 = vsinq.f32.pop %v3036
    %vm3040 = vweird.f32 %v2738
    %v3041 = vand.u32 %v3037, 3
    %vm3042 = vcmp.lt.s32.totalorder %v3041, 2
    %vm3043 = vcmp.eq.s32.totalorder %v3041, 0
    %v3044 = vxor.u32 %v3039, 2147483648
    %v3045 = vsel %vm3043, %v3038, %v3044
    %vm3046 = vcmp.eq.s32.totalorder %v3041, 2
    %v3047 = vxor.u32 %v3038, 2147483648
    %v3048 = vsel %vm3046, %v3047, %v3039
    %v3049 = vsel %vm3042, %v3045, %v3048
    %v3050 = vsel %vm3040, nan, %v3049
    %v3051 = vand.u32 2147483647, %v2739
    %vm3052 = vcmp.le.f32.partialorder %v3051, 0.7853982
    %vm3053 = vcmp.lt.s32.totalorder %v2739, 0
    %v3054 = vand.u32 %v2739, 2139095040
    %v3055 = vshrl.u32 %v3054, 23
    %v3056 = vsub.s32 %v3055, 127
    %v3057 = vand.u32 2147483647, %v2739
    %v3058 = vand.u32 %v3057, 8388607
    %v3059 = vor.u32 %v3058, 8388608
    %v3060 = vsub.s32 0, %v3059
    %v3061 = vadd.s32 %v3056, 1
    %vm3062 = vcmp.gt.s32.totalorder %v3061, 0
    %v3063 = vsel %vm3062, %v3061, 0
    %v3064 = vshrl.u32 %v3063, 5
    %v3065 = vand.u32 %v3063, 31
    %v3066 = vsub.s32 32, %v3065
    %v3067 = vshrl.u32 683565275, %v3066
    %v3068 = vshll.u32 683565275, %v3065
    %v3069 = vshrl.u32 2475754826, %v3066
    %v3070 = vor.u32 %v3068, %v3069
    %v3071 = vshll.u32 2475754826, %v3065
    %v3072 = vshrl.u32 2131351028, %v3066
    %v3073 = vor.u32 %v3071, %v3072
    %v3074 = vshll.u32 2131351028, %v3065
    %v3075 = vshrl.u32 2102212464, %v3066
    %v3076 = vor.u32 %v3074, %v3075
    %v3077 = vshll.u32 2102212464, %v3065
    %v3078 = vshrl.u32 920167782, %v3066
    %v3079 = vor.u32 %v3077, %v3078
    %v3080 = vshll.u32 920167782, %v3065
    %v3081 = vshrl.u32 1326507024, %v3066
    %v3082 = vor.u32 %v3080, %v3081
    %vm3083 = vcmp.lt.s32.totalorder %v3064, 1
    %vm3084 = vcmp.lt.s32.totalorder %v3064, 2
    %vm3085 = vcmp.lt.s32.totalorder %v3064, 3
    %vm3086 = vcmp.lt.s32.totalorder %v3064, 4
    %v3087 = vsel %vm3083, %v3067, %v3070
    %v3088 = vsel %vm3086, %v3076, 2102212464
    %v3089 = vsel %vm3085, %v3073, %v3088
    %v3090 = vsel %vm3084, %v3087, %v3089
    %v3091 = vsel %vm3083, %v3070, %v3073
    %v3092 = vsel %vm3086, %v3079, 920167782
    %v3093 = vsel %vm3085, %v3076, %v3092
    %v3094 = vsel %vm3084, %v3091, %v3093
    %v3095 = vsel %vm3083, %v3073, %v3076
    %v3096 = vsel %vm3086, %v3082, 1326507024
    %v3097 = vsel %vm3085, %v3079, %v3096
    %v3098 = vsel %vm3084, %v3095, %v3097
    %v3099 = vshll.u32 %v3059, 8
    %v3100 = vmul.u32.u64.compose %v3099, %v3098
    %v3101 = vextract.low.u32 %v3100
    %v3102 = vextract.high.u32 %v3100
    %v3103 = vmul.u32.u64.compose %v3099, %v3094
    %v3104 = vextract.low.u32 %v3103
    %v3105 = vextract.high.u32 %v3103
    %v3106 = vmul.u32 %v3099, %v3090
    %v3107 = vadd.s32 %v3102, %v3104
    %vm3108 = vc.u32 %v3102, %v3104
    %v3109 = vadd.s32 %v3105, 1
    %v3110 = vsel %vm3108, %v3109, %v3105
    %v3111 = vadd.s32 %v3106, %v3110
    %v3112 = vadd.s32 %v3111, 536870912
    %v3113 = vshrl.u32 %v3112, 30
    %v3114 = vshll.u32 %v3113, 30
    %v3115 = vsub.s32 %v3111, %v3114
    %vm3116 = vcmp.lt.s32.totalorder %v3115, 0
    %v3117 = vsub.s32 0, %v3115
    %v3118 = vsel %vm3116, %v3117, %v3115
    %v3119 = vclz %v3118
    %v3120 = vsub.s32 %v3119, 2
    %vm3121 = vcmp.gt.s32.totalorder 0, %v3120
    %v3122 = vsel %vm3121, 0, %v3120
    %v3123 = vsub.s32 32, %v3122
    %v3124 = vshll.u32 %v3115, %v3122
    %v3125 = vshrl.u32 %v3107, %v3123
    %v3126 = vor.u32 %v3124, %v3125
    %v3127 = vsub.s32 4294967266, %v3122
    %v3128 = vadd.s32 %v3127, 127
    %v3129 = vshll.u32 %v3128, 23
    %v3130 = vor.u32 4788187, %v3129
    %v3131 = vand.u32 2147483647, %v3130
    %v3133 = vcvt.s32.f32 %v3126
    %v3134 = vmul.f32 %v3133, %v3131
    %v3135 = vxor.u32 %v3134, 2147483648
    %v3136 = vsel %vm3053, %v3135, %v3134
    %v3137 = vsub.s32 4, %v3113
    %v3138 = vsel %vm3053, %v3137, %v3113
    %v3139 = vsel %vm3052, %v2739, %v3136
    %v3140 = vsel %vm3052, 0, %v3138
    %v3141 = vcosq.f32.pop %v3139
    %v3142 = vsinq.f32.pop %v3139
    %vm3143 = vweird.f32 %v2739
    %v3144 = vand.u32 %v3140, 3
    %vm3145 = vcmp.lt.s32.totalorder %v3144, 2
    %vm3146 = vcmp.eq.s32.totalorder %v3144, 0
    %v3147 = vxor.u32 %v3142, 2147483648
    %v3148 = vsel %vm3146, %v3141, %v3147
    %vm3149 = vcmp.eq.s32.totalorder %v3144, 2
    %v3150 = vxor.u32 %v3141, 2147483648
    %v3151 = vsel %vm3149, %v3150, %v3142
    %v3152 = vsel %vm3145, %v3148, %v3151
    %v3153 = vsel %vm3143, nan, %v3152
    %s3154 = scalar_lea.vmem %s1, 224
    %v3155 = vld [vmem:[%s3154] sm:$0xff]
    %v3156 = vld [vmem:[%s3154 + $0x8] sm:$0xff]
    %v3157 = vld [vmem:[%s3154 + $0x10] sm:$0xff]
    %v3158 = vld [vmem:[%s3154 + $0x18] sm:$0xff]
    %v3161 = vcombine.high %v2843, %v2843
    %v3163 = vsel %vm457, %v3155, 0
    %v3166 = vsel %vm457, %v3156, 0
    %v3169 = vsel %vm457, %v3157, 0
    %v3172 = vsel %vm457, %v3158, 0
    %v3174 = vsel %vm470, %v2843, 0
    %v3176 = vsel %vm470, %v3161, 0
    %v3178 = vsel %vm470, %v2947, 0
    %3180 = vmatprep.subr.mxu0 0.0
    %3181 = vmatpush1.msra.mxu0 0.0
    %3182 = vmatprep.subr.mxu0 0.0
    %3183 = vmatpush1.msra.mxu0 0.0
    %3184 = vmatprep.subr.mxu0 0.0
    %3185 = vmatpush1.msra.mxu0 0.0
    %3186 = vmatprep.subr.mxu0 0.0
    %3187 = vmatpush1.msra.mxu0 0.0
    %3188 = vmatprep.subr.mxu0 0.0
    %3189 = vmatpush1.msra.mxu0 0.0
    %3190 = vmatprep.subr.mxu0 0.0
    %3191 = vmatpush1.msra.mxu0 0.0
    %3192 = vmatprep.subr.mxu0 0.0
    %3193 = vmatpush1.msra.mxu0 0.0
    %3194 = vmatprep.subr.mxu0 0.0
    %3195 = vmatpush1.msra.mxu0 0.0
    %3196 = vmatprep.subr.mxu0 0.0
    %3197 = vmatpush1.msra.mxu0 0.0
    %3198 = vmatprep.subr.mxu0 0.0
    %3199 = vmatpush1.msra.mxu0 0.0
    %3200 = vmatprep.subr.mxu0 0.0
    %3201 = vmatpush1.msra.mxu0 0.0
    %3202 = vmatprep.subr.mxu0 0.0
    %3203 = vmatpush1.msra.mxu0 0.0
    %3204 = vmatprep.subr.mxu0 0.0
    %3205 = vmatpush1.msra.mxu0 0.0
    %3206 = vmatprep.subr.mxu0 0.0
    %3207 = vmatpush1.msra.mxu0 0.0
    %3208 = vmatprep.subr.mxu0 0.0
    %3209 = vmatpush1.msra.mxu0 0.0
    %3210 = vmatprep.subr.mxu0 %v3176
    %3211 = vmatpush1.msra.mxu0 %v3174
    %3212 = vmatprep.subr.mxu0 0.0
    %3213 = vmatpush2.msra.mxu0 0.0
    %3214 = vmatprep.subr.mxu0 0.0
    %3215 = vmatpush2.msra.mxu0 0.0
    %3216 = vmatprep.subr.mxu0 0.0
    %3217 = vmatpush2.msra.mxu0 0.0
    %3218 = vmatprep.subr.mxu0 0.0
    %3219 = vmatpush2.msra.mxu0 0.0
    %3220 = vmatprep.subr.mxu0 0.0
    %3221 = vmatpush2.msra.mxu0 0.0
    %3222 = vmatprep.subr.mxu0 0.0
    %3223 = vmatpush2.msra.mxu0 0.0
    %3224 = vmatprep.subr.mxu0 0.0
    %3225 = vmatpush2.msra.mxu0 0.0
    %3226 = vmatprep.subr.mxu0 0.0
    %3227 = vmatpush2.msra.mxu0 0.0
    %3228 = vmatprep.subr.mxu0 0.0
    %3229 = vmatpush2.msra.mxu0 0.0
    %3230 = vmatprep.subr.mxu0 0.0
    %3231 = vmatpush2.msra.mxu0 0.0
    %3232 = vmatprep.subr.mxu0 0.0
    %3233 = vmatpush2.msra.mxu0 0.0
    %3234 = vmatprep.subr.mxu0 0.0
    %3235 = vmatpush2.msra.mxu0 0.0
    %3236 = vmatprep.subr.mxu0 0.0
    %3237 = vmatpush2.msra.mxu0 0.0
    %3238 = vmatprep.subr.mxu0 0.0
    %3239 = vmatpush2.msra.mxu0 0.0
    %3240 = vmatprep.subr.mxu0 0.0
    %3241 = vmatpush2.msra.mxu0 0.0
    %3242 = vmatprep.subr.mxu0 0.0
    %3243 = vmatpush2.msra.mxu0 0.0
    %3244 = vmatprep.mubr.f32.mxu0 0.0
    %3245 = vmatmul.mubr.f32.gmra.mxu0 %v3163
    %v3246 = vpop.f32.mrf.mxu0
    %v3247 = vadd.f32 0.0, %v3246
    %v3248 = vpop.f32.mrf.mxu0
    %v3249 = vadd.f32 0.0, %v3248
    %3250 = vmatprep.mubr.f32.mxu0 0.0
    %3251 = vmatmul.mubr.f32.gmra.mxu0 %v3166
    %v3252 = vpop.f32.mrf.mxu0
    %v3253 = vadd.f32 0.0, %v3252
    %v3254 = vpop.f32.mrf.mxu0
    %v3255 = vadd.f32 0.0, %v3254
    %3256 = vmatprep.mubr.f32.mxu0 0.0
    %3257 = vmatmul.mubr.f32.gmra.mxu0 %v3169
    %v3258 = vpop.f32.mrf.mxu0
    %v3259 = vadd.f32 0.0, %v3258
    %v3260 = vpop.f32.mrf.mxu0
    %v3261 = vadd.f32 0.0, %v3260
    %3262 = vmatprep.mubr.f32.mxu0 0.0
    %3263 = vmatmul.mubr.f32.gmra.mxu0 %v3172
    %v3264 = vpop.f32.mrf.mxu0
    %v3265 = vadd.f32 0.0, %v3264
    %v3266 = vpop.f32.mrf.mxu0
    %v3267 = vadd.f32 0.0, %v3266
    %3268 = vdwg.mxu0
    %3269 = vmatprep.subr.mxu0 0.0
    %3270 = vmatpush1.msra.mxu0 0.0
    %3271 = vmatprep.subr.mxu0 0.0
    %3272 = vmatpush1.msra.mxu0 0.0
    %3273 = vmatprep.subr.mxu0 0.0
    %3274 = vmatpush1.msra.mxu0 0.0
    %3275 = vmatprep.subr.mxu0 0.0
    %3276 = vmatpush1.msra.mxu0 0.0
    %3277 = vmatprep.subr.mxu0 0.0
    %3278 = vmatpush1.msra.mxu0 0.0
    %3279 = vmatprep.subr.mxu0 0.0
    %3280 = vmatpush1.msra.mxu0 0.0
    %3281 = vmatprep.subr.mxu0 0.0
    %3282 = vmatpush1.msra.mxu0 0.0
    %3283 = vmatprep.subr.mxu0 0.0
    %3284 = vmatpush1.msra.mxu0 0.0
    %3285 = vmatprep.subr.mxu0 0.0
    %3286 = vmatpush1.msra.mxu0 0.0
    %3287 = vmatprep.subr.mxu0 0.0
    %3288 = vmatpush1.msra.mxu0 0.0
    %3289 = vmatprep.subr.mxu0 0.0
    %3290 = vmatpush1.msra.mxu0 0.0
    %3291 = vmatprep.subr.mxu0 0.0
    %3292 = vmatpush1.msra.mxu0 0.0
    %3293 = vmatprep.subr.mxu0 0.0
    %3294 = vmatpush1.msra.mxu0 0.0
    %3295 = vmatprep.subr.mxu0 0.0
    %3296 = vmatpush1.msra.mxu0 0.0
    %3297 = vmatprep.subr.mxu0 0.0
    %3298 = vmatpush1.msra.mxu0 0.0
    %3299 = vmatprep.subr.mxu0 0.0
    %3300 = vmatpush1.msra.mxu0 %v3178
    %3301 = vmatprep.subr.mxu0 0.0
    %3302 = vmatpush2.msra.mxu0 0.0
    %3303 = vmatprep.subr.mxu0 0.0
    %3304 = vmatpush2.msra.mxu0 0.0
    %3305 = vmatprep.subr.mxu0 0.0
    %3306 = vmatpush2.msra.mxu0 0.0
    %3307 = vmatprep.subr.mxu0 0.0
    %3308 = vmatpush2.msra.mxu0 0.0
    %3309 = vmatprep.subr.mxu0 0.0
    %3310 = vmatpush2.msra.mxu0 0.0
    %3311 = vmatprep.subr.mxu0 0.0
    %3312 = vmatpush2.msra.mxu0 0.0
    %3313 = vmatprep.subr.mxu0 0.0
    %3314 = vmatpush2.msra.mxu0 0.0
    %3315 = vmatprep.subr.mxu0 0.0
    %3316 = vmatpush2.msra.mxu0 0.0
    %3317 = vmatprep.subr.mxu0 0.0
    %3318 = vmatpush2.msra.mxu0 0.0
    %3319 = vmatprep.subr.mxu0 0.0
    %3320 = vmatpush2.msra.mxu0 0.0
    %3321 = vmatprep.subr.mxu0 0.0
    %3322 = vmatpush2.msra.mxu0 0.0
    %3323 = vmatprep.subr.mxu0 0.0
    %3324 = vmatpush2.msra.mxu0 0.0
    %3325 = vmatprep.subr.mxu0 0.0
    %3326 = vmatpush2.msra.mxu0 0.0
    %3327 = vmatprep.subr.mxu0 0.0
    %3328 = vmatpush2.msra.mxu0 0.0
    %3329 = vmatprep.subr.mxu0 0.0
    %3330 = vmatpush2.msra.mxu0 0.0
    %3331 = vmatprep.subr.mxu0 0.0
    %3332 = vmatpush2.msra.mxu0 0.0
    %3333 = vmatprep.mubr.f32.mxu0 0.0
    %3334 = vmatmul.mubr.f32.gmra.mxu0 %v3163
    %v3335 = vpop.f32.mrf.mxu0
    %v3336 = vadd.f32 0.0, %v3335
    %v3337 = vpop.f32.mrf.mxu0
    %3338 = vmatprep.mubr.f32.mxu0 0.0
    %3339 = vmatmul.mubr.f32.gmra.mxu0 %v3166
    %v3340 = vpop.f32.mrf.mxu0
    %v3341 = vadd.f32 0.0, %v3340
    %v3342 = vpop.f32.mrf.mxu0
    %3343 = vmatprep.mubr.f32.mxu0 0.0
    %3344 = vmatmul.mubr.f32.gmra.mxu0 %v3169
    %v3345 = vpop.f32.mrf.mxu0
    %v3346 = vadd.f32 0.0, %v3345
    %v3347 = vpop.f32.mrf.mxu0
    %3348 = vmatprep.mubr.f32.mxu0 0.0
    %3349 = vmatmul.mubr.f32.gmra.mxu0 %v3172
    %v3350 = vpop.f32.mrf.mxu0
    %v3351 = vadd.f32 0.0, %v3350
    %v3352 = vpop.f32.mrf.mxu0
    %3353 = vdwg.mxu0
    %v3354 = vadd.f32 %v2726, %v3247
    %v3355 = vadd.f32 %v2727, %v3249
    %v3356 = vadd.f32 %v2728, %v3336
    %v3357 = vadd.f32 %v2729, %v3253
    %v3358 = vadd.f32 %v2730, %v3255
    %v3359 = vadd.f32 %v2731, %v3341
    %v3360 = vadd.f32 %v2732, %v3259
    %v3361 = vadd.f32 %v2733, %v3261
    %v3362 = vadd.f32 %v2734, %v3346
    %v3363 = vadd.f32 %v2735, %v3265
    %v3364 = vadd.f32 %v2736, %v3267
    %v3365 = vadd.f32 %v2737, %v3351
    %s3366 = scalar_lea.vmem %s1, 256
    %v3367 = vld [vmem:[%s3366] sm:$0xff]
    %v3368 = vld [vmem:[%s3366 + $0x8] sm:$0xff]
    %v3369 = vld [vmem:[%s3366 + $0x10] sm:$0xff]
    %v3370 = vld [vmem:[%s3366 + $0x18] sm:$0xff]
    %v3373 = vcombine.high %v3050, %v3050
    %v3375 = vsel %vm457, %v3367, 0
    %v3378 = vsel %vm457, %v3368, 0
    %v3381 = vsel %vm457, %v3369, 0
    %v3384 = vsel %vm457, %v3370, 0
    %v3386 = vsel %vm470, %v3050, 0
    %v3388 = vsel %vm470, %v3373, 0
    %v3390 = vsel %vm470, %v3153, 0
    %3392 = vmatprep.subr.mxu0 0.0
    %3393 = vmatpush1.msra.mxu0 0.0
    %3394 = vmatprep.subr.mxu0 0.0
    %3395 = vmatpush1.msra.mxu0 0.0
    %3396 = vmatprep.subr.mxu0 0.0
    %3397 = vmatpush1.msra.mxu0 0.0
    %3398 = vmatprep.subr.mxu0 0.0
    %3399 = vmatpush1.msra.mxu0 0.0
    %3400 = vmatprep.subr.mxu0 0.0
    %3401 = vmatpush1.msra.mxu0 0.0
    %3402 = vmatprep.subr.mxu0 0.0
    %3403 = vmatpush1.msra.mxu0 0.0
    %3404 = vmatprep.subr.mxu0 0.0
    %3405 = vmatpush1.msra.mxu0 0.0
    %3406 = vmatprep.subr.mxu0 0.0
    %3407 = vmatpush1.msra.mxu0 0.0
    %3408 = vmatprep.subr.mxu0 0.0
    %3409 = vmatpush1.msra.mxu0 0.0
    %3410 = vmatprep.subr.mxu0 0.0
    %3411 = vmatpush1.msra.mxu0 0.0
    %3412 = vmatprep.subr.mxu0 0.0
    %3413 = vmatpush1.msra.mxu0 0.0
    %3414 = vmatprep.subr.mxu0 0.0
    %3415 = vmatpush1.msra.mxu0 0.0
    %3416 = vmatprep.subr.mxu0 0.0
    %3417 = vmatpush1.msra.mxu0 0.0
    %3418 = vmatprep.subr.mxu0 0.0
    %3419 = vmatpush1.msra.mxu0 0.0
    %3420 = vmatprep.subr.mxu0 0.0
    %3421 = vmatpush1.msra.mxu0 0.0
    %3422 = vmatprep.subr.mxu0 %v3388
    %3423 = vmatpush1.msra.mxu0 %v3386
    %3424 = vmatprep.subr.mxu0 0.0
    %3425 = vmatpush2.msra.mxu0 0.0
    %3426 = vmatprep.subr.mxu0 0.0
    %3427 = vmatpush2.msra.mxu0 0.0
    %3428 = vmatprep.subr.mxu0 0.0
    %3429 = vmatpush2.msra.mxu0 0.0
    %3430 = vmatprep.subr.mxu0 0.0
    %3431 = vmatpush2.msra.mxu0 0.0
    %3432 = vmatprep.subr.mxu0 0.0
    %3433 = vmatpush2.msra.mxu0 0.0
    %3434 = vmatprep.subr.mxu0 0.0
    %3435 = vmatpush2.msra.mxu0 0.0
    %3436 = vmatprep.subr.mxu0 0.0
    %3437 = vmatpush2.msra.mxu0 0.0
    %3438 = vmatprep.subr.mxu0 0.0
    %3439 = vmatpush2.msra.mxu0 0.0
    %3440 = vmatprep.subr.mxu0 0.0
    %3441 = vmatpush2.msra.mxu0 0.0
    %3442 = vmatprep.subr.mxu0 0.0
    %3443 = vmatpush2.msra.mxu0 0.0
    %3444 = vmatprep.subr.mxu0 0.0
    %3445 = vmatpush2.msra.mxu0 0.0
    %3446 = vmatprep.subr.mxu0 0.0
    %3447 = vmatpush2.msra.mxu0 0.0
    %3448 = vmatprep.subr.mxu0 0.0
    %3449 = vmatpush2.msra.mxu0 0.0
    %3450 = vmatprep.subr.mxu0 0.0
    %3451 = vmatpush2.msra.mxu0 0.0
    %3452 = vmatprep.subr.mxu0 0.0
    %3453 = vmatpush2.msra.mxu0 0.0
    %3454 = vmatprep.subr.mxu0 0.0
    %3455 = vmatpush2.msra.mxu0 0.0
    %3456 = vmatprep.mubr.f32.mxu0 0.0
    %3457 = vmatmul.mubr.f32.gmra.mxu0 %v3375
    %v3458 = vpop.f32.mrf.mxu0
    %v3459 = vadd.f32 0.0, %v3458
    %v3460 = vpop.f32.mrf.mxu0
    %v3461 = vadd.f32 0.0, %v3460
    %3462 = vmatprep.mubr.f32.mxu0 0.0
    %3463 = vmatmul.mubr.f32.gmra.mxu0 %v3378
    %v3464 = vpop.f32.mrf.mxu0
    %v3465 = vadd.f32 0.0, %v3464
    %v3466 = vpop.f32.mrf.mxu0
    %v3467 = vadd.f32 0.0, %v3466
    %3468 = vmatprep.mubr.f32.mxu0 0.0
    %3469 = vmatmul.mubr.f32.gmra.mxu0 %v3381
    %v3470 = vpop.f32.mrf.mxu0
    %v3471 = vadd.f32 0.0, %v3470
    %v3472 = vpop.f32.mrf.mxu0
    %v3473 = vadd.f32 0.0, %v3472
    %3474 = vmatprep.mubr.f32.mxu0 0.0
    %3475 = vmatmul.mubr.f32.gmra.mxu0 %v3384
    %v3476 = vpop.f32.mrf.mxu0
    %v3477 = vadd.f32 0.0, %v3476
    %v3478 = vpop.f32.mrf.mxu0
    %v3479 = vadd.f32 0.0, %v3478
    %3480 = vdwg.mxu0
    %3481 = vmatprep.subr.mxu0 0.0
    %3482 = vmatpush1.msra.mxu0 0.0
    %3483 = vmatprep.subr.mxu0 0.0
    %3484 = vmatpush1.msra.mxu0 0.0
    %3485 = vmatprep.subr.mxu0 0.0
    %3486 = vmatpush1.msra.mxu0 0.0
    %3487 = vmatprep.subr.mxu0 0.0
    %3488 = vmatpush1.msra.mxu0 0.0
    %3489 = vmatprep.subr.mxu0 0.0
    %3490 = vmatpush1.msra.mxu0 0.0
    %3491 = vmatprep.subr.mxu0 0.0
    %3492 = vmatpush1.msra.mxu0 0.0
    %3493 = vmatprep.subr.mxu0 0.0
    %3494 = vmatpush1.msra.mxu0 0.0
    %3495 = vmatprep.subr.mxu0 0.0
    %3496 = vmatpush1.msra.mxu0 0.0
    %3497 = vmatprep.subr.mxu0 0.0
    %3498 = vmatpush1.msra.mxu0 0.0
    %3499 = vmatprep.subr.mxu0 0.0
    %3500 = vmatpush1.msra.mxu0 0.0
    %3501 = vmatprep.subr.mxu0 0.0
    %3502 = vmatpush1.msra.mxu0 0.0
    %3503 = vmatprep.subr.mxu0 0.0
    %3504 = vmatpush1.msra.mxu0 0.0
    %3505 = vmatprep.subr.mxu0 0.0
    %3506 = vmatpush1.msra.mxu0 0.0
    %3507 = vmatprep.subr.mxu0 0.0
    %3508 = vmatpush1.msra.mxu0 0.0
    %3509 = vmatprep.subr.mxu0 0.0
    %3510 = vmatpush1.msra.mxu0 0.0
    %3511 = vmatprep.subr.mxu0 0.0
    %3512 = vmatpush1.msra.mxu0 %v3390
    %3513 = vmatprep.subr.mxu0 0.0
    %3514 = vmatpush2.msra.mxu0 0.0
    %3515 = vmatprep.subr.mxu0 0.0
    %3516 = vmatpush2.msra.mxu0 0.0
    %3517 = vmatprep.subr.mxu0 0.0
    %3518 = vmatpush2.msra.mxu0 0.0
    %3519 = vmatprep.subr.mxu0 0.0
    %3520 = vmatpush2.msra.mxu0 0.0
    %3521 = vmatprep.subr.mxu0 0.0
    %3522 = vmatpush2.msra.mxu0 0.0
    %3523 = vmatprep.subr.mxu0 0.0
    %3524 = vmatpush2.msra.mxu0 0.0
    %3525 = vmatprep.subr.mxu0 0.0
    %3526 = vmatpush2.msra.mxu0 0.0
    %3527 = vmatprep.subr.mxu0 0.0
    %3528 = vmatpush2.msra.mxu0 0.0
    %3529 = vmatprep.subr.mxu0 0.0
    %3530 = vmatpush2.msra.mxu0 0.0
    %3531 = vmatprep.subr.mxu0 0.0
    %3532 = vmatpush2.msra.mxu0 0.0
    %3533 = vmatprep.subr.mxu0 0.0
    %3534 = vmatpush2.msra.mxu0 0.0
    %3535 = vmatprep.subr.mxu0 0.0
    %3536 = vmatpush2.msra.mxu0 0.0
    %3537 = vmatprep.subr.mxu0 0.0
    %3538 = vmatpush2.msra.mxu0 0.0
    %3539 = vmatprep.subr.mxu0 0.0
    %3540 = vmatpush2.msra.mxu0 0.0
    %3541 = vmatprep.subr.mxu0 0.0
    %3542 = vmatpush2.msra.mxu0 0.0
    %3543 = vmatprep.subr.mxu0 0.0
    %3544 = vmatpush2.msra.mxu0 0.0
    %3545 = vmatprep.mubr.f32.mxu0 0.0
    %3546 = vmatmul.mubr.f32.gmra.mxu0 %v3375
    %v3547 = vpop.f32.mrf.mxu0
    %v3548 = vadd.f32 0.0, %v3547
    %v3549 = vpop.f32.mrf.mxu0
    %3550 = vmatprep.mubr.f32.mxu0 0.0
    %3551 = vmatmul.mubr.f32.gmra.mxu0 %v3378
    %v3552 = vpop.f32.mrf.mxu0
    %v3553 = vadd.f32 0.0, %v3552
    %v3554 = vpop.f32.mrf.mxu0
    %3555 = vmatprep.mubr.f32.mxu0 0.0
    %3556 = vmatmul.mubr.f32.gmra.mxu0 %v3381
    %v3557 = vpop.f32.mrf.mxu0
    %v3558 = vadd.f32 0.0, %v3557
    %v3559 = vpop.f32.mrf.mxu0
    %3560 = vmatprep.mubr.f32.mxu0 0.0
    %3561 = vmatmul.mubr.f32.gmra.mxu0 %v3384
    %v3562 = vpop.f32.mrf.mxu0
    %v3563 = vadd.f32 0.0, %v3562
    %v3564 = vpop.f32.mrf.mxu0
    %3565 = vdwg.mxu0
    %v3566 = vadd.f32 %v3354, %v3459
    %v3567 = vadd.f32 %v3355, %v3461
    %v3568 = vadd.f32 %v3356, %v3548
    %v3569 = vadd.f32 %v3357, %v3465
    %v3570 = vadd.f32 %v3358, %v3467
    %v3571 = vadd.f32 %v3359, %v3553
    %v3572 = vadd.f32 %v3360, %v3471
    %v3573 = vadd.f32 %v3361, %v3473
    %v3574 = vadd.f32 %v3362, %v3558
    %v3575 = vadd.f32 %v3363, %v3477
    %v3576 = vadd.f32 %v3364, %v3479
    %v3577 = vadd.f32 %v3365, %v3563
    %v3578 = vld [vmem:[%s2] sm:$0xff]
    %v3579 = vld [vmem:[%s2 + $0x8] sm:$0xff]
    %v3580 = vld [vmem:[%s2 + $0x10] sm:$0xff]
    %v3581 = vld [vmem:[%s2 + $0x18] sm:$0xff]
    %3583 = vset.pattern.permute.xlu0 0
    %3584 = vperm.xlu0 %3583, %v3578
    %v3585 = vpop.permute.xlu0 %3584
    %3588 = vset.pattern.permute.xlu0 0
    %3589 = vperm.xlu0 %3588, %v3579
    %v3590 = vpop.permute.xlu0 %3589
    %3593 = vset.pattern.permute.xlu0 0
    %3594 = vperm.xlu0 %3593, %v3580
    %v3595 = vpop.permute.xlu0 %3594
    %3598 = vset.pattern.permute.xlu0 0
    %3599 = vperm.xlu0 %3598, %v3581
    %v3600 = vpop.permute.xlu0 %3599
    %v3602 = vadd.f32 %v3566, %v3585
    %v3603 = vadd.f32 %v3567, %v3585
    %v3604 = vadd.f32 %v3568, %v3585
    %v3605 = vadd.f32 %v3569, %v3590
    %v3606 = vadd.f32 %v3570, %v3590
    %v3607 = vadd.f32 %v3571, %v3590
    %v3608 = vadd.f32 %v3572, %v3595
    %v3609 = vadd.f32 %v3573, %v3595
    %v3610 = vadd.f32 %v3574, %v3595
    %v3611 = vadd.f32 %v3575, %v3600
    %v3612 = vadd.f32 %v3576, %v3600
    %v3613 = vadd.f32 %v3577, %v3600
    %v3614 = vmax.f32 %v3602, 0.0
    %v3615 = vmax.f32 %v3603, 0.0
    %v3616 = vmax.f32 %v3604, 0.0
    %v3617 = vmax.f32 %v3605, 0.0
    %v3618 = vmax.f32 %v3606, 0.0
    %v3619 = vmax.f32 %v3607, 0.0
    %v3620 = vmax.f32 %v3608, 0.0
    %v3621 = vmax.f32 %v3609, 0.0
    %v3622 = vmax.f32 %v3610, 0.0
    %v3623 = vmax.f32 %v3611, 0.0
    %v3624 = vmax.f32 %v3612, 0.0
    %v3625 = vmax.f32 %v3613, 0.0
    %v3626 = vld [vmem:[%s3] sm:$0xff]
    %v3627 = vld [vmem:[%s3 + $0x8] sm:$0xff]
    %v3628 = vld [vmem:[%s3 + $0x10] sm:$0xff]
    %v3629 = vld [vmem:[%s3 + $0x18] sm:$0xff]
    %v3630 = vld [vmem:[%s4] sm:$0xff]
    %v3631 = vld [vmem:[%s4 + $0x8] sm:$0xff]
    %v3632 = vld [vmem:[%s4 + $0x10] sm:$0xff]
    %v3633 = vld [vmem:[%s4 + $0x18] sm:$0xff]
    %3635 = vset.pattern.permute.xlu0 0
    %3636 = vperm.xlu0 %3635, %v3630
    %v3637 = vpop.permute.xlu0 %3636
    %3640 = vset.pattern.permute.xlu0 0
    %3641 = vperm.xlu0 %3640, %v3631
    %v3642 = vpop.permute.xlu0 %3641
    %3645 = vset.pattern.permute.xlu0 0
    %3646 = vperm.xlu0 %3645, %v3632
    %v3647 = vpop.permute.xlu0 %3646
    %3650 = vset.pattern.permute.xlu0 0
    %3651 = vperm.xlu0 %3650, %v3633
    %v3652 = vpop.permute.xlu0 %3651
    %vm3654 = vcmask 261120
    %v3656 = vsel %vm3654, %v3626, 0
    %v3659 = vsel %vm3654, %v3627, 0
    %v3662 = vsel %vm3654, %v3628, 0
    %v3665 = vsel %vm3654, %v3629, 0
    %3667 = vmatprep.subr.mxu0 0.0
    %3668 = vmatpush1.msra.mxu0 0.0
    %3669 = vmatprep.subr.mxu0 0.0
    %3670 = vmatpush1.msra.mxu0 0.0
    %3671 = vmatprep.subr.mxu0 0.0
    %3672 = vmatpush1.msra.mxu0 0.0
    %3673 = vmatprep.subr.mxu0 0.0
    %3674 = vmatpush1.msra.mxu0 0.0
    %3675 = vmatprep.subr.mxu0 0.0
    %3676 = vmatpush1.msra.mxu0 0.0
    %3677 = vmatprep.subr.mxu0 0.0
    %3678 = vmatpush1.msra.mxu0 0.0
    %3679 = vmatprep.subr.mxu0 0.0
    %3680 = vmatpush1.msra.mxu0 0.0
    %3681 = vmatprep.subr.mxu0 0.0
    %3682 = vmatpush1.msra.mxu0 0.0
    %3683 = vmatprep.subr.mxu0 0.0
    %3684 = vmatpush1.msra.mxu0 0.0
    %3685 = vmatprep.subr.mxu0 0.0
    %3686 = vmatpush1.msra.mxu0 0.0
    %3687 = vmatprep.subr.mxu0 0.0
    %3688 = vmatpush1.msra.mxu0 0.0
    %3689 = vmatprep.subr.mxu0 0.0
    %3690 = vmatpush1.msra.mxu0 0.0
    %3691 = vmatprep.subr.mxu0 %v3624
    %3692 = vmatpush1.msra.mxu0 %v3623
    %3693 = vmatprep.subr.mxu0 %v3621
    %3694 = vmatpush1.msra.mxu0 %v3620
    %3695 = vmatprep.subr.mxu0 %v3618
    %3696 = vmatpush1.msra.mxu0 %v3617
    %3697 = vmatprep.subr.mxu0 %v3615
    %3698 = vmatpush1.msra.mxu0 %v3614
    %3699 = vmatprep.subr.mxu0 0.0
    %3700 = vmatpush2.msra.mxu0 0.0
    %3701 = vmatprep.subr.mxu0 0.0
    %3702 = vmatpush2.msra.mxu0 0.0
    %3703 = vmatprep.subr.mxu0 0.0
    %3704 = vmatpush2.msra.mxu0 0.0
    %3705 = vmatprep.subr.mxu0 0.0
    %3706 = vmatpush2.msra.mxu0 0.0
    %3707 = vmatprep.subr.mxu0 0.0
    %3708 = vmatpush2.msra.mxu0 0.0
    %3709 = vmatprep.subr.mxu0 0.0
    %3710 = vmatpush2.msra.mxu0 0.0
    %3711 = vmatprep.subr.mxu0 0.0
    %3712 = vmatpush2.msra.mxu0 0.0
    %3713 = vmatprep.subr.mxu0 0.0
    %3714 = vmatpush2.msra.mxu0 0.0
    %3715 = vmatprep.subr.mxu0 0.0
    %3716 = vmatpush2.msra.mxu0 0.0
    %3717 = vmatprep.subr.mxu0 0.0
    %3718 = vmatpush2.msra.mxu0 0.0
    %3719 = vmatprep.subr.mxu0 0.0
    %3720 = vmatpush2.msra.mxu0 0.0
    %3721 = vmatprep.subr.mxu0 0.0
    %3722 = vmatpush2.msra.mxu0 0.0
    %3723 = vmatprep.subr.mxu0 0.0
    %3724 = vmatpush2.msra.mxu0 0.0
    %3725 = vmatprep.subr.mxu0 0.0
    %3726 = vmatpush2.msra.mxu0 0.0
    %3727 = vmatprep.subr.mxu0 0.0
    %3728 = vmatpush2.msra.mxu0 0.0
    %3729 = vmatprep.subr.mxu0 0.0
    %3730 = vmatpush2.msra.mxu0 0.0
    %3731 = vmatprep.mubr.f32.mxu0 0.0
    %3732 = vmatmul.mubr.f32.gmra.mxu0 %v3656
    %v3733 = vpop.f32.mrf.mxu0
    %v3734 = vadd.f32 %v3637, %v3733
    %v3735 = vpop.f32.mrf.mxu0
    %v3736 = vadd.f32 %v3637, %v3735
    %3737 = vmatprep.mubr.f32.mxu0 0.0
    %3738 = vmatmul.mubr.f32.gmra.mxu0 %v3659
    %v3739 = vpop.f32.mrf.mxu0
    %v3740 = vadd.f32 %v3642, %v3739
    %v3741 = vpop.f32.mrf.mxu0
    %v3742 = vadd.f32 %v3642, %v3741
    %3743 = vmatprep.mubr.f32.mxu0 0.0
    %3744 = vmatmul.mubr.f32.gmra.mxu0 %v3662
    %v3745 = vpop.f32.mrf.mxu0
    %v3746 = vadd.f32 %v3647, %v3745
    %v3747 = vpop.f32.mrf.mxu0
    %v3748 = vadd.f32 %v3647, %v3747
    %3749 = vmatprep.mubr.f32.mxu0 0.0
    %3750 = vmatmul.mubr.f32.gmra.mxu0 %v3665
    %v3751 = vpop.f32.mrf.mxu0
    %v3752 = vadd.f32 %v3652, %v3751
    %v3753 = vpop.f32.mrf.mxu0
    %v3754 = vadd.f32 %v3652, %v3753
    %3755 = vdwg.mxu0
    %3756 = vmatprep.subr.mxu0 0.0
    %3757 = vmatpush1.msra.mxu0 0.0
    %3758 = vmatprep.subr.mxu0 0.0
    %3759 = vmatpush1.msra.mxu0 0.0
    %3760 = vmatprep.subr.mxu0 0.0
    %3761 = vmatpush1.msra.mxu0 0.0
    %3762 = vmatprep.subr.mxu0 0.0
    %3763 = vmatpush1.msra.mxu0 0.0
    %3764 = vmatprep.subr.mxu0 0.0
    %3765 = vmatpush1.msra.mxu0 0.0
    %3766 = vmatprep.subr.mxu0 0.0
    %3767 = vmatpush1.msra.mxu0 0.0
    %3768 = vmatprep.subr.mxu0 0.0
    %3769 = vmatpush1.msra.mxu0 0.0
    %3770 = vmatprep.subr.mxu0 0.0
    %3771 = vmatpush1.msra.mxu0 0.0
    %3772 = vmatprep.subr.mxu0 0.0
    %3773 = vmatpush1.msra.mxu0 0.0
    %3774 = vmatprep.subr.mxu0 0.0
    %3775 = vmatpush1.msra.mxu0 0.0
    %3776 = vmatprep.subr.mxu0 0.0
    %3777 = vmatpush1.msra.mxu0 0.0
    %3778 = vmatprep.subr.mxu0 0.0
    %3779 = vmatpush1.msra.mxu0 0.0
    %3780 = vmatprep.subr.mxu0 0.0
    %3781 = vmatpush1.msra.mxu0 %v3625
    %3782 = vmatprep.subr.mxu0 0.0
    %3783 = vmatpush1.msra.mxu0 %v3622
    %3784 = vmatprep.subr.mxu0 0.0
    %3785 = vmatpush1.msra.mxu0 %v3619
    %3786 = vmatprep.subr.mxu0 0.0
    %3787 = vmatpush1.msra.mxu0 %v3616
    %3788 = vmatprep.subr.mxu0 0.0
    %3789 = vmatpush2.msra.mxu0 0.0
    %3790 = vmatprep.subr.mxu0 0.0
    %3791 = vmatpush2.msra.mxu0 0.0
    %3792 = vmatprep.subr.mxu0 0.0
    %3793 = vmatpush2.msra.mxu0 0.0
    %3794 = vmatprep.subr.mxu0 0.0
    %3795 = vmatpush2.msra.mxu0 0.0
    %3796 = vmatprep.subr.mxu0 0.0
    %3797 = vmatpush2.msra.mxu0 0.0
    %3798 = vmatprep.subr.mxu0 0.0
    %3799 = vmatpush2.msra.mxu0 0.0
    %3800 = vmatprep.subr.mxu0 0.0
    %3801 = vmatpush2.msra.mxu0 0.0
    %3802 = vmatprep.subr.mxu0 0.0
    %3803 = vmatpush2.msra.mxu0 0.0
    %3804 = vmatprep.subr.mxu0 0.0
    %3805 = vmatpush2.msra.mxu0 0.0
    %3806 = vmatprep.subr.mxu0 0.0
    %3807 = vmatpush2.msra.mxu0 0.0
    %3808 = vmatprep.subr.mxu0 0.0
    %3809 = vmatpush2.msra.mxu0 0.0
    %3810 = vmatprep.subr.mxu0 0.0
    %3811 = vmatpush2.msra.mxu0 0.0
    %3812 = vmatprep.subr.mxu0 0.0
    %3813 = vmatpush2.msra.mxu0 0.0
    %3814 = vmatprep.subr.mxu0 0.0
    %3815 = vmatpush2.msra.mxu0 0.0
    %3816 = vmatprep.subr.mxu0 0.0
    %3817 = vmatpush2.msra.mxu0 0.0
    %3818 = vmatprep.subr.mxu0 0.0
    %3819 = vmatpush2.msra.mxu0 0.0
    %3820 = vmatprep.mubr.f32.mxu0 0.0
    %3821 = vmatmul.mubr.f32.gmra.mxu0 %v3656
    %v3822 = vpop.f32.mrf.mxu0
    %v3823 = vadd.f32 %v3637, %v3822
    %v3824 = vpop.f32.mrf.mxu0
    %3825 = vmatprep.mubr.f32.mxu0 0.0
    %3826 = vmatmul.mubr.f32.gmra.mxu0 %v3659
    %v3827 = vpop.f32.mrf.mxu0
    %v3828 = vadd.f32 %v3642, %v3827
    %v3829 = vpop.f32.mrf.mxu0
    %3830 = vmatprep.mubr.f32.mxu0 0.0
    %3831 = vmatmul.mubr.f32.gmra.mxu0 %v3662
    %v3832 = vpop.f32.mrf.mxu0
    %v3833 = vadd.f32 %v3647, %v3832
    %v3834 = vpop.f32.mrf.mxu0
    %3835 = vmatprep.mubr.f32.mxu0 0.0
    %3836 = vmatmul.mubr.f32.gmra.mxu0 %v3665
    %v3837 = vpop.f32.mrf.mxu0
    %v3838 = vadd.f32 %v3652, %v3837
    %v3839 = vpop.f32.mrf.mxu0
    %3840 = vdwg.mxu0
    %v3841 = vmax.f32 %v3734, 0.0
    %v3842 = vmax.f32 %v3736, 0.0
    %v3843 = vmax.f32 %v3823, 0.0
    %v3844 = vmax.f32 %v3740, 0.0
    %v3845 = vmax.f32 %v3742, 0.0
    %v3846 = vmax.f32 %v3828, 0.0
    %v3847 = vmax.f32 %v3746, 0.0
    %v3848 = vmax.f32 %v3748, 0.0
    %v3849 = vmax.f32 %v3833, 0.0
    %v3850 = vmax.f32 %v3752, 0.0
    %v3851 = vmax.f32 %v3754, 0.0
    %v3852 = vmax.f32 %v3838, 0.0
    %v3853 = vld [vmem:[%s5] sm:$0x7]
    %v3854 = vld [vmem:[%s6] sm:$0x7]
    %3856 = vset.pattern.permute.xlu0 0
    %3857 = vperm.xlu0 %3856, %v3854
    %v3858 = vpop.permute.xlu0 %3857
    %v3861 = vsel %vm3654, %v3853, 0
    %3863 = vmatprep.subr.mxu0 0.0
    %3864 = vmatpush1.msra.mxu0 0.0
    %3865 = vmatprep.subr.mxu0 0.0
    %3866 = vmatpush1.msra.mxu0 0.0
    %3867 = vmatprep.subr.mxu0 0.0
    %3868 = vmatpush1.msra.mxu0 0.0
    %3869 = vmatprep.subr.mxu0 0.0
    %3870 = vmatpush1.msra.mxu0 0.0
    %3871 = vmatprep.subr.mxu0 0.0
    %3872 = vmatpush1.msra.mxu0 0.0
    %3873 = vmatprep.subr.mxu0 0.0
    %3874 = vmatpush1.msra.mxu0 0.0
    %3875 = vmatprep.subr.mxu0 0.0
    %3876 = vmatpush1.msra.mxu0 0.0
    %3877 = vmatprep.subr.mxu0 0.0
    %3878 = vmatpush1.msra.mxu0 0.0
    %3879 = vmatprep.subr.mxu0 0.0
    %3880 = vmatpush1.msra.mxu0 0.0
    %3881 = vmatprep.subr.mxu0 0.0
    %3882 = vmatpush1.msra.mxu0 0.0
    %3883 = vmatprep.subr.mxu0 0.0
    %3884 = vmatpush1.msra.mxu0 0.0
    %3885 = vmatprep.subr.mxu0 0.0
    %3886 = vmatpush1.msra.mxu0 0.0
    %3887 = vmatprep.subr.mxu0 %v3851
    %3888 = vmatpush1.msra.mxu0 %v3850
    %3889 = vmatprep.subr.mxu0 %v3848
    %3890 = vmatpush1.msra.mxu0 %v3847
    %3891 = vmatprep.subr.mxu0 %v3845
    %3892 = vmatpush1.msra.mxu0 %v3844
    %3893 = vmatprep.subr.mxu0 %v3842
    %3894 = vmatpush1.msra.mxu0 %v3841
    %3895 = vmatprep.subr.mxu0 0.0
    %3896 = vmatpush2.msra.mxu0 0.0
    %3897 = vmatprep.subr.mxu0 0.0
    %3898 = vmatpush2.msra.mxu0 0.0
    %3899 = vmatprep.subr.mxu0 0.0
    %3900 = vmatpush2.msra.mxu0 0.0
    %3901 = vmatprep.subr.mxu0 0.0
    %3902 = vmatpush2.msra.mxu0 0.0
    %3903 = vmatprep.subr.mxu0 0.0
    %3904 = vmatpush2.msra.mxu0 0.0
    %3905 = vmatprep.subr.mxu0 0.0
    %3906 = vmatpush2.msra.mxu0 0.0
    %3907 = vmatprep.subr.mxu0 0.0
    %3908 = vmatpush2.msra.mxu0 0.0
    %3909 = vmatprep.subr.mxu0 0.0
    %3910 = vmatpush2.msra.mxu0 0.0
    %3911 = vmatprep.subr.mxu0 0.0
    %3912 = vmatpush2.msra.mxu0 0.0
    %3913 = vmatprep.subr.mxu0 0.0
    %3914 = vmatpush2.msra.mxu0 0.0
    %3915 = vmatprep.subr.mxu0 0.0
    %3916 = vmatpush2.msra.mxu0 0.0
    %3917 = vmatprep.subr.mxu0 0.0
    %3918 = vmatpush2.msra.mxu0 0.0
    %3919 = vmatprep.subr.mxu0 0.0
    %3920 = vmatpush2.msra.mxu0 0.0
    %3921 = vmatprep.subr.mxu0 0.0
    %3922 = vmatpush2.msra.mxu0 0.0
    %3923 = vmatprep.subr.mxu0 0.0
    %3924 = vmatpush2.msra.mxu0 0.0
    %3925 = vmatprep.subr.mxu0 0.0
    %3926 = vmatpush2.msra.mxu0 0.0
    %3927 = vmatprep.mubr.f32.mxu0 0.0
    %3928 = vmatmul.mubr.f32.gmra.mxu0 %v3861
    %v3929 = vpop.f32.mrf.mxu0
    %v3930 = vadd.f32 %v3858, %v3929
    %v3931 = vpop.f32.mrf.mxu0
    %v3932 = vadd.f32 %v3858, %v3931
    %3933 = vdwg.mxu0
    %3934 = vmatprep.subr.mxu0 0.0
    %3935 = vmatpush1.msra.mxu0 0.0
    %3936 = vmatprep.subr.mxu0 0.0
    %3937 = vmatpush1.msra.mxu0 0.0
    %3938 = vmatprep.subr.mxu0 0.0
    %3939 = vmatpush1.msra.mxu0 0.0
    %3940 = vmatprep.subr.mxu0 0.0
    %3941 = vmatpush1.msra.mxu0 0.0
    %3942 = vmatprep.subr.mxu0 0.0
    %3943 = vmatpush1.msra.mxu0 0.0
    %3944 = vmatprep.subr.mxu0 0.0
    %3945 = vmatpush1.msra.mxu0 0.0
    %3946 = vmatprep.subr.mxu0 0.0
    %3947 = vmatpush1.msra.mxu0 0.0
    %3948 = vmatprep.subr.mxu0 0.0
    %3949 = vmatpush1.msra.mxu0 0.0
    %3950 = vmatprep.subr.mxu0 0.0
    %3951 = vmatpush1.msra.mxu0 0.0
    %3952 = vmatprep.subr.mxu0 0.0
    %3953 = vmatpush1.msra.mxu0 0.0
    %3954 = vmatprep.subr.mxu0 0.0
    %3955 = vmatpush1.msra.mxu0 0.0
    %3956 = vmatprep.subr.mxu0 0.0
    %3957 = vmatpush1.msra.mxu0 0.0
    %3958 = vmatprep.subr.mxu0 0.0
    %3959 = vmatpush1.msra.mxu0 %v3852
    %3960 = vmatprep.subr.mxu0 0.0
    %3961 = vmatpush1.msra.mxu0 %v3849
    %3962 = vmatprep.subr.mxu0 0.0
    %3963 = vmatpush1.msra.mxu0 %v3846
    %3964 = vmatprep.subr.mxu0 0.0
    %3965 = vmatpush1.msra.mxu0 %v3843
    %3966 = vmatprep.subr.mxu0 0.0
    %3967 = vmatpush2.msra.mxu0 0.0
    %3968 = vmatprep.subr.mxu0 0.0
    %3969 = vmatpush2.msra.mxu0 0.0
    %3970 = vmatprep.subr.mxu0 0.0
    %3971 = vmatpush2.msra.mxu0 0.0
    %3972 = vmatprep.subr.mxu0 0.0
    %3973 = vmatpush2.msra.mxu0 0.0
    %3974 = vmatprep.subr.mxu0 0.0
    %3975 = vmatpush2.msra.mxu0 0.0
    %3976 = vmatprep.subr.mxu0 0.0
    %3977 = vmatpush2.msra.mxu0 0.0
    %3978 = vmatprep.subr.mxu0 0.0
    %3979 = vmatpush2.msra.mxu0 0.0
    %3980 = vmatprep.subr.mxu0 0.0
    %3981 = vmatpush2.msra.mxu0 0.0
    %3982 = vmatprep.subr.mxu0 0.0
    %3983 = vmatpush2.msra.mxu0 0.0
    %3984 = vmatprep.subr.mxu0 0.0
    %3985 = vmatpush2.msra.mxu0 0.0
    %3986 = vmatprep.subr.mxu0 0.0
    %3987 = vmatpush2.msra.mxu0 0.0
    %3988 = vmatprep.subr.mxu0 0.0
    %3989 = vmatpush2.msra.mxu0 0.0
    %3990 = vmatprep.subr.mxu0 0.0
    %3991 = vmatpush2.msra.mxu0 0.0
    %3992 = vmatprep.subr.mxu0 0.0
    %3993 = vmatpush2.msra.mxu0 0.0
    %3994 = vmatprep.subr.mxu0 0.0
    %3995 = vmatpush2.msra.mxu0 0.0
    %3996 = vmatprep.subr.mxu0 0.0
    %3997 = vmatpush2.msra.mxu0 0.0
    %3998 = vmatprep.mubr.f32.mxu0 0.0
    %3999 = vmatmul.mubr.f32.gmra.mxu0 %v3861
    %v4000 = vpop.f32.mrf.mxu0
    %v4001 = vadd.f32 %v3858, %v4000
    %v4002 = vpop.f32.mrf.mxu0
    %4003 = vdwg.mxu0
    %v4004 = vmax.f32 %v3930, 0.0
    %v4005 = vmax.f32 %v3932, 0.0
    %v4006 = vmax.f32 %v4001, 0.0
    %v4009 = vcombine.low %v4004, %v4005
    %4011 = vst [vmem:[#allocation2] sm:$0x77] %v4009
    %4012 = vst [vmem:[#allocation2 + $0x8] sm:$0x7] %v4006
    // Predicated region
    $region30: #{tpu_custom_call.1} parent=1 // pred_check
      _
    $region31: #{tpu_custom_call.1} parent=1 // pred_check_branch
      %4014 = sbr.rel (0) target = $region33
    $region32: #{tpu_custom_call.1} parent=1 // pred_region
      %s4016 = ssub.s32 192, 192
      %4017 = vsyncadd [#allocation3], %s4016
      %s4019 = sshll.u32 [#allocation2], 4
      %s4020 = int_to_ptr.vmem [resolvable:$true] %s4019
      %4022 = dma.vmem_to_hbm [thread:$0]  %s4020, 192, %s7, [#allocation3]
    $region33: #{tpu_custom_call.1} parent=1 // pred_fallthru
      _
    // Predicated region
    $region34: #{tpu_custom_call.1} parent=1 // pred_check
      _
    $region35: #{tpu_custom_call.1} parent=1 // pred_check_branch
      %4024 = sbr.rel (0) target = $region37
    $region36: #{tpu_custom_call.1} parent=1 // pred_region
      %4025 = dma.done [#allocation3], 192
    $region37: #{tpu_custom_call.1} parent=1 // pred_fallthru
      _
    %4026 = vsyncpa [#allocation3], 1

</llo_original>
